<compile_context>
chip_gen: v7x
topology: tpu7x:2x2x1
jax: 0.10.0
libtpu: 0.0.40
codegen_flags: <defaults>
</compile_context>

<pallas_src>
import functools

import jax
import jax.numpy as jnp
import numpy as np
from jax import lax
from jax.experimental import pallas as pl
from jax.experimental.pallas import tpu as pltpu

_BN_EPS = 1e-5
_LANE = 128
_ROW_ALIGN = 16          # bf16 sublane packing: keep all row offsets 16-aligned
_W_EXTRA = 16            # extra rows per aligned window (>= max kw shift of 2)


def _round_up(x, m):
    return (x + m - 1) // m * m


def _fold_bn(gamma, beta, mean, var):
    scale = gamma / jnp.sqrt(var + _BN_EPS)
    bias = beta - mean * scale
    return scale, bias


def _vmem_limit_bytes():
    """Generation-dependent VMEM budget: ~96 MiB on 128 MiB parts, 48 MiB on v7x."""
    cap = 64 * 1024 * 1024
    try:
        cap = int(getattr(pltpu.get_tpu_info(), "vmem_capacity_bytes", cap))
    except Exception:
        pass
    return int(min(cap * 3 // 4, 100 * 1024 * 1024))


# ----------------------------------------------------------------------------
# Conv plan: polyphase + row-flatten layout so that every (kh,kw) tap of the
# convolution is a contiguous row window of a per-image 2D buffer, and the
# output is M-tiled.  For output flat row m (= oh*wq + ow), tap (i,j) reads
# phase ((i%s),(j%s)) at flat row  m + (i//s)*wq + (j//s).
# The input is delivered as per-M-tile slabs of (n_phase * (tile_m + halo))
# rows, so tap windows are 16-aligned static slices inside the slab and the
# small (j//s) shift is applied to the f32 product instead.
# ----------------------------------------------------------------------------
def _conv_plan(h, w, stride, tile_m):
    kh = kw = 3
    pad = 1
    s = stride
    ho = (h + 2 * pad - kh) // s + 1
    wo = (w + 2 * pad - kw) // s + 1
    dmax = (kw - 1) // s                          # width tap shifts: 0..dmax
    wq = _round_up(wo + dmax, _ROW_ALIGN)         # 16-aligned flat row width
    hq = ho + (kh - 1) // s
    mo = ho * wq                                  # real flat output rows (x16)
    tm = min(_round_up(tile_m, _ROW_ALIGN), mo)
    n_mtiles = -(-mo // tm)
    mo_pad = n_mtiles * tm
    halo = ((kh - 1) // s) * wq + _W_EXTRA        # halo rows per tile & phase
    slab = tm + halo                              # rows per (tile, phase) slab
    n_phase = s * s
    # Tap groups: one aligned bf16 window per (kh row, width-phase); one MXU
    # matmul per tap; width shift d applied to the f32 product.
    groups = []
    for i in range(kh):
        for q in range(s):
            phase = (i % s) * s + q
            base = phase * slab + (i // s) * wq               # 16-aligned
            taps = tuple((i * kw + j, j // s) for j in range(q, kw, s))
            groups.append((base, taps))
    return dict(ho=ho, wo=wo, hq=hq, wq=wq, mo=mo, mo_pad=mo_pad, tm=tm,
                n_mtiles=n_mtiles, halo=halo, slab=slab, n_phase=n_phase,
                stride=s, pad=pad, groups=tuple(groups))


def _build_phase_row_tiles(x_nhwc, plan, dtype=jnp.bfloat16):
    """(n,h,w,c) -> (n, n_mtiles, n_phase*slab, c) bf16 halo'd row tiles."""
    n, _, _, c = x_nhwc.shape
    s, pad = plan["stride"], plan["pad"]
    hq, wq, tm = plan["hq"], plan["wq"], plan["tm"]
    slab, n_mtiles = plan["slab"], plan["n_mtiles"]
    L = plan["mo_pad"] + plan["halo"]
    x = jnp.pad(x_nhwc.astype(dtype), ((0, 0), (pad, pad), (pad, pad), (0, 0)))
    phases = []
    for p in range(s):
        for q in range(s):
            ph = x[:, p::s, q::s, :][:, :hq, :wq, :]
            ph = jnp.pad(ph, ((0, 0), (0, hq - ph.shape[1]),
                              (0, wq - ph.shape[2]), (0, 0)))
            flat = ph.reshape(n, hq * wq, c)
            phases.append(jnp.pad(flat, ((0, 0), (0, L - hq * wq), (0, 0))))
    full = jnp.stack(phases, axis=1)                       # (n, n_phase, L, c)
    tiles = [full[:, :, t * tm:t * tm + slab, :].reshape(n, -1, c)
             for t in range(n_mtiles)]
    return jnp.stack(tiles, axis=1)            # (n, n_mtiles, n_phase*slab, c)


def _to_out_rows(t_nhwc, plan, c_pad, dtype):
    """Lay an (n, ho, wo, c) tensor onto the conv's M-tiled flat output grid."""
    n, ho, wo, c = t_nhwc.shape
    assert ho == plan["ho"] and wo == plan["wo"]
    t = jnp.pad(t_nhwc.astype(dtype),
                ((0, 0), (0, 0), (0, plan["wq"] - wo), (0, c_pad - c)))
    t = t.reshape(n, plan["mo"], c_pad)
    return jnp.pad(t, ((0, 0), (0, plan["mo_pad"] - plan["mo"]), (0, 0)))


def _prep_weight(w_oihw, scale, cout_p, dtype):
    """OIHW -> (kh*kw, cin, cout_p) with BN scale folded in, zero-padded Cout."""
    cout, cin, kh, kw = w_oihw.shape
    wm = jnp.transpose(w_oihw, (2, 3, 1, 0)) * scale.reshape(1, 1, 1, cout)
    wm = jnp.pad(wm, ((0, 0), (0, 0), (0, 0), (0, cout_p - cout)))
    return wm.reshape(kh * kw, cin, cout_p).astype(dtype)


# ----------------------------------------------------------------------------
# Pallas kernel: direct 3x3 conv (per-tap MXU matmuls over aligned bf16
# windows) + folded BN bias [+ fused 1x1 projection shortcut | + fused
# identity shortcut] [+ ReLU], over one (batch, M-tile) output block.
# ----------------------------------------------------------------------------
def _conv_block_kernel(groups, tm, relu, has_sc_mm, has_res, *refs):
    it = iter(refs)
    ph_ref = next(it)                              # (1, 1, n_phase*slab, cin) bf16
    w_ref = next(it)                               # (9, cin, cout_p)          bf16
    b_ref = next(it)                               # (1, cout_p)               f32
    scx_ref = next(it) if has_sc_mm else None      # (1, tm, cin0)             bf16
    scw_ref = next(it) if has_sc_mm else None      # (cin0, cout_p)            bf16
    res_ref = next(it) if has_res else None        # (1, tm, cout_p)           bf16
    o_ref = next(it)                               # (1, tm, cout_p)

    acc = None
    for base, taps in groups:
        # One 16-aligned bf16 window per (kh-row, width-phase): no per-tap
        # cast and no unaligned packed-dtype sublane slice.
        win = ph_ref[0, 0, base:base + tm + _W_EXTRA, :]
        for t, d in taps:
            p = jnp.dot(win, w_ref[t], preferred_element_type=jnp.float32)
            contrib = p[d:d + tm, :]               # 32-bit sublane shift (cheap)
            acc = contrib if acc is None else acc + contrib

    if has_sc_mm:   # fused 1x1 projection shortcut (its BN scale folded in scw)
        acc = acc + jnp.dot(scx_ref[0], scw_ref[...],
                            preferred_element_type=jnp.float32)
    acc = acc + b_ref[...]              # folded BN bias (+ shortcut BN bias)
    if has_res:                         # fused identity shortcut (bf16 stream)
        acc = acc + res_ref[0].astype(jnp.float32)
    if relu:
        acc = jnp.maximum(acc, 0.0)
    o_ref[0] = acc.astype(o_ref.dtype)


def conv3x3_bn_pallas(x_nhwc, w_oihw, scale, bias, *, stride, relu,
                      shortcut=None, out_dtype=jnp.float32, tile_m=256):
    """Fused 3x3/pad-1 conv + folded BN [+ fused shortcut] [+ ReLU] -> NHWC.

    shortcut: None
              | ("identity", res_nhwc)                         # cout channels
              | ("conv1x1", x0_nhwc, w_sc, scale_sc, bias_sc)  # x0 pre-strided
    """
    n, h, w, cin = x_nhwc.shape
    cout, cin_w, kh, kw = w_oihw.shape
    assert cin == cin_w and (kh, kw) == (3, 3)
    plan = _conv_plan(h, w, stride, tile_m)
    ho, wo, wq = plan["ho"], plan["wo"], plan["wq"]
    tm, n_mtiles, mo_pad = plan["tm"], plan["n_mtiles"], plan["mo_pad"]
    cout_p = _round_up(cout, _LANE)               # lane-dense output stores

    ph = _build_phase_row_tiles(x_nhwc, plan)     # bf16 halo'd input row tiles
    wmat = _prep_weight(w_oihw, scale, cout_p, jnp.bfloat16)

    sc_args, sc_specs = [], []
    has_sc_mm = has_res = False
    if shortcut is not None and shortcut[0] == "conv1x1":
        has_sc_mm = True
        _, x0, w_sc, s_sc, b_sc = shortcut        # x0 already stride-subsampled
        cin0 = x0.shape[-1]
        scx = _to_out_rows(x0, plan, cin0, jnp.bfloat16)
        scw = jnp.pad(w_sc[:, :, 0, 0].T * s_sc.reshape(1, cout),
                      ((0, 0), (0, cout_p - cout))).astype(jnp.bfloat16)
        bias = bias + b_sc                        # single fused bias add
        sc_args = [scx, scw]
        sc_specs = [pl.BlockSpec((1, tm, cin0), lambda b, m: (b, m, 0)),
                    pl.BlockSpec((cin0, cout_p), lambda b, m: (0, 0))]
    elif shortcut is not None and shortcut[0] == "identity":
        has_res = True
        res = _to_out_rows(shortcut[1], plan, cout_p, jnp.bfloat16)
        sc_args = [res]
        sc_specs = [pl.BlockSpec((1, tm, cout_p), lambda b, m: (b, m, 0))]

    b_total = jnp.pad(bias.astype(jnp.float32),
                      (0, cout_p - cout)).reshape(1, cout_p)

    kernel = functools.partial(_conv_block_kernel, plan["groups"], tm, relu,
                               has_sc_mm, has_res)
    out = pl.pallas_call(
        kernel,
        out_shape=jax.ShapeDtypeStruct((n, mo_pad, cout_p), out_dtype),
        grid=(n, n_mtiles),
        in_specs=[
            pl.BlockSpec((1, 1, plan["n_phase"] * plan["slab"], cin),
                         lambda b, m: (b, m, 0, 0)),
            pl.BlockSpec((kh * kw, cin, cout_p), lambda b, m: (0, 0, 0)),
            pl.BlockSpec((1, cout_p), lambda b, m: (0, 0)),
        ] + sc_specs,
        out_specs=pl.BlockSpec((1, tm, cout_p), lambda b, m: (b, m, 0)),
        compiler_params=pltpu.CompilerParams(
            dimension_semantics=("parallel", "parallel"),   # batch x M tiles
            vmem_limit_bytes=_vmem_limit_bytes(),           # per-generation
        ),
    )(ph, wmat, b_total, *sc_args)

    # M-tiled flat rows -> NHWC; drop padded rows / width junk / padded Cout.
    out = out[:, :plan["mo"], :].reshape(n, ho, wq, cout_p)
    return out[:, :, :wo, :cout]


# ----------------------------------------------------------------------------
# BasicBlock forward (NCHW in / NCHW out, like the PyTorch module)
# ----------------------------------------------------------------------------
def basic_block_forward(x_nchw, params, *, in_channels, out_channels, stride):
    x = jnp.transpose(x_nchw, (0, 2, 3, 1))             # NCHW -> NHWC (once)
    s1, b1 = _fold_bn(*params["bn1"])
    s2, b2 = _fold_bn(*params["bn2"])

    # conv3x3(stride) + BN + ReLU    (bf16 intermediate, NHWC)
    y = conv3x3_bn_pallas(x, params["w1"], s1, b1, stride=stride, relu=True,
                          out_dtype=jnp.bfloat16)

    if stride != 1 or in_channels != out_channels:
        ss, sb = _fold_bn(*params["bn_sc"])
        ho, wo = y.shape[1], y.shape[2]
        x_sub = x[:, ::stride, ::stride, :][:, :ho, :wo, :]
        shortcut = ("conv1x1", x_sub, params["w_sc"], ss, sb)
    else:
        shortcut = ("identity", x)

    # conv3x3(1) + BN, fused with the shortcut and the final ReLU (1 kernel).
    # TODO(synk): when chaining blocks, emit bf16 here and keep the NHWC/flat
    #             layout across blocks instead of f32 + NCHW transpose.
    y = conv3x3_bn_pallas(y, params["w2"], s2, b2, stride=1, relu=True,
                          shortcut=shortcut, out_dtype=jnp.float32)
    return jnp.transpose(y, (0, 3, 1, 2))               # NHWC -> NCHW (once)


# ----------------------------------------------------------------------------
# Pure-JAX reference mirroring the kernel's precision policy
# (bf16 conv operands with folded BN scale, f32 accumulate, bf16 intermediate
#  and bf16 residual/shortcut operands).
# ----------------------------------------------------------------------------
def _q(t):
    return t.astype(jnp.bfloat16).astype(jnp.float32)


def _ref_conv(x, w, stride, pad):
    return lax.conv_general_dilated(
        x, w, (stride, stride), [(pad, pad), (pad, pad)],
        dimension_numbers=("NCHW", "OIHW", "NCHW"),
        precision=lax.Precision.HIGHEST)


def basic_block_ref(x_nchw, params, *, in_channels, out_channels, stride):
    s1, b1 = _fold_bn(*params["bn1"])
    s2, b2 = _fold_bn(*params["bn2"])
    xq = _q(x_nchw)
    w1f = _q(params["w1"] * s1.reshape(-1, 1, 1, 1))
    y = _ref_conv(xq, w1f, stride, 1) + b1.reshape(1, -1, 1, 1)
    y = _q(jnp.maximum(y, 0.0))
    w2f = _q(params["w2"] * s2.reshape(-1, 1, 1, 1))
    y = _ref_conv(y, w2f, 1, 1) + b2.reshape(1, -1, 1, 1)
    if stride != 1 or in_channels != out_channels:
        ss, sb = _fold_bn(*params["bn_sc"])
        wsf = _q(params["w_sc"] * ss.reshape(-1, 1, 1, 1))
        sc = _ref_conv(xq, wsf, stride, 0) + sb.reshape(1, -1, 1, 1)
    else:
        sc = _q(x_nchw)
    return jnp.maximum(y + sc, 0.0)


# ----------------------------------------------------------------------------
if __name__ == "__main__":
    def bn_params(k, c):
        k1, k2, k3, k4 = jax.random.split(k, 4)
        gamma = 1.0 + 0.1 * jax.random.normal(k1, (c,), jnp.float32)
        beta = 0.1 * jax.random.normal(k2, (c,), jnp.float32)
        mean = 0.1 * jax.random.normal(k3, (c,), jnp.float32)
        var = jnp.abs(jax.random.normal(k4, (c,), jnp.float32)) + 0.5
        return (gamma, beta, mean, var)

    key = jax.random.PRNGKey(0)
    N, H, W = 2, 16, 16
    configs = [
        dict(in_channels=4, out_channels=8, stride=2),   # projection shortcut
        dict(in_channels=8, out_channels=8, stride=1),   # identity shortcut
    ]

    for cfg in configs:
        cin, cout, stride = cfg["in_channels"], cfg["out_channels"], cfg["stride"]
        key, *ks = jax.random.split(key, 8)
        params = {
            "w1": 0.1 * jax.random.normal(ks[0], (cout, cin, 3, 3), jnp.float32),
            "bn1": bn_params(ks[1], cout),
            "w2": 0.1 * jax.random.normal(ks[2], (cout, cout, 3, 3), jnp.float32),
            "bn2": bn_params(ks[3], cout),
        }
        if stride != 1 or cin != cout:
            params["w_sc"] = 0.1 * jax.random.normal(
                ks[4], (cout, cin, 1, 1), jnp.float32)
            params["bn_sc"] = bn_params(ks[5], cout)
        x = jax.random.normal(ks[6], (N, cin, H, W), jnp.float32)   # NCHW input

        fwd = jax.jit(functools.partial(basic_block_forward, **cfg))
        out = jax.block_until_ready(fwd(x, params))
        ref = basic_block_ref(x, params, **cfg)
        np.testing.assert_allclose(np.asarray(out), np.asarray(ref),
                                   atol=2e-4, rtol=2e-4)

    print("KERNEL_OK")
</pallas_src>

<mosaic_0001>
module attributes {stable_mosaic.version = 11 : i64} {
  func.func @_conv_block_kernel(%arg0: i32, %arg1: i32, %arg2: memref<1x1x640x4xbf16, #tpu.memory_space<vmem>>, %arg3: memref<9x4x128xbf16, #tpu.memory_space<vmem>>, %arg4: memref<1x128xf32, #tpu.memory_space<vmem>>, %arg5: memref<1x128x128xbf16, #tpu.memory_space<vmem>>) attributes {dimension_semantics = [#tpu.dimension_semantics<parallel>, #tpu.dimension_semantics<parallel>], iteration_bounds = array<i64: 2, 1>, scalar_prefetch = 0 : i64, scratch_operands = 0 : i64, tpu.core_type = #tpu.core_type<tc>, window_params = [{transform_indices = @transform_0, window_bounds = array<i64: 1, 1, 640, 4>}, {pipeline_mode = #tpu.pipeline_mode<synchronous>, transform_indices = @transform_1, window_bounds = array<i64: 9, 4, 128>}, {pipeline_mode = #tpu.pipeline_mode<synchronous>, transform_indices = @transform_2, window_bounds = array<i64: 1, 128>}, {transform_indices = @transform_3, window_bounds = array<i64: 1, 128, 128>}]} {
    %c0 = arith.constant 0 : index
    %c0_0 = arith.constant 0 : index
    %c0_1 = arith.constant 0 : index
    %c0_2 = arith.constant 0 : index
    %0 = vector.load %arg2[%c0, %c0_0, %c0_1, %c0_2] : memref<1x1x640x4xbf16, #tpu.memory_space<vmem>>, vector<1x1x144x4xbf16>
    %1 = vector.shape_cast %0 : vector<1x1x144x4xbf16> to vector<144x4xbf16>
    %c0_3 = arith.constant 0 : index
    %c0_4 = arith.constant 0 : index
    %c0_5 = arith.constant 0 : index
    %2 = vector.load %arg3[%c0_3, %c0_4, %c0_5] : memref<9x4x128xbf16, #tpu.memory_space<vmem>>, vector<1x4x128xbf16>
    %3 = vector.shape_cast %2 : vector<1x4x128xbf16> to vector<4x128xbf16>
    %cst = arith.constant dense<0.000000e+00> : vector<144x128xf32>
    %4 = tpu.matmul %1, %3, %cst {dimension_numbers = #tpu.dot_dimension_numbers<[1], [0], [0], [1], [0, 0, 1, 1], [], []>} : vector<144x4xbf16>, vector<4x128xbf16>, vector<144x128xf32> -> vector<144x128xf32>
    %5 = vector.extract_strided_slice %4 {offsets = [0, 0], sizes = [128, 128], strides = [1, 1]} : vector<144x128xf32> to vector<128x128xf32>
    %c2 = arith.constant 2 : index
    %c0_6 = arith.constant 0 : index
    %c0_7 = arith.constant 0 : index
    %6 = vector.load %arg3[%c2, %c0_6, %c0_7] : memref<9x4x128xbf16, #tpu.memory_space<vmem>>, vector<1x4x128xbf16>
    %7 = vector.shape_cast %6 : vector<1x4x128xbf16> to vector<4x128xbf16>
    %cst_8 = arith.constant dense<0.000000e+00> : vector<144x128xf32>
    %8 = tpu.matmul %1, %7, %cst_8 {dimension_numbers = #tpu.dot_dimension_numbers<[1], [0], [0], [1], [0, 0, 1, 1], [], []>} : vector<144x4xbf16>, vector<4x128xbf16>, vector<144x128xf32> -> vector<144x128xf32>
    %9 = vector.extract_strided_slice %8 {offsets = [1, 0], sizes = [128, 128], strides = [1, 1]} : vector<144x128xf32> to vector<128x128xf32>
    %10 = arith.addf %5, %9 : vector<128x128xf32>
    %c0_9 = arith.constant 0 : index
    %c0_10 = arith.constant 0 : index
    %c160 = arith.constant 160 : index
    %c0_11 = arith.constant 0 : index
    %11 = vector.load %arg2[%c0_9, %c0_10, %c160, %c0_11] : memref<1x1x640x4xbf16, #tpu.memory_space<vmem>>, vector<1x1x144x4xbf16>
    %12 = vector.shape_cast %11 : vector<1x1x144x4xbf16> to vector<144x4xbf16>
    %c1 = arith.constant 1 : index
    %c0_12 = arith.constant 0 : index
    %c0_13 = arith.constant 0 : index
    %13 = vector.load %arg3[%c1, %c0_12, %c0_13] : memref<9x4x128xbf16, #tpu.memory_space<vmem>>, vector<1x4x128xbf16>
    %14 = vector.shape_cast %13 : vector<1x4x128xbf16> to vector<4x128xbf16>
    %cst_14 = arith.constant dense<0.000000e+00> : vector<144x128xf32>
    %15 = tpu.matmul %12, %14, %cst_14 {dimension_numbers = #tpu.dot_dimension_numbers<[1], [0], [0], [1], [0, 0, 1, 1], [], []>} : vector<144x4xbf16>, vector<4x128xbf16>, vector<144x128xf32> -> vector<144x128xf32>
    %16 = vector.extract_strided_slice %15 {offsets = [0, 0], sizes = [128, 128], strides = [1, 1]} : vector<144x128xf32> to vector<128x128xf32>
    %17 = arith.addf %10, %16 : vector<128x128xf32>
    %c0_15 = arith.constant 0 : index
    %c0_16 = arith.constant 0 : index
    %c320 = arith.constant 320 : index
    %c0_17 = arith.constant 0 : index
    %18 = vector.load %arg2[%c0_15, %c0_16, %c320, %c0_17] : memref<1x1x640x4xbf16, #tpu.memory_space<vmem>>, vector<1x1x144x4xbf16>
    %19 = vector.shape_cast %18 : vector<1x1x144x4xbf16> to vector<144x4xbf16>
    %c3 = arith.constant 3 : index
    %c0_18 = arith.constant 0 : index
    %c0_19 = arith.constant 0 : index
    %20 = vector.load %arg3[%c3, %c0_18, %c0_19] : memref<9x4x128xbf16, #tpu.memory_space<vmem>>, vector<1x4x128xbf16>
    %21 = vector.shape_cast %20 : vector<1x4x128xbf16> to vector<4x128xbf16>
    %cst_20 = arith.constant dense<0.000000e+00> : vector<144x128xf32>
    %22 = tpu.matmul %19, %21, %cst_20 {dimension_numbers = #tpu.dot_dimension_numbers<[1], [0], [0], [1], [0, 0, 1, 1], [], []>} : vector<144x4xbf16>, vector<4x128xbf16>, vector<144x128xf32> -> vector<144x128xf32>
    %23 = vector.extract_strided_slice %22 {offsets = [0, 0], sizes = [128, 128], strides = [1, 1]} : vector<144x128xf32> to vector<128x128xf32>
    %24 = arith.addf %17, %23 : vector<128x128xf32>
    %c5 = arith.constant 5 : index
    %c0_21 = arith.constant 0 : index
    %c0_22 = arith.constant 0 : index
    %25 = vector.load %arg3[%c5, %c0_21, %c0_22] : memref<9x4x128xbf16, #tpu.memory_space<vmem>>, vector<1x4x128xbf16>
    %26 = vector.shape_cast %25 : vector<1x4x128xbf16> to vector<4x128xbf16>
    %cst_23 = arith.constant dense<0.000000e+00> : vector<144x128xf32>
    %27 = tpu.matmul %19, %26, %cst_23 {dimension_numbers = #tpu.dot_dimension_numbers<[1], [0], [0], [1], [0, 0, 1, 1], [], []>} : vector<144x4xbf16>, vector<4x128xbf16>, vector<144x128xf32> -> vector<144x128xf32>
    %28 = vector.extract_strided_slice %27 {offsets = [1, 0], sizes = [128, 128], strides = [1, 1]} : vector<144x128xf32> to vector<128x128xf32>
    %29 = arith.addf %24, %28 : vector<128x128xf32>
    %c0_24 = arith.constant 0 : index
    %c0_25 = arith.constant 0 : index
    %c480 = arith.constant 480 : index
    %c0_26 = arith.constant 0 : index
    %30 = vector.load %arg2[%c0_24, %c0_25, %c480, %c0_26] : memref<1x1x640x4xbf16, #tpu.memory_space<vmem>>, vector<1x1x144x4xbf16>
    %31 = vector.shape_cast %30 : vector<1x1x144x4xbf16> to vector<144x4xbf16>
    %c4 = arith.constant 4 : index
    %c0_27 = arith.constant 0 : index
    %c0_28 = arith.constant 0 : index
    %32 = vector.load %arg3[%c4, %c0_27, %c0_28] : memref<9x4x128xbf16, #tpu.memory_space<vmem>>, vector<1x4x128xbf16>
    %33 = vector.shape_cast %32 : vector<1x4x128xbf16> to vector<4x128xbf16>
    %cst_29 = arith.constant dense<0.000000e+00> : vector<144x128xf32>
    %34 = tpu.matmul %31, %33, %cst_29 {dimension_numbers = #tpu.dot_dimension_numbers<[1], [0], [0], [1], [0, 0, 1, 1], [], []>} : vector<144x4xbf16>, vector<4x128xbf16>, vector<144x128xf32> -> vector<144x128xf32>
    %35 = vector.extract_strided_slice %34 {offsets = [0, 0], sizes = [128, 128], strides = [1, 1]} : vector<144x128xf32> to vector<128x128xf32>
    %36 = arith.addf %29, %35 : vector<128x128xf32>
    %c0_30 = arith.constant 0 : index
    %c0_31 = arith.constant 0 : index
    %c16 = arith.constant 16 : index
    %c0_32 = arith.constant 0 : index
    %37 = vector.load %arg2[%c0_30, %c0_31, %c16, %c0_32] : memref<1x1x640x4xbf16, #tpu.memory_space<vmem>>, vector<1x1x144x4xbf16>
    %38 = vector.shape_cast %37 : vector<1x1x144x4xbf16> to vector<144x4xbf16>
    %c6 = arith.constant 6 : index
    %c0_33 = arith.constant 0 : index
    %c0_34 = arith.constant 0 : index
    %39 = vector.load %arg3[%c6, %c0_33, %c0_34] : memref<9x4x128xbf16, #tpu.memory_space<vmem>>, vector<1x4x128xbf16>
    %40 = vector.shape_cast %39 : vector<1x4x128xbf16> to vector<4x128xbf16>
    %cst_35 = arith.constant dense<0.000000e+00> : vector<144x128xf32>
    %41 = tpu.matmul %38, %40, %cst_35 {dimension_numbers = #tpu.dot_dimension_numbers<[1], [0], [0], [1], [0, 0, 1, 1], [], []>} : vector<144x4xbf16>, vector<4x128xbf16>, vector<144x128xf32> -> vector<144x128xf32>
    %42 = vector.extract_strided_slice %41 {offsets = [0, 0], sizes = [128, 128], strides = [1, 1]} : vector<144x128xf32> to vector<128x128xf32>
    %43 = arith.addf %36, %42 : vector<128x128xf32>
    %c8 = arith.constant 8 : index
    %c0_36 = arith.constant 0 : index
    %c0_37 = arith.constant 0 : index
    %44 = vector.load %arg3[%c8, %c0_36, %c0_37] : memref<9x4x128xbf16, #tpu.memory_space<vmem>>, vector<1x4x128xbf16>
    %45 = vector.shape_cast %44 : vector<1x4x128xbf16> to vector<4x128xbf16>
    %cst_38 = arith.constant dense<0.000000e+00> : vector<144x128xf32>
    %46 = tpu.matmul %38, %45, %cst_38 {dimension_numbers = #tpu.dot_dimension_numbers<[1], [0], [0], [1], [0, 0, 1, 1], [], []>} : vector<144x4xbf16>, vector<4x128xbf16>, vector<144x128xf32> -> vector<144x128xf32>
    %47 = vector.extract_strided_slice %46 {offsets = [1, 0], sizes = [128, 128], strides = [1, 1]} : vector<144x128xf32> to vector<128x128xf32>
    %48 = arith.addf %43, %47 : vector<128x128xf32>
    %c0_39 = arith.constant 0 : index
    %c0_40 = arith.constant 0 : index
    %c176 = arith.constant 176 : index
    %c0_41 = arith.constant 0 : index
    %49 = vector.load %arg2[%c0_39, %c0_40, %c176, %c0_41] : memref<1x1x640x4xbf16, #tpu.memory_space<vmem>>, vector<1x1x144x4xbf16>
    %50 = vector.shape_cast %49 : vector<1x1x144x4xbf16> to vector<144x4xbf16>
    %c7 = arith.constant 7 : index
    %c0_42 = arith.constant 0 : index
    %c0_43 = arith.constant 0 : index
    %51 = vector.load %arg3[%c7, %c0_42, %c0_43] : memref<9x4x128xbf16, #tpu.memory_space<vmem>>, vector<1x4x128xbf16>
    %52 = vector.shape_cast %51 : vector<1x4x128xbf16> to vector<4x128xbf16>
    %cst_44 = arith.constant dense<0.000000e+00> : vector<144x128xf32>
    %53 = tpu.matmul %50, %52, %cst_44 {dimension_numbers = #tpu.dot_dimension_numbers<[1], [0], [0], [1], [0, 0, 1, 1], [], []>} : vector<144x4xbf16>, vector<4x128xbf16>, vector<144x128xf32> -> vector<144x128xf32>
    %54 = vector.extract_strided_slice %53 {offsets = [0, 0], sizes = [128, 128], strides = [1, 1]} : vector<144x128xf32> to vector<128x128xf32>
    %55 = arith.addf %48, %54 : vector<128x128xf32>
    %c0_45 = arith.constant 0 : index
    %c0_46 = arith.constant 0 : index
    %56 = vector.load %arg4[%c0_45, %c0_46] : memref<1x128xf32, #tpu.memory_space<vmem>>, vector<1x128xf32>
    %57 = vector.broadcast %56 : vector<1x128xf32> to vector<128x128xf32>
    %58 = arith.addf %55, %57 : vector<128x128xf32>
    %cst_47 = arith.constant 0.000000e+00 : f32
    %59 = vector.broadcast %cst_47 : f32 to vector<128x128xf32>
    %60 = arith.maximumf %58, %59 : vector<128x128xf32>
    %61 = arith.truncf %60 : vector<128x128xf32> to vector<128x128xbf16>
    %c0_48 = arith.constant 0 : index
    %c0_49 = arith.constant 0 : index
    %c0_50 = arith.constant 0 : index
    %62 = vector.load %arg5[%c0_48, %c0_49, %c0_50] : memref<1x128x128xbf16, #tpu.memory_space<vmem>>, vector<1x128x128xbf16>
    %63 = vector.shape_cast %62 : vector<1x128x128xbf16> to vector<128x128xbf16>
    %64 = vector.shape_cast %61 : vector<128x128xbf16> to vector<1x128x128xbf16>
    tpu.vector_store %arg5[%c0_48, %c0_49, %c0_50], %64 {strides = array<i32>} : memref<1x128x128xbf16, #tpu.memory_space<vmem>>, vector<1x128x128xbf16>,
    return
  }
  func.func @transform_0(%arg0: i32, %arg1: i32) -> (i32, i32, i32, i32) {
    %c0_i32 = arith.constant 0 : i32
    %c0_i32_0 = arith.constant 0 : i32
    %c0_i32_1 = arith.constant 0 : i32
    return %arg0, %arg1, %c0_i32, %c0_i32_0 : i32, i32, i32, i32
  }
  func.func @transform_1(%arg0: i32, %arg1: i32) -> (i32, i32, i32) {
    %c0_i32 = arith.constant 0 : i32
    %c0_i32_0 = arith.constant 0 : i32
    %c0_i32_1 = arith.constant 0 : i32
    %c0_i32_2 = arith.constant 0 : i32
    return %c0_i32, %c0_i32_0, %c0_i32_1 : i32, i32, i32
  }
  func.func @transform_2(%arg0: i32, %arg1: i32) -> (i32, i32) {
    %c0_i32 = arith.constant 0 : i32
    %c0_i32_0 = arith.constant 0 : i32
    %c0_i32_1 = arith.constant 0 : i32
    return %c0_i32, %c0_i32_0 : i32, i32
  }
  func.func @transform_3(%arg0: i32, %arg1: i32) -> (i32, i32, i32) {
    %c0_i32 = arith.constant 0 : i32
    %c0_i32_0 = arith.constant 0 : i32
    return %arg0, %arg1, %c0_i32 : i32, i32, i32
  }
}

module attributes {stable_mosaic.version = 11 : i64} {
  func.func @_conv_block_kernel(%arg0: i32, %arg1: i32, %arg2: memref<1x1x176x8xbf16, #tpu.memory_space<vmem>>, %arg3: memref<9x8x128xbf16, #tpu.memory_space<vmem>>, %arg4: memref<1x128xf32, #tpu.memory_space<vmem>>, %arg5: memref<1x128x4xbf16, #tpu.memory_space<vmem>>, %arg6: memref<4x128xbf16, #tpu.memory_space<vmem>>, %arg7: memref<1x128x128xf32, #tpu.memory_space<vmem>>) attributes {dimension_semantics = [#tpu.dimension_semantics<parallel>, #tpu.dimension_semantics<parallel>], iteration_bounds = array<i64: 2, 1>, scalar_prefetch = 0 : i64, scratch_operands = 0 : i64, tpu.core_type = #tpu.core_type<tc>, window_params = [{transform_indices = @transform_0, window_bounds = array<i64: 1, 1, 176, 8>}, {pipeline_mode = #tpu.pipeline_mode<synchronous>, transform_indices = @transform_1, window_bounds = array<i64: 9, 8, 128>}, {pipeline_mode = #tpu.pipeline_mode<synchronous>, transform_indices = @transform_2, window_bounds = array<i64: 1, 128>}, {transform_indices = @transform_3, window_bounds = array<i64: 1, 128, 4>}, {pipeline_mode = #tpu.pipeline_mode<synchronous>, transform_indices = @transform_4, window_bounds = array<i64: 4, 128>}, {transform_indices = @transform_5, window_bounds = array<i64: 1, 128, 128>}]} {
    %c0 = arith.constant 0 : index
    %c0_0 = arith.constant 0 : index
    %c0_1 = arith.constant 0 : index
    %c0_2 = arith.constant 0 : index
    %0 = vector.load %arg2[%c0, %c0_0, %c0_1, %c0_2] : memref<1x1x176x8xbf16, #tpu.memory_space<vmem>>, vector<1x1x144x8xbf16>
    %1 = vector.shape_cast %0 : vector<1x1x144x8xbf16> to vector<144x8xbf16>
    %c0_3 = arith.constant 0 : index
    %c0_4 = arith.constant 0 : index
    %c0_5 = arith.constant 0 : index
    %2 = vector.load %arg3[%c0_3, %c0_4, %c0_5] : memref<9x8x128xbf16, #tpu.memory_space<vmem>>, vector<1x8x128xbf16>
    %3 = vector.shape_cast %2 : vector<1x8x128xbf16> to vector<8x128xbf16>
    %cst = arith.constant dense<0.000000e+00> : vector<144x128xf32>
    %4 = tpu.matmul %1, %3, %cst {dimension_numbers = #tpu.dot_dimension_numbers<[1], [0], [0], [1], [0, 0, 1, 1], [], []>} : vector<144x8xbf16>, vector<8x128xbf16>, vector<144x128xf32> -> vector<144x128xf32>
    %5 = vector.extract_strided_slice %4 {offsets = [0, 0], sizes = [128, 128], strides = [1, 1]} : vector<144x128xf32> to vector<128x128xf32>
    %c1 = arith.constant 1 : index
    %c0_6 = arith.constant 0 : index
    %c0_7 = arith.constant 0 : index
    %6 = vector.load %arg3[%c1, %c0_6, %c0_7] : memref<9x8x128xbf16, #tpu.memory_space<vmem>>, vector<1x8x128xbf16>
    %7 = vector.shape_cast %6 : vector<1x8x128xbf16> to vector<8x128xbf16>
    %cst_8 = arith.constant dense<0.000000e+00> : vector<144x128xf32>
    %8 = tpu.matmul %1, %7, %cst_8 {dimension_numbers = #tpu.dot_dimension_numbers<[1], [0], [0], [1], [0, 0, 1, 1], [], []>} : vector<144x8xbf16>, vector<8x128xbf16>, vector<144x128xf32> -> vector<144x128xf32>
    %9 = vector.extract_strided_slice %8 {offsets = [1, 0], sizes = [128, 128], strides = [1, 1]} : vector<144x128xf32> to vector<128x128xf32>
    %10 = arith.addf %5, %9 : vector<128x128xf32>
    %c2 = arith.constant 2 : index
    %c0_9 = arith.constant 0 : index
    %c0_10 = arith.constant 0 : index
    %11 = vector.load %arg3[%c2, %c0_9, %c0_10] : memref<9x8x128xbf16, #tpu.memory_space<vmem>>, vector<1x8x128xbf16>
    %12 = vector.shape_cast %11 : vector<1x8x128xbf16> to vector<8x128xbf16>
    %cst_11 = arith.constant dense<0.000000e+00> : vector<144x128xf32>
    %13 = tpu.matmul %1, %12, %cst_11 {dimension_numbers = #tpu.dot_dimension_numbers<[1], [0], [0], [1], [0, 0, 1, 1], [], []>} : vector<144x8xbf16>, vector<8x128xbf16>, vector<144x128xf32> -> vector<144x128xf32>
    %14 = vector.extract_strided_slice %13 {offsets = [2, 0], sizes = [128, 128], strides = [1, 1]} : vector<144x128xf32> to vector<128x128xf32>
    %15 = arith.addf %10, %14 : vector<128x128xf32>
    %c0_12 = arith.constant 0 : index
    %c0_13 = arith.constant 0 : index
    %c16 = arith.constant 16 : index
    %c0_14 = arith.constant 0 : index
    %16 = vector.load %arg2[%c0_12, %c0_13, %c16, %c0_14] : memref<1x1x176x8xbf16, #tpu.memory_space<vmem>>, vector<1x1x144x8xbf16>
    %17 = vector.shape_cast %16 : vector<1x1x144x8xbf16> to vector<144x8xbf16>
    %c3 = arith.constant 3 : index
    %c0_15 = arith.constant 0 : index
    %c0_16 = arith.constant 0 : index
    %18 = vector.load %arg3[%c3, %c0_15, %c0_16] : memref<9x8x128xbf16, #tpu.memory_space<vmem>>, vector<1x8x128xbf16>
    %19 = vector.shape_cast %18 : vector<1x8x128xbf16> to vector<8x128xbf16>
    %cst_17 = arith.constant dense<0.000000e+00> : vector<144x128xf32>
    %20 = tpu.matmul %17, %19, %cst_17 {dimension_numbers = #tpu.dot_dimension_numbers<[1], [0], [0], [1], [0, 0, 1, 1], [], []>} : vector<144x8xbf16>, vector<8x128xbf16>, vector<144x128xf32> -> vector<144x128xf32>
    %21 = vector.extract_strided_slice %20 {offsets = [0, 0], sizes = [128, 128], strides = [1, 1]} : vector<144x128xf32> to vector<128x128xf32>
    %22 = arith.addf %15, %21 : vector<128x128xf32>
    %c4 = arith.constant 4 : index
    %c0_18 = arith.constant 0 : index
    %c0_19 = arith.constant 0 : index
    %23 = vector.load %arg3[%c4, %c0_18, %c0_19] : memref<9x8x128xbf16, #tpu.memory_space<vmem>>, vector<1x8x128xbf16>
    %24 = vector.shape_cast %23 : vector<1x8x128xbf16> to vector<8x128xbf16>
    %cst_20 = arith.constant dense<0.000000e+00> : vector<144x128xf32>
    %25 = tpu.matmul %17, %24, %cst_20 {dimension_numbers = #tpu.dot_dimension_numbers<[1], [0], [0], [1], [0, 0, 1, 1], [], []>} : vector<144x8xbf16>, vector<8x128xbf16>, vector<144x128xf32> -> vector<144x128xf32>
    %26 = vector.extract_strided_slice %25 {offsets = [1, 0], sizes = [128, 128], strides = [1, 1]} : vector<144x128xf32> to vector<128x128xf32>
    %27 = arith.addf %22, %26 : vector<128x128xf32>
    %c5 = arith.constant 5 : index
    %c0_21 = arith.constant 0 : index
    %c0_22 = arith.constant 0 : index
    %28 = vector.load %arg3[%c5, %c0_21, %c0_22] : memref<9x8x128xbf16, #tpu.memory_space<vmem>>, vector<1x8x128xbf16>
    %29 = vector.shape_cast %28 : vector<1x8x128xbf16> to vector<8x128xbf16>
    %cst_23 = arith.constant dense<0.000000e+00> : vector<144x128xf32>
    %30 = tpu.matmul %17, %29, %cst_23 {dimension_numbers = #tpu.dot_dimension_numbers<[1], [0], [0], [1], [0, 0, 1, 1], [], []>} : vector<144x8xbf16>, vector<8x128xbf16>, vector<144x128xf32> -> vector<144x128xf32>
    %31 = vector.extract_strided_slice %30 {offsets = [2, 0], sizes = [128, 128], strides = [1, 1]} : vector<144x128xf32> to vector<128x128xf32>
    %32 = arith.addf %27, %31 : vector<128x128xf32>
    %c0_24 = arith.constant 0 : index
    %c0_25 = arith.constant 0 : index
    %c32 = arith.constant 32 : index
    %c0_26 = arith.constant 0 : index
    %33 = vector.load %arg2[%c0_24, %c0_25, %c32, %c0_26] : memref<1x1x176x8xbf16, #tpu.memory_space<vmem>>, vector<1x1x144x8xbf16>
    %34 = vector.shape_cast %33 : vector<1x1x144x8xbf16> to vector<144x8xbf16>
    %c6 = arith.constant 6 : index
    %c0_27 = arith.constant 0 : index
    %c0_28 = arith.constant 0 : index
    %35 = vector.load %arg3[%c6, %c0_27, %c0_28] : memref<9x8x128xbf16, #tpu.memory_space<vmem>>, vector<1x8x128xbf16>
    %36 = vector.shape_cast %35 : vector<1x8x128xbf16> to vector<8x128xbf16>
    %cst_29 = arith.constant dense<0.000000e+00> : vector<144x128xf32>
    %37 = tpu.matmul %34, %36, %cst_29 {dimension_numbers = #tpu.dot_dimension_numbers<[1], [0], [0], [1], [0, 0, 1, 1], [], []>} : vector<144x8xbf16>, vector<8x128xbf16>, vector<144x128xf32> -> vector<144x128xf32>
    %38 = vector.extract_strided_slice %37 {offsets = [0, 0], sizes = [128, 128], strides = [1, 1]} : vector<144x128xf32> to vector<128x128xf32>
    %39 = arith.addf %32, %38 : vector<128x128xf32>
    %c7 = arith.constant 7 : index
    %c0_30 = arith.constant 0 : index
    %c0_31 = arith.constant 0 : index
    %40 = vector.load %arg3[%c7, %c0_30, %c0_31] : memref<9x8x128xbf16, #tpu.memory_space<vmem>>, vector<1x8x128xbf16>
    %41 = vector.shape_cast %40 : vector<1x8x128xbf16> to vector<8x128xbf16>
    %cst_32 = arith.constant dense<0.000000e+00> : vector<144x128xf32>
    %42 = tpu.matmul %34, %41, %cst_32 {dimension_numbers = #tpu.dot_dimension_numbers<[1], [0], [0], [1], [0, 0, 1, 1], [], []>} : vector<144x8xbf16>, vector<8x128xbf16>, vector<144x128xf32> -> vector<144x128xf32>
    %43 = vector.extract_strided_slice %42 {offsets = [1, 0], sizes = [128, 128], strides = [1, 1]} : vector<144x128xf32> to vector<128x128xf32>
    %44 = arith.addf %39, %43 : vector<128x128xf32>
    %c8 = arith.constant 8 : index
    %c0_33 = arith.constant 0 : index
    %c0_34 = arith.constant 0 : index
    %45 = vector.load %arg3[%c8, %c0_33, %c0_34] : memref<9x8x128xbf16, #tpu.memory_space<vmem>>, vector<1x8x128xbf16>
    %46 = vector.shape_cast %45 : vector<1x8x128xbf16> to vector<8x128xbf16>
    %cst_35 = arith.constant dense<0.000000e+00> : vector<144x128xf32>
    %47 = tpu.matmul %34, %46, %cst_35 {dimension_numbers = #tpu.dot_dimension_numbers<[1], [0], [0], [1], [0, 0, 1, 1], [], []>} : vector<144x8xbf16>, vector<8x128xbf16>, vector<144x128xf32> -> vector<144x128xf32>
    %48 = vector.extract_strided_slice %47 {offsets = [2, 0], sizes = [128, 128], strides = [1, 1]} : vector<144x128xf32> to vector<128x128xf32>
    %49 = arith.addf %44, %48 : vector<128x128xf32>
    %c0_36 = arith.constant 0 : index
    %c0_37 = arith.constant 0 : index
    %c0_38 = arith.constant 0 : index
    %50 = vector.load %arg5[%c0_36, %c0_37, %c0_38] : memref<1x128x4xbf16, #tpu.memory_space<vmem>>, vector<1x128x4xbf16>
    %51 = vector.shape_cast %50 : vector<1x128x4xbf16> to vector<128x4xbf16>
    %c0_39 = arith.constant 0 : index
    %c0_40 = arith.constant 0 : index
    %52 = vector.load %arg6[%c0_39, %c0_40] : memref<4x128xbf16, #tpu.memory_space<vmem>>, vector<4x128xbf16>
    %cst_41 = arith.constant dense<0.000000e+00> : vector<128x128xf32>
    %53 = tpu.matmul %51, %52, %cst_41 {dimension_numbers = #tpu.dot_dimension_numbers<[1], [0], [0], [1], [0, 0, 1, 1], [], []>} : vector<128x4xbf16>, vector<4x128xbf16>, vector<128x128xf32> -> vector<128x128xf32>
    %54 = arith.addf %49, %53 : vector<128x128xf32>
    %c0_42 = arith.constant 0 : index
    %c0_43 = arith.constant 0 : index
    %55 = vector.load %arg4[%c0_42, %c0_43] : memref<1x128xf32, #tpu.memory_space<vmem>>, vector<1x128xf32>
    %56 = vector.broadcast %55 : vector<1x128xf32> to vector<128x128xf32>
    %57 = arith.addf %54, %56 : vector<128x128xf32>
    %cst_44 = arith.constant 0.000000e+00 : f32
    %58 = vector.broadcast %cst_44 : f32 to vector<128x128xf32>
    %59 = arith.maximumf %57, %58 : vector<128x128xf32>
    %c0_45 = arith.constant 0 : index
    %c0_46 = arith.constant 0 : index
    %c0_47 = arith.constant 0 : index
    %60 = vector.load %arg7[%c0_45, %c0_46, %c0_47] : memref<1x128x128xf32, #tpu.memory_space<vmem>>, vector<1x128x128xf32>
    %61 = vector.shape_cast %60 : vector<1x128x128xf32> to vector<128x128xf32>
    %62 = vector.shape_cast %59 : vector<128x128xf32> to vector<1x128x128xf32>
    tpu.vector_store %arg7[%c0_45, %c0_46, %c0_47], %62 {strides = array<i32>} : memref<1x128x128xf32, #tpu.memory_space<vmem>>, vector<1x128x128xf32>,
    return
  }
  func.func @transform_0(%arg0: i32, %arg1: i32) -> (i32, i32, i32, i32) {
    %c0_i32 = arith.constant 0 : i32
    %c0_i32_0 = arith.constant 0 : i32
    %c0_i32_1 = arith.constant 0 : i32
    return %arg0, %arg1, %c0_i32, %c0_i32_0 : i32, i32, i32, i32
  }
  func.func @transform_1(%arg0: i32, %arg1: i32) -> (i32, i32, i32) {
    %c0_i32 = arith.constant 0 : i32
    %c0_i32_0 = arith.constant 0 : i32
    %c0_i32_1 = arith.constant 0 : i32
    %c0_i32_2 = arith.constant 0 : i32
    return %c0_i32, %c0_i32_0, %c0_i32_1 : i32, i32, i32
  }
  func.func @transform_2(%arg0: i32, %arg1: i32) -> (i32, i32) {
    %c0_i32 = arith.constant 0 : i32
    %c0_i32_0 = arith.constant 0 : i32
    %c0_i32_1 = arith.constant 0 : i32
    return %c0_i32, %c0_i32_0 : i32, i32
  }
  func.func @transform_3(%arg0: i32, %arg1: i32) -> (i32, i32, i32) {
    %c0_i32 = arith.constant 0 : i32
    %c0_i32_0 = arith.constant 0 : i32
    return %arg0, %arg1, %c0_i32 : i32, i32, i32
  }
  func.func @transform_4(%arg0: i32, %arg1: i32) -> (i32, i32) {
    %c0_i32 = arith.constant 0 : i32
    %c0_i32_0 = arith.constant 0 : i32
    %c0_i32_1 = arith.constant 0 : i32
    return %c0_i32, %c0_i32_0 : i32, i32
  }
  func.func @transform_5(%arg0: i32, %arg1: i32) -> (i32, i32, i32) {
    %c0_i32 = arith.constant 0 : i32
    %c0_i32_0 = arith.constant 0 : i32
    return %arg0, %arg1, %c0_i32 : i32, i32, i32
  }
}

</mosaic_0001>

<llo_original>
// kernel: basic_block_forward.2
$region0: #{basic_block_forward.2}
  #allocation0 [shape = 'u32[]', space=smem, size = 0x4, offset = 0x4, fixed_abs, tag = 'smem constant byte address 0x4 - core index']
  #allocation1 [shape = 'u32[144,128]{1,0:T(1,128)}', space=vmem, size = 0x12000, scoped, tag = 'internal scratch']
  %s0 = inlined_call_operand.vmem [shape: bf16[2,1,640,4], index: 0, kind: input, shape index: {}]
  %s1 = inlined_call_operand.vmem [shape: bf16[9,4,128], index: 1, kind: input, shape index: {}]
  %s2 = inlined_call_operand.vmem [shape: f32[1,128], index: 2, kind: input, shape index: {}]
  %s3 = inlined_call_operand.vmem [shape: bf16[2,128,128], index: 3, kind: output, shape index: {}]
  %s4 = sld [smem:[#allocation0]]
  $region45: #{basic_block_forward.2} parent=0
    _
  %s6 = ssub.s32 1, %s4
  %s7 = scalar_select 0, %s6, %s4
  loop: start=0, step=1, limit=4
  $region2: #{basic_block_forward.2} parent=0 // loop_pre_header
    _
  $region3: #{basic_block_forward.2} parent=0 // loop_header
    %s9 = sphi 0, %s13
    %p10 = scmp.ge.s32.totalorder %s9, 4
    %s16 = sphi 0, %s28
    %s17 = sphi 0, %s24
    %s18 = sphi 0, %s16
    %s19 = sphi 0, %s17
    %s20 = sphi 0, %s18
    %s21 = sphi 0, %s19
    %s33 = sphi 0, %s35
    %s36 = sphi 0, %s33
    %s37 = sphi 0, %s36
    %s53 = sphi 0, %s37
    %s57 = sphi 0, %s57
    %s59 = sphi 0, %s57
    %s60 = sphi 0, %s59
    %s74 = sphi 0, %s60
    %s78 = sphi 0, %s78
    %s80 = sphi 0, %s78
    %s81 = sphi 0, %s80
    %s95 = sphi 0, %s81
    %s103 = sphi 0, %s105
    %s106 = sphi 0, %s103
    %s107 = sphi 0, %s106
    %s123 = sphi 0, %s107
  $region4: #{basic_block_forward.2} parent=0 // loop_header_branch
    %12 = sbr.rel (%p10) target = $region8
  $region5: #{basic_block_forward.2} parent=0 // loop_body
    %s14 = ssub.s32 %s9, 1
    %s15 = ssub.s32 %s9, 2
    %s22 = sadd.s32 1, %s17
    %p23 = scmp.ge.s32.totalorder %s22, 1
    %s24 = scalar_select %p23, 0, %s22
    %s25 = sadd.s32 1, %s16
    %s26 = scalar_select %p23, %s25, %s16
    %p27 = scmp.ge.s32.totalorder %s26, 2
    %s28 = scalar_select %p27, 0, %s26
    %s29 = ssub.s32 %s16, %s28
    %s30 = ssub.s32 %s17, %s24
    %s31 = sor.u32 %s29, %s30
    %p32 = scmp.eq.s32.totalorder %s31, 0
    %s34 = sadd.s32 %s33, 1
    %s35 = scalar_select %p32, %s33, %s34
    %p38 = pneg %p32
    %p39 = scmp.eq.s32.totalorder %s9, 1
    %p40 = por %p38, %p39
    %p41 = scmp.ne.s32.totalorder %s33, %s36
    %p42 = scmp.eq.s32.totalorder %s9, 0
    %p43 = por %p41, %p42
    %p44 = scmp.ne.s32.totalorder %s33, %s36
    %p45 = scmp.eq.s32.totalorder %s14, 1
    %p46 = por %p44, %p45
    %p47 = scmp.ne.s32.totalorder %s36, %s37
    %p48 = scmp.eq.s32.totalorder %s14, 0
    %p49 = por %p47, %p48
    %p50 = scmp.ne.s32.totalorder %s36, %s37
    %p51 = scmp.eq.s32.totalorder %s15, 1
    %p52 = por %p50, %p51
    %p54 = scmp.ne.s32.totalorder %s37, %s53
    %p55 = scmp.eq.s32.totalorder %s15, 0
    %p56 = por %p54, %p55
    %s58 = sadd.s32 %s57, 1
    %p61 = scmp.eq.s32.totalorder %s9, 1
    %p62 = scmp.ne.s32.totalorder %s57, %s59
    %p63 = scmp.eq.s32.totalorder %s9, 0
    %p64 = por %p62, %p63
    %p65 = scmp.ne.s32.totalorder %s57, %s59
    %p66 = scmp.eq.s32.totalorder %s14, 1
    %p67 = por %p65, %p66
    %p68 = scmp.ne.s32.totalorder %s59, %s60
    %p69 = scmp.eq.s32.totalorder %s14, 0
    %p70 = por %p68, %p69
    %p71 = scmp.ne.s32.totalorder %s59, %s60
    %p72 = scmp.eq.s32.totalorder %s15, 1
    %p73 = por %p71, %p72
    %p75 = scmp.ne.s32.totalorder %s60, %s74
    %p76 = scmp.eq.s32.totalorder %s15, 0
    %p77 = por %p75, %p76
    %s79 = sadd.s32 %s78, 1
    %p82 = scmp.eq.s32.totalorder %s9, 1
    %p83 = scmp.ne.s32.totalorder %s78, %s80
    %p84 = scmp.eq.s32.totalorder %s9, 0
    %p85 = por %p83, %p84
    %p86 = scmp.ne.s32.totalorder %s78, %s80
    %p87 = scmp.eq.s32.totalorder %s14, 1
    %p88 = por %p86, %p87
    %p89 = scmp.ne.s32.totalorder %s80, %s81
    %p90 = scmp.eq.s32.totalorder %s14, 0
    %p91 = por %p89, %p90
    %p92 = scmp.ne.s32.totalorder %s80, %s81
    %p93 = scmp.eq.s32.totalorder %s15, 1
    %p94 = por %p92, %p93
    %p96 = scmp.ne.s32.totalorder %s81, %s95
    %p97 = scmp.eq.s32.totalorder %s15, 0
    %p98 = por %p96, %p97
    %s99 = ssub.s32 %s16, %s28
    %s100 = ssub.s32 %s17, %s24
    %s101 = sor.u32 %s99, %s100
    %p102 = scmp.eq.s32.totalorder %s101, 0
    %s104 = sadd.s32 %s103, 1
    %s105 = scalar_select %p102, %s103, %s104
    %p108 = pneg %p102
    %p109 = scmp.eq.s32.totalorder %s9, 1
    %p110 = por %p108, %p109
    %p111 = scmp.ne.s32.totalorder %s103, %s106
    %p112 = scmp.eq.s32.totalorder %s9, 0
    %p113 = por %p111, %p112
    %p114 = scmp.ne.s32.totalorder %s103, %s106
    %p115 = scmp.eq.s32.totalorder %s14, 1
    %p116 = por %p114, %p115
    %p117 = scmp.ne.s32.totalorder %s106, %s107
    %p118 = scmp.eq.s32.totalorder %s14, 0
    %p119 = por %p117, %p118
    %p120 = scmp.ne.s32.totalorder %s106, %s107
    %p121 = scmp.eq.s32.totalorder %s15, 1
    %p122 = por %p120, %p121
    %p124 = scmp.ne.s32.totalorder %s107, %s123
    %p125 = scmp.eq.s32.totalorder %s15, 0
    %p126 = por %p124, %p125
    %p127 = scmp.le.s32.totalorder 1, %s9
    %p128 = scmp.lt.s32.totalorder %s9, 3
    %p129 = pnand %p127, %p128
    %p130 = pneg %p129
    // Predicated region
    $region9: #{basic_block_forward.2} parent=5 // pred_check
      _
    $region10: #{basic_block_forward.2} parent=5 // pred_check_branch
      %132 = sbr.rel (%p129) target = $region12
    $region11: #{basic_block_forward.2} parent=5 // pred_region
      %s133 = ssub.s32 %s9, 1
      // Predicated region
      $region13: #{basic_block_forward.2} parent=11 // pred_check
        %p134 = pneg %p70
      $region14: #{basic_block_forward.2} parent=11 // pred_check_branch
        %136 = sbr.rel (%p134) target = $region16
      $region15: #{basic_block_forward.2} parent=11 // pred_region
        _
      $region16: #{basic_block_forward.2} parent=11 // pred_fallthru
        _
      // Predicated region
      $region17: #{basic_block_forward.2} parent=11 // pred_check
        %p137 = pneg %p91
      $region18: #{basic_block_forward.2} parent=11 // pred_check_branch
        %139 = sbr.rel (%p137) target = $region20
      $region19: #{basic_block_forward.2} parent=11 // pred_region
        _
      $region20: #{basic_block_forward.2} parent=11 // pred_fallthru
        _
    $region12: #{basic_block_forward.2} parent=5 // pred_fallthru
      _
    %p140 = scmp.lt.s32.totalorder %s9, 2
    // Predicated region
    $region21: #{basic_block_forward.2} parent=5 // pred_check
      %p141 = pneg %p140
    $region22: #{basic_block_forward.2} parent=5 // pred_check_branch
      %143 = sbr.rel (%p141) target = $region24
    $region23: #{basic_block_forward.2} parent=5 // pred_region
      // Predicated region
      $region25: #{basic_block_forward.2} parent=23 // pred_check
        %p144 = pneg %p43
      $region26: #{basic_block_forward.2} parent=23 // pred_check_branch
        %146 = sbr.rel (%p144) target = $region28
      $region27: #{basic_block_forward.2} parent=23 // pred_region
        %p147 = scmp.lt.s32.totalorder %s16, 1
        %s148 = scalar_select %p147, %s16, 1
        %p149 = scmp.lt.s32.totalorder %s17, 0
        %s150 = scalar_select %p149, %s17, 0
        %s151 = smul.addr %s150, 80
        %s152 = smul.addr %s148, 80
        %s153 = sadd.s32 %s151, %s152
        %s154 = smul.addr %s153, 4
        %s155 = scalar_lea.vmem %s0, %s154
      $region28: #{basic_block_forward.2} parent=23 // pred_fallthru
        _
    $region24: #{basic_block_forward.2} parent=5 // pred_fallthru
      _
    %p156 = scmp.le.s32.totalorder 1, %s9
    %p157 = scmp.lt.s32.totalorder %s9, 3
    %p158 = pnand %p156, %p157
    %p159 = pneg %p158
    // Predicated region
    $region29: #{basic_block_forward.2} parent=5 // pred_check
      _
    $region30: #{basic_block_forward.2} parent=5 // pred_check_branch
      %161 = sbr.rel (%p158) target = $region32
    $region31: #{basic_block_forward.2} parent=5 // pred_region
      %s162 = ssub.s32 %s9, 1
      %p163 = scmp.lt.s32.totalorder %s18, 1
      %s164 = scalar_select %p163, %s18, 1
      %p165 = scmp.lt.s32.totalorder %s19, 0
      %s166 = scalar_select %p165, %s19, 0
      %s167 = smul.addr %s166, 80
      %s168 = smul.addr %s164, 80
      %s169 = sadd.s32 %s167, %s168
      %s170 = smul.addr %s169, 4
      %s171 = scalar_lea.vmem %s0, %s170
      %p172 = pneg %p49
      %p173 = pneg %p46
      %p174 = pneg %p70
      %p175 = pneg %p67
      %p176 = pneg %p91
      %p177 = pneg %p88
      %p178 = pneg %p119
      %p179 = pneg %p116
      %s180 = smul.u32 16, %s19
      %p181 = scmp.lt.s32.totalorder %s18, 1
      %s182 = scalar_select %p181, %s18, 1
      %p183 = scmp.lt.s32.totalorder %s180, 15
      %s184 = scalar_select %p183, %s180, 15
      %s185 = smul.addr %s182, 16
      %s186 = sadd.s32 %s184, %s185
      %s187 = smul.addr %s186, 4
      %s188 = scalar_lea.vmem %s3, %s187
      %p189 = scmp.lt.s32.totalorder %s18, 1
      %s190 = scalar_select %p189, %s18, 1
      %p191 = scmp.lt.s32.totalorder %s19, 0
      %s192 = scalar_select %p191, %s19, 0
      %s193 = smul.addr %s192, 80
      %s194 = smul.addr %s190, 80
      %s195 = sadd.s32 %s193, %s194
      %s196 = smul.addr %s195, 4
      %s197 = scalar_lea.vmem %s0, %s196
      %s198 = smul.u32 16, %s19
      %p199 = scmp.lt.s32.totalorder %s18, 1
      %s200 = scalar_select %p199, %s18, 1
      %p201 = scmp.lt.s32.totalorder %s198, 15
      %s202 = scalar_select %p201, %s198, 15
      %s203 = smul.addr %s200, 16
      %s204 = sadd.s32 %s202, %s203
      %s205 = smul.addr %s204, 4
      %s206 = scalar_lea.vmem %s3, %s205
      %s207 = smul.u32 16, %s19
      %v209 = vld [vmem:[%s197] sm:$0xf]
      %v210 = vld [vmem:[%s197 + $0x4] sm:$0xf]
      %v211 = vld [vmem:[%s197 + $0x8] sm:$0xf]
      %v212 = vld [vmem:[%s197 + $0xc] sm:$0xf]
      %v213 = vld [vmem:[%s197 + $0x10] sm:$0xf]
      %v214 = vld [vmem:[%s197 + $0x14] sm:$0xf]
      %v215 = vld [vmem:[%s197 + $0x18] sm:$0xf]
      %v216 = vld [vmem:[%s197 + $0x1c] sm:$0xf]
      %v217 = vld [vmem:[%s197 + $0x20] sm:$0xf]
      %v218 = vld [vmem:[%s197 + $0x24] sm:$0xf]
      %v219 = vld [vmem:[%s197 + $0x28] sm:$0xf]
      %v220 = vld [vmem:[%s197 + $0x2c] sm:$0xf]
      %v221 = vld [vmem:[%s197 + $0x30] sm:$0xf]
      %v222 = vld [vmem:[%s197 + $0x34] sm:$0xf]
      %v223 = vld [vmem:[%s197 + $0x38] sm:$0xf]
      %v224 = vld [vmem:[%s197 + $0x3c] sm:$0xf]
      %v225 = vld [vmem:[%s197 + $0x40] sm:$0xf]
      %v226 = vld [vmem:[%s197 + $0x44] sm:$0xf]
      %v227 = vld [vmem:[%s1] sm:$0x3]
      %v246 = vunpack.c.l.b16 %v209
      %v247 = vunpack.c.l.b16 %v210
      %v248 = vunpack.c.l.b16 %v211
      %v249 = vunpack.c.l.b16 %v212
      %v250 = vunpack.c.l.b16 %v213
      %v251 = vunpack.c.l.b16 %v214
      %v252 = vunpack.c.l.b16 %v215
      %v253 = vunpack.c.l.b16 %v216
      %v254 = vunpack.c.l.b16 %v217
      %v255 = vunpack.c.l.b16 %v218
      %v256 = vunpack.c.l.b16 %v219
      %v257 = vunpack.c.l.b16 %v220
      %v258 = vunpack.c.l.b16 %v221
      %v259 = vunpack.c.l.b16 %v222
      %v260 = vunpack.c.l.b16 %v223
      %v261 = vunpack.c.l.b16 %v224
      %v262 = vunpack.c.l.b16 %v225
      %v263 = vunpack.c.l.b16 %v226
      %v264 = vpack.c.b16 %v247, %v246
      %v265 = vpack.c.b16 %v249, %v248
      %v266 = vpack.c.b16 %v251, %v250
      %v267 = vpack.c.b16 %v253, %v252
      %v268 = vpack.c.b16 %v255, %v254
      %v269 = vpack.c.b16 %v257, %v256
      %v270 = vpack.c.b16 %v259, %v258
      %v271 = vpack.c.b16 %v261, %v260
      %v272 = vpack.c.b16 %v263, %v262
      %vm273 = vcmask 31744
      %v275 = vsel %vm273, %v264, 0
      %v278 = vsel %vm273, %v265, 0
      %v281 = vsel %vm273, %v266, 0
      %v284 = vsel %vm273, %v267, 0
      %v287 = vsel %vm273, %v268, 0
      %v290 = vsel %vm273, %v269, 0
      %v293 = vsel %vm273, %v270, 0
      %v296 = vsel %vm273, %v271, 0
      %v299 = vsel %vm273, %v272, 0
      %vm301 = vcmask 1041408
      %v303 = vsel %vm301, %v227, 0
      %305 = vmatprep.subr.bf16.mxu0 0
      %306 = vmatpush1.bf16.msra.mxu0 %v303
      %307 = vmatprep.subr.bf16.mxu0 0
      %308 = vmatpush1.bf16.msra.mxu0 0
      %309 = vmatprep.subr.bf16.mxu0 0
      %310 = vmatpush1.bf16.msra.mxu0 0
      %311 = vmatprep.subr.bf16.mxu0 0
      %312 = vmatpush1.bf16.msra.mxu0 0
      %313 = vmatprep.subr.bf16.mxu0 0
      %314 = vmatpush1.bf16.msra.mxu0 0
      %315 = vmatprep.subr.bf16.mxu0 0
      %316 = vmatpush1.bf16.msra.mxu0 0
      %317 = vmatprep.subr.bf16.mxu0 0
      %318 = vmatpush1.bf16.msra.mxu0 0
      %319 = vmatprep.subr.bf16.mxu0 0
      %320 = vmatpush1.bf16.msra.mxu0 0
      %321 = vmatprep.subr.bf16.mxu0 0
      %322 = vmatpush1.bf16.msra.mxu0 0
      %323 = vmatprep.subr.bf16.mxu0 0
      %324 = vmatpush1.bf16.msra.mxu0 0
      %325 = vmatprep.subr.bf16.mxu0 0
      %326 = vmatpush1.bf16.msra.mxu0 0
      %327 = vmatprep.subr.bf16.mxu0 0
      %328 = vmatpush1.bf16.msra.mxu0 0
      %329 = vmatprep.subr.bf16.mxu0 0
      %330 = vmatpush1.bf16.msra.mxu0 0
      %331 = vmatprep.subr.bf16.mxu0 0
      %332 = vmatpush1.bf16.msra.mxu0 0
      %333 = vmatprep.subr.bf16.mxu0 0
      %334 = vmatpush1.bf16.msra.mxu0 0
      %335 = vmatprep.subr.bf16.mxu0 0
      %336 = vmatpush1.bf16.msra.mxu0 0
      %337 = vmatprep.mubr.bf16.mxu0 0
      %338 = vmatmul.mubr.bf16.gmra.mrb[0].mxu0 %v275
      %v339 = vpop.f32.mrb[0].mxu0
      %v340 = vadd.f32 0.0, %v339
      %v341 = vpop.f32.mrb[0].mxu0
      %v342 = vpop.f32.mrb[0].mxu0
      %v343 = vadd.f32 0.0, %v342
      %v344 = vpop.f32.mrb[0].mxu0
      %345 = vmatprep.mubr.bf16.mxu0 0
      %346 = vmatmul.mubr.bf16.gmra.mrb[0].mxu0 %v278
      %v347 = vpop.f32.mrb[0].mxu0
      %v348 = vadd.f32 0.0, %v347
      %v349 = vpop.f32.mrb[0].mxu0
      %v350 = vpop.f32.mrb[0].mxu0
      %v351 = vadd.f32 0.0, %v350
      %v352 = vpop.f32.mrb[0].mxu0
      %353 = vmatprep.mubr.bf16.mxu0 0
      %354 = vmatmul.mubr.bf16.gmra.mrb[0].mxu0 %v281
      %v355 = vpop.f32.mrb[0].mxu0
      %v356 = vadd.f32 0.0, %v355
      %v357 = vpop.f32.mrb[0].mxu0
      %v358 = vpop.f32.mrb[0].mxu0
      %v359 = vadd.f32 0.0, %v358
      %v360 = vpop.f32.mrb[0].mxu0
      %361 = vmatprep.mubr.bf16.mxu0 0
      %362 = vmatmul.mubr.bf16.gmra.mrb[0].mxu0 %v284
      %v363 = vpop.f32.mrb[0].mxu0
      %v364 = vadd.f32 0.0, %v363
      %v365 = vpop.f32.mrb[0].mxu0
      %v366 = vpop.f32.mrb[0].mxu0
      %v367 = vadd.f32 0.0, %v366
      %v368 = vpop.f32.mrb[0].mxu0
      %369 = vmatprep.mubr.bf16.mxu0 0
      %370 = vmatmul.mubr.bf16.gmra.mrb[0].mxu0 %v287
      %v371 = vpop.f32.mrb[0].mxu0
      %v372 = vadd.f32 0.0, %v371
      %v373 = vpop.f32.mrb[0].mxu0
      %v374 = vpop.f32.mrb[0].mxu0
      %v375 = vadd.f32 0.0, %v374
      %v376 = vpop.f32.mrb[0].mxu0
      %377 = vmatprep.mubr.bf16.mxu0 0
      %378 = vmatmul.mubr.bf16.gmra.mrb[0].mxu0 %v290
      %v379 = vpop.f32.mrb[0].mxu0
      %v380 = vadd.f32 0.0, %v379
      %v381 = vpop.f32.mrb[0].mxu0
      %v382 = vpop.f32.mrb[0].mxu0
      %v383 = vadd.f32 0.0, %v382
      %v384 = vpop.f32.mrb[0].mxu0
      %385 = vmatprep.mubr.bf16.mxu0 0
      %386 = vmatmul.mubr.bf16.gmra.mrb[0].mxu0 %v293
      %v387 = vpop.f32.mrb[0].mxu0
      %v388 = vadd.f32 0.0, %v387
      %v389 = vpop.f32.mrb[0].mxu0
      %v390 = vpop.f32.mrb[0].mxu0
      %v391 = vadd.f32 0.0, %v390
      %v392 = vpop.f32.mrb[0].mxu0
      %393 = vmatprep.mubr.bf16.mxu0 0
      %394 = vmatmul.mubr.bf16.gmra.mrb[0].mxu0 %v296
      %v395 = vpop.f32.mrb[0].mxu0
      %v396 = vadd.f32 0.0, %v395
      %v397 = vpop.f32.mrb[0].mxu0
      %v398 = vpop.f32.mrb[0].mxu0
      %v399 = vadd.f32 0.0, %v398
      %v400 = vpop.f32.mrb[0].mxu0
      %401 = vmatprep.mubr.bf16.mxu0 0
      %402 = vmatmul.mubr.bf16.gmra.mrb[0].mxu0 %v299
      %v403 = vpop.f32.mrb[0].mxu0
      %v404 = vpop.f32.mrb[0].mxu0
      %v405 = vpop.f32.mrb[0].mxu0
      %v406 = vpop.f32.mrb[0].mxu0
      %407 = vdwg.mxu0
      %s408 = scalar_lea.vmem %s1, 4
      %v409 = vld [vmem:[%s408] sm:$0x3]
      %v411 = vsel %vm301, %v409, 0
      %413 = vmatprep.subr.bf16.mxu0 0
      %414 = vmatpush1.bf16.msra.mxu0 %v411
      %415 = vmatprep.subr.bf16.mxu0 0
      %416 = vmatpush1.bf16.msra.mxu0 0
      %417 = vmatprep.subr.bf16.mxu0 0
      %418 = vmatpush1.bf16.msra.mxu0 0
      %419 = vmatprep.subr.bf16.mxu0 0
      %420 = vmatpush1.bf16.msra.mxu0 0
      %421 = vmatprep.subr.bf16.mxu0 0
      %422 = vmatpush1.bf16.msra.mxu0 0
      %423 = vmatprep.subr.bf16.mxu0 0
      %424 = vmatpush1.bf16.msra.mxu0 0
      %425 = vmatprep.subr.bf16.mxu0 0
      %426 = vmatpush1.bf16.msra.mxu0 0
      %427 = vmatprep.subr.bf16.mxu0 0
      %428 = vmatpush1.bf16.msra.mxu0 0
      %429 = vmatprep.subr.bf16.mxu0 0
      %430 = vmatpush1.bf16.msra.mxu0 0
      %431 = vmatprep.subr.bf16.mxu0 0
      %432 = vmatpush1.bf16.msra.mxu0 0
      %433 = vmatprep.subr.bf16.mxu0 0
      %434 = vmatpush1.bf16.msra.mxu0 0
      %435 = vmatprep.subr.bf16.mxu0 0
      %436 = vmatpush1.bf16.msra.mxu0 0
      %437 = vmatprep.subr.bf16.mxu0 0
      %438 = vmatpush1.bf16.msra.mxu0 0
      %439 = vmatprep.subr.bf16.mxu0 0
      %440 = vmatpush1.bf16.msra.mxu0 0
      %441 = vmatprep.subr.bf16.mxu0 0
      %442 = vmatpush1.bf16.msra.mxu0 0
      %443 = vmatprep.subr.bf16.mxu0 0
      %444 = vmatpush1.bf16.msra.mxu0 0
      %445 = vmatprep.mubr.bf16.mxu0 0
      %446 = vmatmul.mubr.bf16.gmra.mrb[0].mxu0 %v275
      %v447 = vpop.f32.mrb[0].mxu0
      %v448 = vadd.f32 0.0, %v447
      %v449 = vpop.f32.mrb[0].mxu0
      %v450 = vpop.f32.mrb[0].mxu0
      %v451 = vadd.f32 0.0, %v450
      %v452 = vpop.f32.mrb[0].mxu0
      %453 = vmatprep.mubr.bf16.mxu0 0
      %454 = vmatmul.mubr.bf16.gmra.mrb[0].mxu0 %v278
      %v455 = vpop.f32.mrb[0].mxu0
      %v456 = vadd.f32 0.0, %v455
      %v457 = vpop.f32.mrb[0].mxu0
      %v458 = vpop.f32.mrb[0].mxu0
      %v459 = vadd.f32 0.0, %v458
      %v460 = vpop.f32.mrb[0].mxu0
      %461 = vmatprep.mubr.bf16.mxu0 0
      %462 = vmatmul.mubr.bf16.gmra.mrb[0].mxu0 %v281
      %v463 = vpop.f32.mrb[0].mxu0
      %v464 = vadd.f32 0.0, %v463
      %v465 = vpop.f32.mrb[0].mxu0
      %v466 = vpop.f32.mrb[0].mxu0
      %v467 = vadd.f32 0.0, %v466
      %v468 = vpop.f32.mrb[0].mxu0
      %469 = vmatprep.mubr.bf16.mxu0 0
      %470 = vmatmul.mubr.bf16.gmra.mrb[0].mxu0 %v284
      %v471 = vpop.f32.mrb[0].mxu0
      %v472 = vadd.f32 0.0, %v471
      %v473 = vpop.f32.mrb[0].mxu0
      %v474 = vpop.f32.mrb[0].mxu0
      %v475 = vadd.f32 0.0, %v474
      %v476 = vpop.f32.mrb[0].mxu0
      %477 = vmatprep.mubr.bf16.mxu0 0
      %478 = vmatmul.mubr.bf16.gmra.mrb[0].mxu0 %v287
      %v479 = vpop.f32.mrb[0].mxu0
      %v480 = vadd.f32 0.0, %v479
      %v481 = vpop.f32.mrb[0].mxu0
      %v482 = vpop.f32.mrb[0].mxu0
      %v483 = vadd.f32 0.0, %v482
      %v484 = vpop.f32.mrb[0].mxu0
      %485 = vmatprep.mubr.bf16.mxu0 0
      %486 = vmatmul.mubr.bf16.gmra.mrb[0].mxu0 %v290
      %v487 = vpop.f32.mrb[0].mxu0
      %v488 = vadd.f32 0.0, %v487
      %v489 = vpop.f32.mrb[0].mxu0
      %v490 = vpop.f32.mrb[0].mxu0
      %v491 = vadd.f32 0.0, %v490
      %v492 = vpop.f32.mrb[0].mxu0
      %493 = vmatprep.mubr.bf16.mxu0 0
      %494 = vmatmul.mubr.bf16.gmra.mrb[0].mxu0 %v293
      %v495 = vpop.f32.mrb[0].mxu0
      %v496 = vadd.f32 0.0, %v495
      %v497 = vpop.f32.mrb[0].mxu0
      %v498 = vpop.f32.mrb[0].mxu0
      %v499 = vadd.f32 0.0, %v498
      %v500 = vpop.f32.mrb[0].mxu0
      %501 = vmatprep.mubr.bf16.mxu0 0
      %502 = vmatmul.mubr.bf16.gmra.mrb[0].mxu0 %v296
      %v503 = vpop.f32.mrb[0].mxu0
      %v504 = vadd.f32 0.0, %v503
      %v505 = vpop.f32.mrb[0].mxu0
      %v506 = vpop.f32.mrb[0].mxu0
      %v507 = vadd.f32 0.0, %v506
      %v508 = vpop.f32.mrb[0].mxu0
      %509 = vmatprep.mubr.bf16.mxu0 0
      %510 = vmatmul.mubr.bf16.gmra.mrb[0].mxu0 %v299
      %v511 = vpop.f32.mrb[0].mxu0
      %v512 = vadd.f32 0.0, %v511
      %v513 = vpop.f32.mrb[0].mxu0
      %v514 = vpop.f32.mrb[0].mxu0
      %v515 = vpop.f32.mrb[0].mxu0
      %516 = vdwg.mxu0
      %vm534 = vcmask 1046528
      %v535 = vrot.slane %v448, 1
      %v536 = vrot.slane %v451, 1
      %v537 = vsel %vm534, %v535, %v536
      %v538 = vrot.slane %v456, 1
      %v539 = vsel %vm534, %v536, %v538
      %v540 = vrot.slane %v459, 1
      %v541 = vsel %vm534, %v538, %v540
      %v542 = vrot.slane %v464, 1
      %v543 = vsel %vm534, %v540, %v542
      %v544 = vrot.slane %v467, 1
      %v545 = vsel %vm534, %v542, %v544
      %v546 = vrot.slane %v472, 1
      %v547 = vsel %vm534, %v544, %v546
      %v548 = vrot.slane %v475, 1
      %v549 = vsel %vm534, %v546, %v548
      %v550 = vrot.slane %v480, 1
      %v551 = vsel %vm534, %v548, %v550
      %v552 = vrot.slane %v483, 1
      %v553 = vsel %vm534, %v550, %v552
      %v554 = vrot.slane %v488, 1
      %v555 = vsel %vm534, %v552, %v554
      %v556 = vrot.slane %v491, 1
      %v557 = vsel %vm534, %v554, %v556
      %v558 = vrot.slane %v496, 1
      %v559 = vsel %vm534, %v556, %v558
      %v560 = vrot.slane %v499, 1
      %v561 = vsel %vm534, %v558, %v560
      %v562 = vrot.slane %v504, 1
      %v563 = vsel %vm534, %v560, %v562
      %v564 = vrot.slane %v507, 1
      %v565 = vsel %vm534, %v562, %v564
      %v566 = vrot.slane %v512, 1
      %v567 = vsel %vm534, %v564, %v566
      %v584 = vadd.f32 %v340, %v537
      %v585 = vadd.f32 %v343, %v539
      %v586 = vadd.f32 %v348, %v541
      %v587 = vadd.f32 %v351, %v543
      %v588 = vadd.f32 %v356, %v545
      %v589 = vadd.f32 %v359, %v547
      %v590 = vadd.f32 %v364, %v549
      %v591 = vadd.f32 %v367, %v551
      %v592 = vadd.f32 %v372, %v553
      %v593 = vadd.f32 %v375, %v555
      %v594 = vadd.f32 %v380, %v557
      %v595 = vadd.f32 %v383, %v559
      %v596 = vadd.f32 %v388, %v561
      %v597 = vadd.f32 %v391, %v563
      %v598 = vadd.f32 %v396, %v565
      %v599 = vadd.f32 %v399, %v567
      %v600 = vld [vmem:[%s197 + $0x50] sm:$0xf]
      %v601 = vld [vmem:[%s197 + $0x54] sm:$0xf]
      %v602 = vld [vmem:[%s197 + $0x58] sm:$0xf]
      %v603 = vld [vmem:[%s197 + $0x5c] sm:$0xf]
      %v604 = vld [vmem:[%s197 + $0x60] sm:$0xf]
      %v605 = vld [vmem:[%s197 + $0x64] sm:$0xf]
      %v606 = vld [vmem:[%s197 + $0x68] sm:$0xf]
      %v607 = vld [vmem:[%s197 + $0x6c] sm:$0xf]
      %v608 = vld [vmem:[%s197 + $0x70] sm:$0xf]
      %v609 = vld [vmem:[%s197 + $0x74] sm:$0xf]
      %v610 = vld [vmem:[%s197 + $0x78] sm:$0xf]
      %v611 = vld [vmem:[%s197 + $0x7c] sm:$0xf]
      %v612 = vld [vmem:[%s197 + $0x80] sm:$0xf]
      %v613 = vld [vmem:[%s197 + $0x84] sm:$0xf]
      %v614 = vld [vmem:[%s197 + $0x88] sm:$0xf]
      %v615 = vld [vmem:[%s197 + $0x8c] sm:$0xf]
      %v616 = vld [vmem:[%s197 + $0x90] sm:$0xf]
      %v617 = vld [vmem:[%s197 + $0x94] sm:$0xf]
      %s618 = scalar_lea.vmem %s1, 2
      %v619 = vld [vmem:[%s618] sm:$0x3]
      %v638 = vunpack.c.l.b16 %v600
      %v639 = vunpack.c.l.b16 %v601
      %v640 = vunpack.c.l.b16 %v602
      %v641 = vunpack.c.l.b16 %v603
      %v642 = vunpack.c.l.b16 %v604
      %v643 = vunpack.c.l.b16 %v605
      %v644 = vunpack.c.l.b16 %v606
      %v645 = vunpack.c.l.b16 %v607
      %v646 = vunpack.c.l.b16 %v608
      %v647 = vunpack.c.l.b16 %v609
      %v648 = vunpack.c.l.b16 %v610
      %v649 = vunpack.c.l.b16 %v611
      %v650 = vunpack.c.l.b16 %v612
      %v651 = vunpack.c.l.b16 %v613
      %v652 = vunpack.c.l.b16 %v614
      %v653 = vunpack.c.l.b16 %v615
      %v654 = vunpack.c.l.b16 %v616
      %v655 = vunpack.c.l.b16 %v617
      %v656 = vpack.c.b16 %v639, %v638
      %v657 = vpack.c.b16 %v641, %v640
      %v658 = vpack.c.b16 %v643, %v642
      %v659 = vpack.c.b16 %v645, %v644
      %v660 = vpack.c.b16 %v647, %v646
      %v661 = vpack.c.b16 %v649, %v648
      %v662 = vpack.c.b16 %v651, %v650
      %v663 = vpack.c.b16 %v653, %v652
      %v664 = vpack.c.b16 %v655, %v654
      %v666 = vsel %vm273, %v656, 0
      %v669 = vsel %vm273, %v657, 0
      %v672 = vsel %vm273, %v658, 0
      %v675 = vsel %vm273, %v659, 0
      %v678 = vsel %vm273, %v660, 0
      %v681 = vsel %vm273, %v661, 0
      %v684 = vsel %vm273, %v662, 0
      %v687 = vsel %vm273, %v663, 0
      %v690 = vsel %vm273, %v664, 0
      %v693 = vsel %vm301, %v619, 0
      %695 = vmatprep.subr.bf16.mxu0 0
      %696 = vmatpush1.bf16.msra.mxu0 %v693
      %697 = vmatprep.subr.bf16.mxu0 0
      %698 = vmatpush1.bf16.msra.mxu0 0
      %699 = vmatprep.subr.bf16.mxu0 0
      %700 = vmatpush1.bf16.msra.mxu0 0
      %701 = vmatprep.subr.bf16.mxu0 0
      %702 = vmatpush1.bf16.msra.mxu0 0
      %703 = vmatprep.subr.bf16.mxu0 0
      %704 = vmatpush1.bf16.msra.mxu0 0
      %705 = vmatprep.subr.bf16.mxu0 0
      %706 = vmatpush1.bf16.msra.mxu0 0
      %707 = vmatprep.subr.bf16.mxu0 0
      %708 = vmatpush1.bf16.msra.mxu0 0
      %709 = vmatprep.subr.bf16.mxu0 0
      %710 = vmatpush1.bf16.msra.mxu0 0
      %711 = vmatprep.subr.bf16.mxu0 0
      %712 = vmatpush1.bf16.msra.mxu0 0
      %713 = vmatprep.subr.bf16.mxu0 0
      %714 = vmatpush1.bf16.msra.mxu0 0
      %715 = vmatprep.subr.bf16.mxu0 0
      %716 = vmatpush1.bf16.msra.mxu0 0
      %717 = vmatprep.subr.bf16.mxu0 0
      %718 = vmatpush1.bf16.msra.mxu0 0
      %719 = vmatprep.subr.bf16.mxu0 0
      %720 = vmatpush1.bf16.msra.mxu0 0
      %721 = vmatprep.subr.bf16.mxu0 0
      %722 = vmatpush1.bf16.msra.mxu0 0
      %723 = vmatprep.subr.bf16.mxu0 0
      %724 = vmatpush1.bf16.msra.mxu0 0
      %725 = vmatprep.subr.bf16.mxu0 0
      %726 = vmatpush1.bf16.msra.mxu0 0
      %727 = vmatprep.mubr.bf16.mxu0 0
      %728 = vmatmul.mubr.bf16.gmra.mrb[0].mxu0 %v666
      %v729 = vpop.f32.mrb[0].mxu0
      %v730 = vadd.f32 0.0, %v729
      %v731 = vpop.f32.mrb[0].mxu0
      %v732 = vpop.f32.mrb[0].mxu0
      %v733 = vadd.f32 0.0, %v732
      %v734 = vpop.f32.mrb[0].mxu0
      %735 = vmatprep.mubr.bf16.mxu0 0
      %736 = vmatmul.mubr.bf16.gmra.mrb[0].mxu0 %v669
      %v737 = vpop.f32.mrb[0].mxu0
      %v738 = vadd.f32 0.0, %v737
      %v739 = vpop.f32.mrb[0].mxu0
      %v740 = vpop.f32.mrb[0].mxu0
      %v741 = vadd.f32 0.0, %v740
      %v742 = vpop.f32.mrb[0].mxu0
      %743 = vmatprep.mubr.bf16.mxu0 0
      %744 = vmatmul.mubr.bf16.gmra.mrb[0].mxu0 %v672
      %v745 = vpop.f32.mrb[0].mxu0
      %v746 = vadd.f32 0.0, %v745
      %v747 = vpop.f32.mrb[0].mxu0
      %v748 = vpop.f32.mrb[0].mxu0
      %v749 = vadd.f32 0.0, %v748
      %v750 = vpop.f32.mrb[0].mxu0
      %751 = vmatprep.mubr.bf16.mxu0 0
      %752 = vmatmul.mubr.bf16.gmra.mrb[0].mxu0 %v675
      %v753 = vpop.f32.mrb[0].mxu0
      %v754 = vadd.f32 0.0, %v753
      %v755 = vpop.f32.mrb[0].mxu0
      %v756 = vpop.f32.mrb[0].mxu0
      %v757 = vadd.f32 0.0, %v756
      %v758 = vpop.f32.mrb[0].mxu0
      %759 = vmatprep.mubr.bf16.mxu0 0
      %760 = vmatmul.mubr.bf16.gmra.mrb[0].mxu0 %v678
      %v761 = vpop.f32.mrb[0].mxu0
      %v762 = vadd.f32 0.0, %v761
      %v763 = vpop.f32.mrb[0].mxu0
      %v764 = vpop.f32.mrb[0].mxu0
      %v765 = vadd.f32 0.0, %v764
      %v766 = vpop.f32.mrb[0].mxu0
      %767 = vmatprep.mubr.bf16.mxu0 0
      %768 = vmatmul.mubr.bf16.gmra.mrb[0].mxu0 %v681
      %v769 = vpop.f32.mrb[0].mxu0
      %v770 = vadd.f32 0.0, %v769
      %v771 = vpop.f32.mrb[0].mxu0
      %v772 = vpop.f32.mrb[0].mxu0
      %v773 = vadd.f32 0.0, %v772
      %v774 = vpop.f32.mrb[0].mxu0
      %775 = vmatprep.mubr.bf16.mxu0 0
      %776 = vmatmul.mubr.bf16.gmra.mrb[0].mxu0 %v684
      %v777 = vpop.f32.mrb[0].mxu0
      %v778 = vadd.f32 0.0, %v777
      %v779 = vpop.f32.mrb[0].mxu0
      %v780 = vpop.f32.mrb[0].mxu0
      %v781 = vadd.f32 0.0, %v780
      %v782 = vpop.f32.mrb[0].mxu0
      %783 = vmatprep.mubr.bf16.mxu0 0
      %784 = vmatmul.mubr.bf16.gmra.mrb[0].mxu0 %v687
      %v785 = vpop.f32.mrb[0].mxu0
      %v786 = vadd.f32 0.0, %v785
      %v787 = vpop.f32.mrb[0].mxu0
      %v788 = vpop.f32.mrb[0].mxu0
      %v789 = vadd.f32 0.0, %v788
      %v790 = vpop.f32.mrb[0].mxu0
      %791 = vmatprep.mubr.bf16.mxu0 0
      %792 = vmatmul.mubr.bf16.gmra.mrb[0].mxu0 %v690
      %v793 = vpop.f32.mrb[0].mxu0
      %v794 = vpop.f32.mrb[0].mxu0
      %v795 = vpop.f32.mrb[0].mxu0
      %v796 = vpop.f32.mrb[0].mxu0
      %797 = vdwg.mxu0
      %v798 = vadd.f32 %v584, %v730
      %v799 = vadd.f32 %v585, %v733
      %v800 = vadd.f32 %v586, %v738
      %v801 = vadd.f32 %v587, %v741
      %v802 = vadd.f32 %v588, %v746
      %v803 = vadd.f32 %v589, %v749
      %v804 = vadd.f32 %v590, %v754
      %v805 = vadd.f32 %v591, %v757
      %v806 = vadd.f32 %v592, %v762
      %v807 = vadd.f32 %v593, %v765
      %v808 = vadd.f32 %v594, %v770
      %v809 = vadd.f32 %v595, %v773
      %v810 = vadd.f32 %v596, %v778
      %v811 = vadd.f32 %v597, %v781
      %v812 = vadd.f32 %v598, %v786
      %v813 = vadd.f32 %v599, %v789
      %v814 = vld [vmem:[%s197 + $0xa0] sm:$0xf]
      %v815 = vld [vmem:[%s197 + $0xa4] sm:$0xf]
      %v816 = vld [vmem:[%s197 + $0xa8] sm:$0xf]
      %v817 = vld [vmem:[%s197 + $0xac] sm:$0xf]
      %v818 = vld [vmem:[%s197 + $0xb0] sm:$0xf]
      %v819 = vld [vmem:[%s197 + $0xb4] sm:$0xf]
      %v820 = vld [vmem:[%s197 + $0xb8] sm:$0xf]
      %v821 = vld [vmem:[%s197 + $0xbc] sm:$0xf]
      %v822 = vld [vmem:[%s197 + $0xc0] sm:$0xf]
      %v823 = vld [vmem:[%s197 + $0xc4] sm:$0xf]
      %v824 = vld [vmem:[%s197 + $0xc8] sm:$0xf]
      %v825 = vld [vmem:[%s197 + $0xcc] sm:$0xf]
      %v826 = vld [vmem:[%s197 + $0xd0] sm:$0xf]
      %v827 = vld [vmem:[%s197 + $0xd4] sm:$0xf]
      %v828 = vld [vmem:[%s197 + $0xd8] sm:$0xf]
      %v829 = vld [vmem:[%s197 + $0xdc] sm:$0xf]
      %v830 = vld [vmem:[%s197 + $0xe0] sm:$0xf]
      %v831 = vld [vmem:[%s197 + $0xe4] sm:$0xf]
      %s832 = scalar_lea.vmem %s1, 6
      %v833 = vld [vmem:[%s832] sm:$0x3]
      %v852 = vunpack.c.l.b16 %v814
      %v853 = vunpack.c.l.b16 %v815
      %v854 = vunpack.c.l.b16 %v816
      %v855 = vunpack.c.l.b16 %v817
      %v856 = vunpack.c.l.b16 %v818
      %v857 = vunpack.c.l.b16 %v819
      %v858 = vunpack.c.l.b16 %v820
      %v859 = vunpack.c.l.b16 %v821
      %v860 = vunpack.c.l.b16 %v822
      %v861 = vunpack.c.l.b16 %v823
      %v862 = vunpack.c.l.b16 %v824
      %v863 = vunpack.c.l.b16 %v825
      %v864 = vunpack.c.l.b16 %v826
      %v865 = vunpack.c.l.b16 %v827
      %v866 = vunpack.c.l.b16 %v828
      %v867 = vunpack.c.l.b16 %v829
      %v868 = vunpack.c.l.b16 %v830
      %v869 = vunpack.c.l.b16 %v831
      %v870 = vpack.c.b16 %v853, %v852
      %v871 = vpack.c.b16 %v855, %v854
      %v872 = vpack.c.b16 %v857, %v856
      %v873 = vpack.c.b16 %v859, %v858
      %v874 = vpack.c.b16 %v861, %v860
      %v875 = vpack.c.b16 %v863, %v862
      %v876 = vpack.c.b16 %v865, %v864
      %v877 = vpack.c.b16 %v867, %v866
      %v878 = vpack.c.b16 %v869, %v868
      %v880 = vsel %vm273, %v870, 0
      %v883 = vsel %vm273, %v871, 0
      %v886 = vsel %vm273, %v872, 0
      %v889 = vsel %vm273, %v873, 0
      %v892 = vsel %vm273, %v874, 0
      %v895 = vsel %vm273, %v875, 0
      %v898 = vsel %vm273, %v876, 0
      %v901 = vsel %vm273, %v877, 0
      %v904 = vsel %vm273, %v878, 0
      %v907 = vsel %vm301, %v833, 0
      %909 = vmatprep.subr.bf16.mxu0 0
      %910 = vmatpush1.bf16.msra.mxu0 %v907
      %911 = vmatprep.subr.bf16.mxu0 0
      %912 = vmatpush1.bf16.msra.mxu0 0
      %913 = vmatprep.subr.bf16.mxu0 0
      %914 = vmatpush1.bf16.msra.mxu0 0
      %915 = vmatprep.subr.bf16.mxu0 0
      %916 = vmatpush1.bf16.msra.mxu0 0
      %917 = vmatprep.subr.bf16.mxu0 0
      %918 = vmatpush1.bf16.msra.mxu0 0
      %919 = vmatprep.subr.bf16.mxu0 0
      %920 = vmatpush1.bf16.msra.mxu0 0
      %921 = vmatprep.subr.bf16.mxu0 0
      %922 = vmatpush1.bf16.msra.mxu0 0
      %923 = vmatprep.subr.bf16.mxu0 0
      %924 = vmatpush1.bf16.msra.mxu0 0
      %925 = vmatprep.subr.bf16.mxu0 0
      %926 = vmatpush1.bf16.msra.mxu0 0
      %927 = vmatprep.subr.bf16.mxu0 0
      %928 = vmatpush1.bf16.msra.mxu0 0
      %929 = vmatprep.subr.bf16.mxu0 0
      %930 = vmatpush1.bf16.msra.mxu0 0
      %931 = vmatprep.subr.bf16.mxu0 0
      %932 = vmatpush1.bf16.msra.mxu0 0
      %933 = vmatprep.subr.bf16.mxu0 0
      %934 = vmatpush1.bf16.msra.mxu0 0
      %935 = vmatprep.subr.bf16.mxu0 0
      %936 = vmatpush1.bf16.msra.mxu0 0
      %937 = vmatprep.subr.bf16.mxu0 0
      %938 = vmatpush1.bf16.msra.mxu0 0
      %939 = vmatprep.subr.bf16.mxu0 0
      %940 = vmatpush1.bf16.msra.mxu0 0
      %941 = vmatprep.mubr.bf16.mxu0 0
      %942 = vmatmul.mubr.bf16.gmra.mrb[0].mxu0 %v880
      %v943 = vpop.f32.mrb[0].mxu0
      %v944 = vadd.f32 0.0, %v943
      %v945 = vpop.f32.mrb[0].mxu0
      %v946 = vpop.f32.mrb[0].mxu0
      %v947 = vadd.f32 0.0, %v946
      %v948 = vpop.f32.mrb[0].mxu0
      %949 = vmatprep.mubr.bf16.mxu0 0
      %950 = vmatmul.mubr.bf16.gmra.mrb[0].mxu0 %v883
      %v951 = vpop.f32.mrb[0].mxu0
      %v952 = vadd.f32 0.0, %v951
      %v953 = vpop.f32.mrb[0].mxu0
      %v954 = vpop.f32.mrb[0].mxu0
      %v955 = vadd.f32 0.0, %v954
      %v956 = vpop.f32.mrb[0].mxu0
      %957 = vmatprep.mubr.bf16.mxu0 0
      %958 = vmatmul.mubr.bf16.gmra.mrb[0].mxu0 %v886
      %v959 = vpop.f32.mrb[0].mxu0
      %v960 = vadd.f32 0.0, %v959
      %v961 = vpop.f32.mrb[0].mxu0
      %v962 = vpop.f32.mrb[0].mxu0
      %v963 = vadd.f32 0.0, %v962
      %v964 = vpop.f32.mrb[0].mxu0
      %965 = vmatprep.mubr.bf16.mxu0 0
      %966 = vmatmul.mubr.bf16.gmra.mrb[0].mxu0 %v889
      %v967 = vpop.f32.mrb[0].mxu0
      %v968 = vadd.f32 0.0, %v967
      %v969 = vpop.f32.mrb[0].mxu0
      %v970 = vpop.f32.mrb[0].mxu0
      %v971 = vadd.f32 0.0, %v970
      %v972 = vpop.f32.mrb[0].mxu0
      %973 = vmatprep.mubr.bf16.mxu0 0
      %974 = vmatmul.mubr.bf16.gmra.mrb[0].mxu0 %v892
      %v975 = vpop.f32.mrb[0].mxu0
      %v976 = vadd.f32 0.0, %v975
      %v977 = vpop.f32.mrb[0].mxu0
      %v978 = vpop.f32.mrb[0].mxu0
      %v979 = vadd.f32 0.0, %v978
      %v980 = vpop.f32.mrb[0].mxu0
      %981 = vmatprep.mubr.bf16.mxu0 0
      %982 = vmatmul.mubr.bf16.gmra.mrb[0].mxu0 %v895
      %v983 = vpop.f32.mrb[0].mxu0
      %v984 = vadd.f32 0.0, %v983
      %v985 = vpop.f32.mrb[0].mxu0
      %v986 = vpop.f32.mrb[0].mxu0
      %v987 = vadd.f32 0.0, %v986
      %v988 = vpop.f32.mrb[0].mxu0
      %989 = vmatprep.mubr.bf16.mxu0 0
      %990 = vmatmul.mubr.bf16.gmra.mrb[0].mxu0 %v898
      %v991 = vpop.f32.mrb[0].mxu0
      %v992 = vadd.f32 0.0, %v991
      %v993 = vpop.f32.mrb[0].mxu0
      %v994 = vpop.f32.mrb[0].mxu0
      %v995 = vadd.f32 0.0, %v994
      %v996 = vpop.f32.mrb[0].mxu0
      %997 = vmatprep.mubr.bf16.mxu0 0
      %998 = vmatmul.mubr.bf16.gmra.mrb[0].mxu0 %v901
      %v999 = vpop.f32.mrb[0].mxu0
      %v1000 = vadd.f32 0.0, %v999
      %v1001 = vpop.f32.mrb[0].mxu0
      %v1002 = vpop.f32.mrb[0].mxu0
      %v1003 = vadd.f32 0.0, %v1002
      %v1004 = vpop.f32.mrb[0].mxu0
      %1005 = vmatprep.mubr.bf16.mxu0 0
      %1006 = vmatmul.mubr.bf16.gmra.mrb[0].mxu0 %v904
      %v1007 = vpop.f32.mrb[0].mxu0
      %v1008 = vpop.f32.mrb[0].mxu0
      %v1009 = vpop.f32.mrb[0].mxu0
      %v1010 = vpop.f32.mrb[0].mxu0
      %1011 = vdwg.mxu0
      %v1012 = vadd.f32 %v798, %v944
      %v1013 = vadd.f32 %v799, %v947
      %v1014 = vadd.f32 %v800, %v952
      %v1015 = vadd.f32 %v801, %v955
      %v1016 = vadd.f32 %v802, %v960
      %v1017 = vadd.f32 %v803, %v963
      %v1018 = vadd.f32 %v804, %v968
      %v1019 = vadd.f32 %v805, %v971
      %v1020 = vadd.f32 %v806, %v976
      %v1021 = vadd.f32 %v807, %v979
      %v1022 = vadd.f32 %v808, %v984
      %v1023 = vadd.f32 %v809, %v987
      %v1024 = vadd.f32 %v810, %v992
      %v1025 = vadd.f32 %v811, %v995
      %v1026 = vadd.f32 %v812, %v1000
      %v1027 = vadd.f32 %v813, %v1003
      %s1028 = scalar_lea.vmem %s1, 10
      %v1029 = vld [vmem:[%s1028] sm:$0x3]
      %v1031 = vsel %vm301, %v1029, 0
      %1033 = vmatprep.subr.bf16.mxu0 0
      %1034 = vmatpush1.bf16.msra.mxu0 %v1031
      %1035 = vmatprep.subr.bf16.mxu0 0
      %1036 = vmatpush1.bf16.msra.mxu0 0
      %1037 = vmatprep.subr.bf16.mxu0 0
      %1038 = vmatpush1.bf16.msra.mxu0 0
      %1039 = vmatprep.subr.bf16.mxu0 0
      %1040 = vmatpush1.bf16.msra.mxu0 0
      %1041 = vmatprep.subr.bf16.mxu0 0
      %1042 = vmatpush1.bf16.msra.mxu0 0
      %1043 = vmatprep.subr.bf16.mxu0 0
      %1044 = vmatpush1.bf16.msra.mxu0 0
      %1045 = vmatprep.subr.bf16.mxu0 0
      %1046 = vmatpush1.bf16.msra.mxu0 0
      %1047 = vmatprep.subr.bf16.mxu0 0
      %1048 = vmatpush1.bf16.msra.mxu0 0
      %1049 = vmatprep.subr.bf16.mxu0 0
      %1050 = vmatpush1.bf16.msra.mxu0 0
      %1051 = vmatprep.subr.bf16.mxu0 0
      %1052 = vmatpush1.bf16.msra.mxu0 0
      %1053 = vmatprep.subr.bf16.mxu0 0
      %1054 = vmatpush1.bf16.msra.mxu0 0
      %1055 = vmatprep.subr.bf16.mxu0 0
      %1056 = vmatpush1.bf16.msra.mxu0 0
      %1057 = vmatprep.subr.bf16.mxu0 0
      %1058 = vmatpush1.bf16.msra.mxu0 0
      %1059 = vmatprep.subr.bf16.mxu0 0
      %1060 = vmatpush1.bf16.msra.mxu0 0
      %1061 = vmatprep.subr.bf16.mxu0 0
      %1062 = vmatpush1.bf16.msra.mxu0 0
      %1063 = vmatprep.subr.bf16.mxu0 0
      %1064 = vmatpush1.bf16.msra.mxu0 0
      %1065 = vmatprep.mubr.bf16.mxu0 0
      %1066 = vmatmul.mubr.bf16.gmra.mrb[0].mxu0 %v880
      %v1067 = vpop.f32.mrb[0].mxu0
      %v1068 = vadd.f32 0.0, %v1067
      %v1069 = vpop.f32.mrb[0].mxu0
      %v1070 = vpop.f32.mrb[0].mxu0
      %v1071 = vadd.f32 0.0, %v1070
      %v1072 = vpop.f32.mrb[0].mxu0
      %1073 = vmatprep.mubr.bf16.mxu0 0
      %1074 = vmatmul.mubr.bf16.gmra.mrb[0].mxu0 %v883
      %v1075 = vpop.f32.mrb[0].mxu0
      %v1076 = vadd.f32 0.0, %v1075
      %v1077 = vpop.f32.mrb[0].mxu0
      %v1078 = vpop.f32.mrb[0].mxu0
      %v1079 = vadd.f32 0.0, %v1078
      %v1080 = vpop.f32.mrb[0].mxu0
      %1081 = vmatprep.mubr.bf16.mxu0 0
      %1082 = vmatmul.mubr.bf16.gmra.mrb[0].mxu0 %v886
      %v1083 = vpop.f32.mrb[0].mxu0
      %v1084 = vadd.f32 0.0, %v1083
      %v1085 = vpop.f32.mrb[0].mxu0
      %v1086 = vpop.f32.mrb[0].mxu0
      %v1087 = vadd.f32 0.0, %v1086
      %v1088 = vpop.f32.mrb[0].mxu0
      %1089 = vmatprep.mubr.bf16.mxu0 0
      %1090 = vmatmul.mubr.bf16.gmra.mrb[0].mxu0 %v889
      %v1091 = vpop.f32.mrb[0].mxu0
      %v1092 = vadd.f32 0.0, %v1091
      %v1093 = vpop.f32.mrb[0].mxu0
      %v1094 = vpop.f32.mrb[0].mxu0
      %v1095 = vadd.f32 0.0, %v1094
      %v1096 = vpop.f32.mrb[0].mxu0
      %1097 = vmatprep.mubr.bf16.mxu0 0
      %1098 = vmatmul.mubr.bf16.gmra.mrb[0].mxu0 %v892
      %v1099 = vpop.f32.mrb[0].mxu0
      %v1100 = vadd.f32 0.0, %v1099
      %v1101 = vpop.f32.mrb[0].mxu0
      %v1102 = vpop.f32.mrb[0].mxu0
      %v1103 = vadd.f32 0.0, %v1102
      %v1104 = vpop.f32.mrb[0].mxu0
      %1105 = vmatprep.mubr.bf16.mxu0 0
      %1106 = vmatmul.mubr.bf16.gmra.mrb[0].mxu0 %v895
      %v1107 = vpop.f32.mrb[0].mxu0
      %v1108 = vadd.f32 0.0, %v1107
      %v1109 = vpop.f32.mrb[0].mxu0
      %v1110 = vpop.f32.mrb[0].mxu0
      %v1111 = vadd.f32 0.0, %v1110
      %v1112 = vpop.f32.mrb[0].mxu0
      %1113 = vmatprep.mubr.bf16.mxu0 0
      %1114 = vmatmul.mubr.bf16.gmra.mrb[0].mxu0 %v898
      %v1115 = vpop.f32.mrb[0].mxu0
      %v1116 = vadd.f32 0.0, %v1115
      %v1117 = vpop.f32.mrb[0].mxu0
      %v1118 = vpop.f32.mrb[0].mxu0
      %v1119 = vadd.f32 0.0, %v1118
      %v1120 = vpop.f32.mrb[0].mxu0
      %1121 = vmatprep.mubr.bf16.mxu0 0
      %1122 = vmatmul.mubr.bf16.gmra.mrb[0].mxu0 %v901
      %v1123 = vpop.f32.mrb[0].mxu0
      %v1124 = vadd.f32 0.0, %v1123
      %v1125 = vpop.f32.mrb[0].mxu0
      %v1126 = vpop.f32.mrb[0].mxu0
      %v1127 = vadd.f32 0.0, %v1126
      %v1128 = vpop.f32.mrb[0].mxu0
      %1129 = vmatprep.mubr.bf16.mxu0 0
      %1130 = vmatmul.mubr.bf16.gmra.mrb[0].mxu0 %v904
      %v1131 = vpop.f32.mrb[0].mxu0
      %v1132 = vadd.f32 0.0, %v1131
      %v1133 = vpop.f32.mrb[0].mxu0
      %v1134 = vpop.f32.mrb[0].mxu0
      %v1135 = vpop.f32.mrb[0].mxu0
      %1136 = vdwg.mxu0
      %v1154 = vrot.slane %v1068, 1
      %v1155 = vrot.slane %v1071, 1
      %v1156 = vsel %vm534, %v1154, %v1155
      %v1157 = vrot.slane %v1076, 1
      %v1158 = vsel %vm534, %v1155, %v1157
      %v1159 = vrot.slane %v1079, 1
      %v1160 = vsel %vm534, %v1157, %v1159
      %v1161 = vrot.slane %v1084, 1
      %v1162 = vsel %vm534, %v1159, %v1161
      %v1163 = vrot.slane %v1087, 1
      %v1164 = vsel %vm534, %v1161, %v1163
      %v1165 = vrot.slane %v1092, 1
      %v1166 = vsel %vm534, %v1163, %v1165
      %v1167 = vrot.slane %v1095, 1
      %v1168 = vsel %vm534, %v1165, %v1167
      %v1169 = vrot.slane %v1100, 1
      %v1170 = vsel %vm534, %v1167, %v1169
      %v1171 = vrot.slane %v1103, 1
      %v1172 = vsel %vm534, %v1169, %v1171
      %v1173 = vrot.slane %v1108, 1
      %v1174 = vsel %vm534, %v1171, %v1173
      %v1175 = vrot.slane %v1111, 1
      %v1176 = vsel %vm534, %v1173, %v1175
      %v1177 = vrot.slane %v1116, 1
      %v1178 = vsel %vm534, %v1175, %v1177
      %v1179 = vrot.slane %v1119, 1
      %v1180 = vsel %vm534, %v1177, %v1179
      %v1181 = vrot.slane %v1124, 1
      %v1182 = vsel %vm534, %v1179, %v1181
      %v1183 = vrot.slane %v1127, 1
      %v1184 = vsel %vm534, %v1181, %v1183
      %v1185 = vrot.slane %v1132, 1
      %v1186 = vsel %vm534, %v1183, %v1185
      %v1203 = vadd.f32 %v1012, %v1156
      %v1204 = vadd.f32 %v1013, %v1158
      %v1205 = vadd.f32 %v1014, %v1160
      %v1206 = vadd.f32 %v1015, %v1162
      %v1207 = vadd.f32 %v1016, %v1164
      %v1208 = vadd.f32 %v1017, %v1166
      %v1209 = vadd.f32 %v1018, %v1168
      %v1210 = vadd.f32 %v1019, %v1170
      %v1211 = vadd.f32 %v1020, %v1172
      %v1212 = vadd.f32 %v1021, %v1174
      %v1213 = vadd.f32 %v1022, %v1176
      %v1214 = vadd.f32 %v1023, %v1178
      %v1215 = vadd.f32 %v1024, %v1180
      %v1216 = vadd.f32 %v1025, %v1182
      %v1217 = vadd.f32 %v1026, %v1184
      %v1218 = vadd.f32 %v1027, %v1186
      %v1219 = vld [vmem:[%s197 + $0xf0] sm:$0xf]
      %v1220 = vld [vmem:[%s197 + $0xf4] sm:$0xf]
      %v1221 = vld [vmem:[%s197 + $0xf8] sm:$0xf]
      %v1222 = vld [vmem:[%s197 + $0xfc] sm:$0xf]
      %v1223 = vld [vmem:[%s197 + $0x100] sm:$0xf]
      %v1224 = vld [vmem:[%s197 + $0x104] sm:$0xf]
      %v1225 = vld [vmem:[%s197 + $0x108] sm:$0xf]
      %v1226 = vld [vmem:[%s197 + $0x10c] sm:$0xf]
      %v1227 = vld [vmem:[%s197 + $0x110] sm:$0xf]
      %v1228 = vld [vmem:[%s197 + $0x114] sm:$0xf]
      %v1229 = vld [vmem:[%s197 + $0x118] sm:$0xf]
      %v1230 = vld [vmem:[%s197 + $0x11c] sm:$0xf]
      %v1231 = vld [vmem:[%s197 + $0x120] sm:$0xf]
      %v1232 = vld [vmem:[%s197 + $0x124] sm:$0xf]
      %v1233 = vld [vmem:[%s197 + $0x128] sm:$0xf]
      %v1234 = vld [vmem:[%s197 + $0x12c] sm:$0xf]
      %v1235 = vld [vmem:[%s197 + $0x130] sm:$0xf]
      %v1236 = vld [vmem:[%s197 + $0x134] sm:$0xf]
      %s1237 = scalar_lea.vmem %s1, 8
      %v1238 = vld [vmem:[%s1237] sm:$0x3]
      %v1257 = vunpack.c.l.b16 %v1219
      %v1258 = vunpack.c.l.b16 %v1220
      %v1259 = vunpack.c.l.b16 %v1221
      %v1260 = vunpack.c.l.b16 %v1222
      %v1261 = vunpack.c.l.b16 %v1223
      %v1262 = vunpack.c.l.b16 %v1224
      %v1263 = vunpack.c.l.b16 %v1225
      %v1264 = vunpack.c.l.b16 %v1226
      %v1265 = vunpack.c.l.b16 %v1227
      %v1266 = vunpack.c.l.b16 %v1228
      %v1267 = vunpack.c.l.b16 %v1229
      %v1268 = vunpack.c.l.b16 %v1230
      %v1269 = vunpack.c.l.b16 %v1231
      %v1270 = vunpack.c.l.b16 %v1232
      %v1271 = vunpack.c.l.b16 %v1233
      %v1272 = vunpack.c.l.b16 %v1234
      %v1273 = vunpack.c.l.b16 %v1235
      %v1274 = vunpack.c.l.b16 %v1236
      %v1275 = vpack.c.b16 %v1258, %v1257
      %v1276 = vpack.c.b16 %v1260, %v1259
      %v1277 = vpack.c.b16 %v1262, %v1261
      %v1278 = vpack.c.b16 %v1264, %v1263
      %v1279 = vpack.c.b16 %v1266, %v1265
      %v1280 = vpack.c.b16 %v1268, %v1267
      %v1281 = vpack.c.b16 %v1270, %v1269
      %v1282 = vpack.c.b16 %v1272, %v1271
      %v1283 = vpack.c.b16 %v1274, %v1273
      %v1285 = vsel %vm273, %v1275, 0
      %v1288 = vsel %vm273, %v1276, 0
      %v1291 = vsel %vm273, %v1277, 0
      %v1294 = vsel %vm273, %v1278, 0
      %v1297 = vsel %vm273, %v1279, 0
      %v1300 = vsel %vm273, %v1280, 0
      %v1303 = vsel %vm273, %v1281, 0
      %v1306 = vsel %vm273, %v1282, 0
      %v1309 = vsel %vm273, %v1283, 0
      %v1312 = vsel %vm301, %v1238, 0
      %1314 = vmatprep.subr.bf16.mxu0 0
      %1315 = vmatpush1.bf16.msra.mxu0 %v1312
      %1316 = vmatprep.subr.bf16.mxu0 0
      %1317 = vmatpush1.bf16.msra.mxu0 0
      %1318 = vmatprep.subr.bf16.mxu0 0
      %1319 = vmatpush1.bf16.msra.mxu0 0
      %1320 = vmatprep.subr.bf16.mxu0 0
      %1321 = vmatpush1.bf16.msra.mxu0 0
      %1322 = vmatprep.subr.bf16.mxu0 0
      %1323 = vmatpush1.bf16.msra.mxu0 0
      %1324 = vmatprep.subr.bf16.mxu0 0
      %1325 = vmatpush1.bf16.msra.mxu0 0
      %1326 = vmatprep.subr.bf16.mxu0 0
      %1327 = vmatpush1.bf16.msra.mxu0 0
      %1328 = vmatprep.subr.bf16.mxu0 0
      %1329 = vmatpush1.bf16.msra.mxu0 0
      %1330 = vmatprep.subr.bf16.mxu0 0
      %1331 = vmatpush1.bf16.msra.mxu0 0
      %1332 = vmatprep.subr.bf16.mxu0 0
      %1333 = vmatpush1.bf16.msra.mxu0 0
      %1334 = vmatprep.subr.bf16.mxu0 0
      %1335 = vmatpush1.bf16.msra.mxu0 0
      %1336 = vmatprep.subr.bf16.mxu0 0
      %1337 = vmatpush1.bf16.msra.mxu0 0
      %1338 = vmatprep.subr.bf16.mxu0 0
      %1339 = vmatpush1.bf16.msra.mxu0 0
      %1340 = vmatprep.subr.bf16.mxu0 0
      %1341 = vmatpush1.bf16.msra.mxu0 0
      %1342 = vmatprep.subr.bf16.mxu0 0
      %1343 = vmatpush1.bf16.msra.mxu0 0
      %1344 = vmatprep.subr.bf16.mxu0 0
      %1345 = vmatpush1.bf16.msra.mxu0 0
      %1346 = vmatprep.mubr.bf16.mxu0 0
      %1347 = vmatmul.mubr.bf16.gmra.mrb[0].mxu0 %v1285
      %v1348 = vpop.f32.mrb[0].mxu0
      %v1349 = vadd.f32 0.0, %v1348
      %v1350 = vpop.f32.mrb[0].mxu0
      %v1351 = vpop.f32.mrb[0].mxu0
      %v1352 = vadd.f32 0.0, %v1351
      %v1353 = vpop.f32.mrb[0].mxu0
      %1354 = vmatprep.mubr.bf16.mxu0 0
      %1355 = vmatmul.mubr.bf16.gmra.mrb[0].mxu0 %v1288
      %v1356 = vpop.f32.mrb[0].mxu0
      %v1357 = vadd.f32 0.0, %v1356
      %v1358 = vpop.f32.mrb[0].mxu0
      %v1359 = vpop.f32.mrb[0].mxu0
      %v1360 = vadd.f32 0.0, %v1359
      %v1361 = vpop.f32.mrb[0].mxu0
      %1362 = vmatprep.mubr.bf16.mxu0 0
      %1363 = vmatmul.mubr.bf16.gmra.mrb[0].mxu0 %v1291
      %v1364 = vpop.f32.mrb[0].mxu0
      %v1365 = vadd.f32 0.0, %v1364
      %v1366 = vpop.f32.mrb[0].mxu0
      %v1367 = vpop.f32.mrb[0].mxu0
      %v1368 = vadd.f32 0.0, %v1367
      %v1369 = vpop.f32.mrb[0].mxu0
      %1370 = vmatprep.mubr.bf16.mxu0 0
      %1371 = vmatmul.mubr.bf16.gmra.mrb[0].mxu0 %v1294
      %v1372 = vpop.f32.mrb[0].mxu0
      %v1373 = vadd.f32 0.0, %v1372
      %v1374 = vpop.f32.mrb[0].mxu0
      %v1375 = vpop.f32.mrb[0].mxu0
      %v1376 = vadd.f32 0.0, %v1375
      %v1377 = vpop.f32.mrb[0].mxu0
      %1378 = vmatprep.mubr.bf16.mxu0 0
      %1379 = vmatmul.mubr.bf16.gmra.mrb[0].mxu0 %v1297
      %v1380 = vpop.f32.mrb[0].mxu0
      %v1381 = vadd.f32 0.0, %v1380
      %v1382 = vpop.f32.mrb[0].mxu0
      %v1383 = vpop.f32.mrb[0].mxu0
      %v1384 = vadd.f32 0.0, %v1383
      %v1385 = vpop.f32.mrb[0].mxu0
      %1386 = vmatprep.mubr.bf16.mxu0 0
      %1387 = vmatmul.mubr.bf16.gmra.mrb[0].mxu0 %v1300
      %v1388 = vpop.f32.mrb[0].mxu0
      %v1389 = vadd.f32 0.0, %v1388
      %v1390 = vpop.f32.mrb[0].mxu0
      %v1391 = vpop.f32.mrb[0].mxu0
      %v1392 = vadd.f32 0.0, %v1391
      %v1393 = vpop.f32.mrb[0].mxu0
      %1394 = vmatprep.mubr.bf16.mxu0 0
      %1395 = vmatmul.mubr.bf16.gmra.mrb[0].mxu0 %v1303
      %v1396 = vpop.f32.mrb[0].mxu0
      %v1397 = vadd.f32 0.0, %v1396
      %v1398 = vpop.f32.mrb[0].mxu0
      %v1399 = vpop.f32.mrb[0].mxu0
      %v1400 = vadd.f32 0.0, %v1399
      %v1401 = vpop.f32.mrb[0].mxu0
      %1402 = vmatprep.mubr.bf16.mxu0 0
      %1403 = vmatmul.mubr.bf16.gmra.mrb[0].mxu0 %v1306
      %v1404 = vpop.f32.mrb[0].mxu0
      %v1405 = vadd.f32 0.0, %v1404
      %v1406 = vpop.f32.mrb[0].mxu0
      %v1407 = vpop.f32.mrb[0].mxu0
      %v1408 = vadd.f32 0.0, %v1407
      %v1409 = vpop.f32.mrb[0].mxu0
      %1410 = vmatprep.mubr.bf16.mxu0 0
      %1411 = vmatmul.mubr.bf16.gmra.mrb[0].mxu0 %v1309
      %v1412 = vpop.f32.mrb[0].mxu0
      %v1413 = vpop.f32.mrb[0].mxu0
      %v1414 = vpop.f32.mrb[0].mxu0
      %v1415 = vpop.f32.mrb[0].mxu0
      %1416 = vdwg.mxu0
      %v1417 = vadd.f32 %v1203, %v1349
      %v1418 = vadd.f32 %v1204, %v1352
      %v1419 = vadd.f32 %v1205, %v1357
      %v1420 = vadd.f32 %v1206, %v1360
      %v1421 = vadd.f32 %v1207, %v1365
      %v1422 = vadd.f32 %v1208, %v1368
      %v1423 = vadd.f32 %v1209, %v1373
      %v1424 = vadd.f32 %v1210, %v1376
      %v1425 = vadd.f32 %v1211, %v1381
      %v1426 = vadd.f32 %v1212, %v1384
      %v1427 = vadd.f32 %v1213, %v1389
      %v1428 = vadd.f32 %v1214, %v1392
      %v1429 = vadd.f32 %v1215, %v1397
      %v1430 = vadd.f32 %v1216, %v1400
      %v1431 = vadd.f32 %v1217, %v1405
      %v1432 = vadd.f32 %v1218, %v1408
      %v1433 = vld [vmem:[%s197 + $0x8] sm:$0xf]
      %v1434 = vld [vmem:[%s197 + $0xc] sm:$0xf]
      %v1435 = vld [vmem:[%s197 + $0x10] sm:$0xf]
      %v1436 = vld [vmem:[%s197 + $0x14] sm:$0xf]
      %v1437 = vld [vmem:[%s197 + $0x18] sm:$0xf]
      %v1438 = vld [vmem:[%s197 + $0x1c] sm:$0xf]
      %v1439 = vld [vmem:[%s197 + $0x20] sm:$0xf]
      %v1440 = vld [vmem:[%s197 + $0x24] sm:$0xf]
      %v1441 = vld [vmem:[%s197 + $0x28] sm:$0xf]
      %v1442 = vld [vmem:[%s197 + $0x2c] sm:$0xf]
      %v1443 = vld [vmem:[%s197 + $0x30] sm:$0xf]
      %v1444 = vld [vmem:[%s197 + $0x34] sm:$0xf]
      %v1445 = vld [vmem:[%s197 + $0x38] sm:$0xf]
      %v1446 = vld [vmem:[%s197 + $0x3c] sm:$0xf]
      %v1447 = vld [vmem:[%s197 + $0x40] sm:$0xf]
      %v1448 = vld [vmem:[%s197 + $0x44] sm:$0xf]
      %v1449 = vld [vmem:[%s197 + $0x48] sm:$0xf]
      %v1450 = vld [vmem:[%s197 + $0x4c] sm:$0xf]
      %s1451 = scalar_lea.vmem %s1, 12
      %v1452 = vld [vmem:[%s1451] sm:$0x3]
      %v1471 = vunpack.c.l.b16 %v1433
      %v1472 = vunpack.c.l.b16 %v1434
      %v1473 = vunpack.c.l.b16 %v1435
      %v1474 = vunpack.c.l.b16 %v1436
      %v1475 = vunpack.c.l.b16 %v1437
      %v1476 = vunpack.c.l.b16 %v1438
      %v1477 = vunpack.c.l.b16 %v1439
      %v1478 = vunpack.c.l.b16 %v1440
      %v1479 = vunpack.c.l.b16 %v1441
      %v1480 = vunpack.c.l.b16 %v1442
      %v1481 = vunpack.c.l.b16 %v1443
      %v1482 = vunpack.c.l.b16 %v1444
      %v1483 = vunpack.c.l.b16 %v1445
      %v1484 = vunpack.c.l.b16 %v1446
      %v1485 = vunpack.c.l.b16 %v1447
      %v1486 = vunpack.c.l.b16 %v1448
      %v1487 = vunpack.c.l.b16 %v1449
      %v1488 = vunpack.c.l.b16 %v1450
      %v1489 = vpack.c.b16 %v1472, %v1471
      %v1490 = vpack.c.b16 %v1474, %v1473
      %v1491 = vpack.c.b16 %v1476, %v1475
      %v1492 = vpack.c.b16 %v1478, %v1477
      %v1493 = vpack.c.b16 %v1480, %v1479
      %v1494 = vpack.c.b16 %v1482, %v1481
      %v1495 = vpack.c.b16 %v1484, %v1483
      %v1496 = vpack.c.b16 %v1486, %v1485
      %v1497 = vpack.c.b16 %v1488, %v1487
      %v1499 = vsel %vm273, %v1489, 0
      %v1502 = vsel %vm273, %v1490, 0
      %v1505 = vsel %vm273, %v1491, 0
      %v1508 = vsel %vm273, %v1492, 0
      %v1511 = vsel %vm273, %v1493, 0
      %v1514 = vsel %vm273, %v1494, 0
      %v1517 = vsel %vm273, %v1495, 0
      %v1520 = vsel %vm273, %v1496, 0
      %v1523 = vsel %vm273, %v1497, 0
      %v1526 = vsel %vm301, %v1452, 0
      %1528 = vmatprep.subr.bf16.mxu0 0
      %1529 = vmatpush1.bf16.msra.mxu0 %v1526
      %1530 = vmatprep.subr.bf16.mxu0 0
      %1531 = vmatpush1.bf16.msra.mxu0 0
      %1532 = vmatprep.subr.bf16.mxu0 0
      %1533 = vmatpush1.bf16.msra.mxu0 0
      %1534 = vmatprep.subr.bf16.mxu0 0
      %1535 = vmatpush1.bf16.msra.mxu0 0
      %1536 = vmatprep.subr.bf16.mxu0 0
      %1537 = vmatpush1.bf16.msra.mxu0 0
      %1538 = vmatprep.subr.bf16.mxu0 0
      %1539 = vmatpush1.bf16.msra.mxu0 0
      %1540 = vmatprep.subr.bf16.mxu0 0
      %1541 = vmatpush1.bf16.msra.mxu0 0
      %1542 = vmatprep.subr.bf16.mxu0 0
      %1543 = vmatpush1.bf16.msra.mxu0 0
      %1544 = vmatprep.subr.bf16.mxu0 0
      %1545 = vmatpush1.bf16.msra.mxu0 0
      %1546 = vmatprep.subr.bf16.mxu0 0
      %1547 = vmatpush1.bf16.msra.mxu0 0
      %1548 = vmatprep.subr.bf16.mxu0 0
      %1549 = vmatpush1.bf16.msra.mxu0 0
      %1550 = vmatprep.subr.bf16.mxu0 0
      %1551 = vmatpush1.bf16.msra.mxu0 0
      %1552 = vmatprep.subr.bf16.mxu0 0
      %1553 = vmatpush1.bf16.msra.mxu0 0
      %1554 = vmatprep.subr.bf16.mxu0 0
      %1555 = vmatpush1.bf16.msra.mxu0 0
      %1556 = vmatprep.subr.bf16.mxu0 0
      %1557 = vmatpush1.bf16.msra.mxu0 0
      %1558 = vmatprep.subr.bf16.mxu0 0
      %1559 = vmatpush1.bf16.msra.mxu0 0
      %1560 = vmatprep.mubr.bf16.mxu0 0
      %1561 = vmatmul.mubr.bf16.gmra.mrb[0].mxu0 %v1499
      %v1562 = vpop.f32.mrb[0].mxu0
      %v1563 = vadd.f32 0.0, %v1562
      %v1564 = vpop.f32.mrb[0].mxu0
      %v1565 = vpop.f32.mrb[0].mxu0
      %v1566 = vadd.f32 0.0, %v1565
      %v1567 = vpop.f32.mrb[0].mxu0
      %1568 = vmatprep.mubr.bf16.mxu0 0
      %1569 = vmatmul.mubr.bf16.gmra.mrb[0].mxu0 %v1502
      %v1570 = vpop.f32.mrb[0].mxu0
      %v1571 = vadd.f32 0.0, %v1570
      %v1572 = vpop.f32.mrb[0].mxu0
      %v1573 = vpop.f32.mrb[0].mxu0
      %v1574 = vadd.f32 0.0, %v1573
      %v1575 = vpop.f32.mrb[0].mxu0
      %1576 = vmatprep.mubr.bf16.mxu0 0
      %1577 = vmatmul.mubr.bf16.gmra.mrb[0].mxu0 %v1505
      %v1578 = vpop.f32.mrb[0].mxu0
      %v1579 = vadd.f32 0.0, %v1578
      %v1580 = vpop.f32.mrb[0].mxu0
      %v1581 = vpop.f32.mrb[0].mxu0
      %v1582 = vadd.f32 0.0, %v1581
      %v1583 = vpop.f32.mrb[0].mxu0
      %1584 = vmatprep.mubr.bf16.mxu0 0
      %1585 = vmatmul.mubr.bf16.gmra.mrb[0].mxu0 %v1508
      %v1586 = vpop.f32.mrb[0].mxu0
      %v1587 = vadd.f32 0.0, %v1586
      %v1588 = vpop.f32.mrb[0].mxu0
      %v1589 = vpop.f32.mrb[0].mxu0
      %v1590 = vadd.f32 0.0, %v1589
      %v1591 = vpop.f32.mrb[0].mxu0
      %1592 = vmatprep.mubr.bf16.mxu0 0
      %1593 = vmatmul.mubr.bf16.gmra.mrb[0].mxu0 %v1511
      %v1594 = vpop.f32.mrb[0].mxu0
      %v1595 = vadd.f32 0.0, %v1594
      %v1596 = vpop.f32.mrb[0].mxu0
      %v1597 = vpop.f32.mrb[0].mxu0
      %v1598 = vadd.f32 0.0, %v1597
      %v1599 = vpop.f32.mrb[0].mxu0
      %1600 = vmatprep.mubr.bf16.mxu0 0
      %1601 = vmatmul.mubr.bf16.gmra.mrb[0].mxu0 %v1514
      %v1602 = vpop.f32.mrb[0].mxu0
      %v1603 = vadd.f32 0.0, %v1602
      %v1604 = vpop.f32.mrb[0].mxu0
      %v1605 = vpop.f32.mrb[0].mxu0
      %v1606 = vadd.f32 0.0, %v1605
      %v1607 = vpop.f32.mrb[0].mxu0
      %1608 = vmatprep.mubr.bf16.mxu0 0
      %1609 = vmatmul.mubr.bf16.gmra.mrb[0].mxu0 %v1517
      %v1610 = vpop.f32.mrb[0].mxu0
      %v1611 = vadd.f32 0.0, %v1610
      %v1612 = vpop.f32.mrb[0].mxu0
      %v1613 = vpop.f32.mrb[0].mxu0
      %v1614 = vadd.f32 0.0, %v1613
      %v1615 = vpop.f32.mrb[0].mxu0
      %1616 = vmatprep.mubr.bf16.mxu0 0
      %1617 = vmatmul.mubr.bf16.gmra.mrb[0].mxu0 %v1520
      %v1618 = vpop.f32.mrb[0].mxu0
      %v1619 = vadd.f32 0.0, %v1618
      %v1620 = vpop.f32.mrb[0].mxu0
      %v1621 = vpop.f32.mrb[0].mxu0
      %v1622 = vadd.f32 0.0, %v1621
      %v1623 = vpop.f32.mrb[0].mxu0
      %1624 = vmatprep.mubr.bf16.mxu0 0
      %1625 = vmatmul.mubr.bf16.gmra.mrb[0].mxu0 %v1523
      %v1626 = vpop.f32.mrb[0].mxu0
      %v1627 = vpop.f32.mrb[0].mxu0
      %v1628 = vpop.f32.mrb[0].mxu0
      %v1629 = vpop.f32.mrb[0].mxu0
      %1630 = vdwg.mxu0
      %v1631 = vadd.f32 %v1417, %v1563
      %v1632 = vadd.f32 %v1418, %v1566
      %v1633 = vadd.f32 %v1419, %v1571
      %v1634 = vadd.f32 %v1420, %v1574
      %v1635 = vadd.f32 %v1421, %v1579
      %v1636 = vadd.f32 %v1422, %v1582
      %v1637 = vadd.f32 %v1423, %v1587
      %v1638 = vadd.f32 %v1424, %v1590
      %v1639 = vadd.f32 %v1425, %v1595
      %v1640 = vadd.f32 %v1426, %v1598
      %v1641 = vadd.f32 %v1427, %v1603
      %v1642 = vadd.f32 %v1428, %v1606
      %v1643 = vadd.f32 %v1429, %v1611
      %v1644 = vadd.f32 %v1430, %v1614
      %v1645 = vadd.f32 %v1431, %v1619
      %v1646 = vadd.f32 %v1432, %v1622
      %s1647 = scalar_lea.vmem %s1, 16
      %v1648 = vld [vmem:[%s1647] sm:$0x3]
      %v1650 = vsel %vm301, %v1648, 0
      %1652 = vmatprep.subr.bf16.mxu0 0
      %1653 = vmatpush1.bf16.msra.mxu0 %v1650
      %1654 = vmatprep.subr.bf16.mxu0 0
      %1655 = vmatpush1.bf16.msra.mxu0 0
      %1656 = vmatprep.subr.bf16.mxu0 0
      %1657 = vmatpush1.bf16.msra.mxu0 0
      %1658 = vmatprep.subr.bf16.mxu0 0
      %1659 = vmatpush1.bf16.msra.mxu0 0
      %1660 = vmatprep.subr.bf16.mxu0 0
      %1661 = vmatpush1.bf16.msra.mxu0 0
      %1662 = vmatprep.subr.bf16.mxu0 0
      %1663 = vmatpush1.bf16.msra.mxu0 0
      %1664 = vmatprep.subr.bf16.mxu0 0
      %1665 = vmatpush1.bf16.msra.mxu0 0
      %1666 = vmatprep.subr.bf16.mxu0 0
      %1667 = vmatpush1.bf16.msra.mxu0 0
      %1668 = vmatprep.subr.bf16.mxu0 0
      %1669 = vmatpush1.bf16.msra.mxu0 0
      %1670 = vmatprep.subr.bf16.mxu0 0
      %1671 = vmatpush1.bf16.msra.mxu0 0
      %1672 = vmatprep.subr.bf16.mxu0 0
      %1673 = vmatpush1.bf16.msra.mxu0 0
      %1674 = vmatprep.subr.bf16.mxu0 0
      %1675 = vmatpush1.bf16.msra.mxu0 0
      %1676 = vmatprep.subr.bf16.mxu0 0
      %1677 = vmatpush1.bf16.msra.mxu0 0
      %1678 = vmatprep.subr.bf16.mxu0 0
      %1679 = vmatpush1.bf16.msra.mxu0 0
      %1680 = vmatprep.subr.bf16.mxu0 0
      %1681 = vmatpush1.bf16.msra.mxu0 0
      %1682 = vmatprep.subr.bf16.mxu0 0
      %1683 = vmatpush1.bf16.msra.mxu0 0
      %1684 = vmatprep.mubr.bf16.mxu0 0
      %1685 = vmatmul.mubr.bf16.gmra.mrb[0].mxu0 %v1499
      %v1686 = vpop.f32.mrb[0].mxu0
      %v1687 = vadd.f32 0.0, %v1686
      %v1688 = vpop.f32.mrb[0].mxu0
      %v1689 = vpop.f32.mrb[0].mxu0
      %v1690 = vadd.f32 0.0, %v1689
      %v1691 = vpop.f32.mrb[0].mxu0
      %1692 = vmatprep.mubr.bf16.mxu0 0
      %1693 = vmatmul.mubr.bf16.gmra.mrb[0].mxu0 %v1502
      %v1694 = vpop.f32.mrb[0].mxu0
      %v1695 = vadd.f32 0.0, %v1694
      %v1696 = vpop.f32.mrb[0].mxu0
      %v1697 = vpop.f32.mrb[0].mxu0
      %v1698 = vadd.f32 0.0, %v1697
      %v1699 = vpop.f32.mrb[0].mxu0
      %1700 = vmatprep.mubr.bf16.mxu0 0
      %1701 = vmatmul.mubr.bf16.gmra.mrb[0].mxu0 %v1505
      %v1702 = vpop.f32.mrb[0].mxu0
      %v1703 = vadd.f32 0.0, %v1702
      %v1704 = vpop.f32.mrb[0].mxu0
      %v1705 = vpop.f32.mrb[0].mxu0
      %v1706 = vadd.f32 0.0, %v1705
      %v1707 = vpop.f32.mrb[0].mxu0
      %1708 = vmatprep.mubr.bf16.mxu0 0
      %1709 = vmatmul.mubr.bf16.gmra.mrb[0].mxu0 %v1508
      %v1710 = vpop.f32.mrb[0].mxu0
      %v1711 = vadd.f32 0.0, %v1710
      %v1712 = vpop.f32.mrb[0].mxu0
      %v1713 = vpop.f32.mrb[0].mxu0
      %v1714 = vadd.f32 0.0, %v1713
      %v1715 = vpop.f32.mrb[0].mxu0
      %1716 = vmatprep.mubr.bf16.mxu0 0
      %1717 = vmatmul.mubr.bf16.gmra.mrb[0].mxu0 %v1511
      %v1718 = vpop.f32.mrb[0].mxu0
      %v1719 = vadd.f32 0.0, %v1718
      %v1720 = vpop.f32.mrb[0].mxu0
      %v1721 = vpop.f32.mrb[0].mxu0
      %v1722 = vadd.f32 0.0, %v1721
      %v1723 = vpop.f32.mrb[0].mxu0
      %1724 = vmatprep.mubr.bf16.mxu0 0
      %1725 = vmatmul.mubr.bf16.gmra.mrb[0].mxu0 %v1514
      %v1726 = vpop.f32.mrb[0].mxu0
      %v1727 = vadd.f32 0.0, %v1726
      %v1728 = vpop.f32.mrb[0].mxu0
      %v1729 = vpop.f32.mrb[0].mxu0
      %v1730 = vadd.f32 0.0, %v1729
      %v1731 = vpop.f32.mrb[0].mxu0
      %1732 = vmatprep.mubr.bf16.mxu0 0
      %1733 = vmatmul.mubr.bf16.gmra.mrb[0].mxu0 %v1517
      %v1734 = vpop.f32.mrb[0].mxu0
      %v1735 = vadd.f32 0.0, %v1734
      %v1736 = vpop.f32.mrb[0].mxu0
      %v1737 = vpop.f32.mrb[0].mxu0
      %v1738 = vadd.f32 0.0, %v1737
      %v1739 = vpop.f32.mrb[0].mxu0
      %1740 = vmatprep.mubr.bf16.mxu0 0
      %1741 = vmatmul.mubr.bf16.gmra.mrb[0].mxu0 %v1520
      %v1742 = vpop.f32.mrb[0].mxu0
      %v1743 = vadd.f32 0.0, %v1742
      %v1744 = vpop.f32.mrb[0].mxu0
      %v1745 = vpop.f32.mrb[0].mxu0
      %v1746 = vadd.f32 0.0, %v1745
      %v1747 = vpop.f32.mrb[0].mxu0
      %1748 = vmatprep.mubr.bf16.mxu0 0
      %1749 = vmatmul.mubr.bf16.gmra.mrb[0].mxu0 %v1523
      %v1750 = vpop.f32.mrb[0].mxu0
      %v1751 = vadd.f32 0.0, %v1750
      %v1752 = vpop.f32.mrb[0].mxu0
      %v1753 = vpop.f32.mrb[0].mxu0
      %v1754 = vpop.f32.mrb[0].mxu0
      %1755 = vdwg.mxu0
      %v1773 = vrot.slane %v1687, 1
      %v1774 = vrot.slane %v1690, 1
      %v1775 = vsel %vm534, %v1773, %v1774
      %v1776 = vrot.slane %v1695, 1
      %v1777 = vsel %vm534, %v1774, %v1776
      %v1778 = vrot.slane %v1698, 1
      %v1779 = vsel %vm534, %v1776, %v1778
      %v1780 = vrot.slane %v1703, 1
      %v1781 = vsel %vm534, %v1778, %v1780
      %v1782 = vrot.slane %v1706, 1
      %v1783 = vsel %vm534, %v1780, %v1782
      %v1784 = vrot.slane %v1711, 1
      %v1785 = vsel %vm534, %v1782, %v1784
      %v1786 = vrot.slane %v1714, 1
      %v1787 = vsel %vm534, %v1784, %v1786
      %v1788 = vrot.slane %v1719, 1
      %v1789 = vsel %vm534, %v1786, %v1788
      %v1790 = vrot.slane %v1722, 1
      %v1791 = vsel %vm534, %v1788, %v1790
      %v1792 = vrot.slane %v1727, 1
      %v1793 = vsel %vm534, %v1790, %v1792
      %v1794 = vrot.slane %v1730, 1
      %v1795 = vsel %vm534, %v1792, %v1794
      %v1796 = vrot.slane %v1735, 1
      %v1797 = vsel %vm534, %v1794, %v1796
      %v1798 = vrot.slane %v1738, 1
      %v1799 = vsel %vm534, %v1796, %v1798
      %v1800 = vrot.slane %v1743, 1
      %v1801 = vsel %vm534, %v1798, %v1800
      %v1802 = vrot.slane %v1746, 1
      %v1803 = vsel %vm534, %v1800, %v1802
      %v1804 = vrot.slane %v1751, 1
      %v1805 = vsel %vm534, %v1802, %v1804
      %v1822 = vadd.f32 %v1631, %v1775
      %v1823 = vadd.f32 %v1632, %v1777
      %v1824 = vadd.f32 %v1633, %v1779
      %v1825 = vadd.f32 %v1634, %v1781
      %v1826 = vadd.f32 %v1635, %v1783
      %v1827 = vadd.f32 %v1636, %v1785
      %v1828 = vadd.f32 %v1637, %v1787
      %v1829 = vadd.f32 %v1638, %v1789
      %v1830 = vadd.f32 %v1639, %v1791
      %v1831 = vadd.f32 %v1640, %v1793
      %v1832 = vadd.f32 %v1641, %v1795
      %v1833 = vadd.f32 %v1642, %v1797
      %v1834 = vadd.f32 %v1643, %v1799
      %v1835 = vadd.f32 %v1644, %v1801
      %v1836 = vadd.f32 %v1645, %v1803
      %v1837 = vadd.f32 %v1646, %v1805
      %v1838 = vld [vmem:[%s197 + $0x58] sm:$0xf]
      %v1839 = vld [vmem:[%s197 + $0x5c] sm:$0xf]
      %v1840 = vld [vmem:[%s197 + $0x60] sm:$0xf]
      %v1841 = vld [vmem:[%s197 + $0x64] sm:$0xf]
      %v1842 = vld [vmem:[%s197 + $0x68] sm:$0xf]
      %v1843 = vld [vmem:[%s197 + $0x6c] sm:$0xf]
      %v1844 = vld [vmem:[%s197 + $0x70] sm:$0xf]
      %v1845 = vld [vmem:[%s197 + $0x74] sm:$0xf]
      %v1846 = vld [vmem:[%s197 + $0x78] sm:$0xf]
      %v1847 = vld [vmem:[%s197 + $0x7c] sm:$0xf]
      %v1848 = vld [vmem:[%s197 + $0x80] sm:$0xf]
      %v1849 = vld [vmem:[%s197 + $0x84] sm:$0xf]
      %v1850 = vld [vmem:[%s197 + $0x88] sm:$0xf]
      %v1851 = vld [vmem:[%s197 + $0x8c] sm:$0xf]
      %v1852 = vld [vmem:[%s197 + $0x90] sm:$0xf]
      %v1853 = vld [vmem:[%s197 + $0x94] sm:$0xf]
      %v1854 = vld [vmem:[%s197 + $0x98] sm:$0xf]
      %v1855 = vld [vmem:[%s197 + $0x9c] sm:$0xf]
      %s1856 = scalar_lea.vmem %s1, 14
      %v1857 = vld [vmem:[%s1856] sm:$0x3]
      %v1876 = vunpack.c.l.b16 %v1838
      %v1877 = vunpack.c.l.b16 %v1839
      %v1878 = vunpack.c.l.b16 %v1840
      %v1879 = vunpack.c.l.b16 %v1841
      %v1880 = vunpack.c.l.b16 %v1842
      %v1881 = vunpack.c.l.b16 %v1843
      %v1882 = vunpack.c.l.b16 %v1844
      %v1883 = vunpack.c.l.b16 %v1845
      %v1884 = vunpack.c.l.b16 %v1846
      %v1885 = vunpack.c.l.b16 %v1847
      %v1886 = vunpack.c.l.b16 %v1848
      %v1887 = vunpack.c.l.b16 %v1849
      %v1888 = vunpack.c.l.b16 %v1850
      %v1889 = vunpack.c.l.b16 %v1851
      %v1890 = vunpack.c.l.b16 %v1852
      %v1891 = vunpack.c.l.b16 %v1853
      %v1892 = vunpack.c.l.b16 %v1854
      %v1893 = vunpack.c.l.b16 %v1855
      %v1894 = vpack.c.b16 %v1877, %v1876
      %v1895 = vpack.c.b16 %v1879, %v1878
      %v1896 = vpack.c.b16 %v1881, %v1880
      %v1897 = vpack.c.b16 %v1883, %v1882
      %v1898 = vpack.c.b16 %v1885, %v1884
      %v1899 = vpack.c.b16 %v1887, %v1886
      %v1900 = vpack.c.b16 %v1889, %v1888
      %v1901 = vpack.c.b16 %v1891, %v1890
      %v1902 = vpack.c.b16 %v1893, %v1892
      %v1904 = vsel %vm273, %v1894, 0
      %v1907 = vsel %vm273, %v1895, 0
      %v1910 = vsel %vm273, %v1896, 0
      %v1913 = vsel %vm273, %v1897, 0
      %v1916 = vsel %vm273, %v1898, 0
      %v1919 = vsel %vm273, %v1899, 0
      %v1922 = vsel %vm273, %v1900, 0
      %v1925 = vsel %vm273, %v1901, 0
      %v1928 = vsel %vm273, %v1902, 0
      %v1931 = vsel %vm301, %v1857, 0
      %1933 = vmatprep.subr.bf16.mxu0 0
      %1934 = vmatpush1.bf16.msra.mxu0 %v1931
      %1935 = vmatprep.subr.bf16.mxu0 0
      %1936 = vmatpush1.bf16.msra.mxu0 0
      %1937 = vmatprep.subr.bf16.mxu0 0
      %1938 = vmatpush1.bf16.msra.mxu0 0
      %1939 = vmatprep.subr.bf16.mxu0 0
      %1940 = vmatpush1.bf16.msra.mxu0 0
      %1941 = vmatprep.subr.bf16.mxu0 0
      %1942 = vmatpush1.bf16.msra.mxu0 0
      %1943 = vmatprep.subr.bf16.mxu0 0
      %1944 = vmatpush1.bf16.msra.mxu0 0
      %1945 = vmatprep.subr.bf16.mxu0 0
      %1946 = vmatpush1.bf16.msra.mxu0 0
      %1947 = vmatprep.subr.bf16.mxu0 0
      %1948 = vmatpush1.bf16.msra.mxu0 0
      %1949 = vmatprep.subr.bf16.mxu0 0
      %1950 = vmatpush1.bf16.msra.mxu0 0
      %1951 = vmatprep.subr.bf16.mxu0 0
      %1952 = vmatpush1.bf16.msra.mxu0 0
      %1953 = vmatprep.subr.bf16.mxu0 0
      %1954 = vmatpush1.bf16.msra.mxu0 0
      %1955 = vmatprep.subr.bf16.mxu0 0
      %1956 = vmatpush1.bf16.msra.mxu0 0
      %1957 = vmatprep.subr.bf16.mxu0 0
      %1958 = vmatpush1.bf16.msra.mxu0 0
      %1959 = vmatprep.subr.bf16.mxu0 0
      %1960 = vmatpush1.bf16.msra.mxu0 0
      %1961 = vmatprep.subr.bf16.mxu0 0
      %1962 = vmatpush1.bf16.msra.mxu0 0
      %1963 = vmatprep.subr.bf16.mxu0 0
      %1964 = vmatpush1.bf16.msra.mxu0 0
      %1965 = vmatprep.mubr.bf16.mxu0 0
      %1966 = vmatmul.mubr.bf16.gmra.mrb[0].mxu0 %v1904
      %v1967 = vpop.f32.mrb[0].mxu0
      %v1968 = vadd.f32 0.0, %v1967
      %v1969 = vpop.f32.mrb[0].mxu0
      %v1970 = vpop.f32.mrb[0].mxu0
      %v1971 = vadd.f32 0.0, %v1970
      %v1972 = vpop.f32.mrb[0].mxu0
      %1973 = vmatprep.mubr.bf16.mxu0 0
      %1974 = vmatmul.mubr.bf16.gmra.mrb[0].mxu0 %v1907
      %v1975 = vpop.f32.mrb[0].mxu0
      %v1976 = vadd.f32 0.0, %v1975
      %v1977 = vpop.f32.mrb[0].mxu0
      %v1978 = vpop.f32.mrb[0].mxu0
      %v1979 = vadd.f32 0.0, %v1978
      %v1980 = vpop.f32.mrb[0].mxu0
      %1981 = vmatprep.mubr.bf16.mxu0 0
      %1982 = vmatmul.mubr.bf16.gmra.mrb[0].mxu0 %v1910
      %v1983 = vpop.f32.mrb[0].mxu0
      %v1984 = vadd.f32 0.0, %v1983
      %v1985 = vpop.f32.mrb[0].mxu0
      %v1986 = vpop.f32.mrb[0].mxu0
      %v1987 = vadd.f32 0.0, %v1986
      %v1988 = vpop.f32.mrb[0].mxu0
      %1989 = vmatprep.mubr.bf16.mxu0 0
      %1990 = vmatmul.mubr.bf16.gmra.mrb[0].mxu0 %v1913
      %v1991 = vpop.f32.mrb[0].mxu0
      %v1992 = vadd.f32 0.0, %v1991
      %v1993 = vpop.f32.mrb[0].mxu0
      %v1994 = vpop.f32.mrb[0].mxu0
      %v1995 = vadd.f32 0.0, %v1994
      %v1996 = vpop.f32.mrb[0].mxu0
      %1997 = vmatprep.mubr.bf16.mxu0 0
      %1998 = vmatmul.mubr.bf16.gmra.mrb[0].mxu0 %v1916
      %v1999 = vpop.f32.mrb[0].mxu0
      %v2000 = vadd.f32 0.0, %v1999
      %v2001 = vpop.f32.mrb[0].mxu0
      %v2002 = vpop.f32.mrb[0].mxu0
      %v2003 = vadd.f32 0.0, %v2002
      %v2004 = vpop.f32.mrb[0].mxu0
      %2005 = vmatprep.mubr.bf16.mxu0 0
      %2006 = vmatmul.mubr.bf16.gmra.mrb[0].mxu0 %v1919
      %v2007 = vpop.f32.mrb[0].mxu0
      %v2008 = vadd.f32 0.0, %v2007
      %v2009 = vpop.f32.mrb[0].mxu0
      %v2010 = vpop.f32.mrb[0].mxu0
      %v2011 = vadd.f32 0.0, %v2010
      %v2012 = vpop.f32.mrb[0].mxu0
      %2013 = vmatprep.mubr.bf16.mxu0 0
      %2014 = vmatmul.mubr.bf16.gmra.mrb[0].mxu0 %v1922
      %v2015 = vpop.f32.mrb[0].mxu0
      %v2016 = vadd.f32 0.0, %v2015
      %v2017 = vpop.f32.mrb[0].mxu0
      %v2018 = vpop.f32.mrb[0].mxu0
      %v2019 = vadd.f32 0.0, %v2018
      %v2020 = vpop.f32.mrb[0].mxu0
      %2021 = vmatprep.mubr.bf16.mxu0 0
      %2022 = vmatmul.mubr.bf16.gmra.mrb[0].mxu0 %v1925
      %v2023 = vpop.f32.mrb[0].mxu0
      %v2024 = vadd.f32 0.0, %v2023
      %v2025 = vpop.f32.mrb[0].mxu0
      %v2026 = vpop.f32.mrb[0].mxu0
      %v2027 = vadd.f32 0.0, %v2026
      %v2028 = vpop.f32.mrb[0].mxu0
      %2029 = vmatprep.mubr.bf16.mxu0 0
      %2030 = vmatmul.mubr.bf16.gmra.mrb[0].mxu0 %v1928
      %v2031 = vpop.f32.mrb[0].mxu0
      %v2032 = vpop.f32.mrb[0].mxu0
      %v2033 = vpop.f32.mrb[0].mxu0
      %v2034 = vpop.f32.mrb[0].mxu0
      %2035 = vdwg.mxu0
      %v2036 = vadd.f32 %v1822, %v1968
      %v2037 = vadd.f32 %v1823, %v1971
      %v2038 = vadd.f32 %v1824, %v1976
      %v2039 = vadd.f32 %v1825, %v1979
      %v2040 = vadd.f32 %v1826, %v1984
      %v2041 = vadd.f32 %v1827, %v1987
      %v2042 = vadd.f32 %v1828, %v1992
      %v2043 = vadd.f32 %v1829, %v1995
      %v2044 = vadd.f32 %v1830, %v2000
      %v2045 = vadd.f32 %v1831, %v2003
      %v2046 = vadd.f32 %v1832, %v2008
      %v2047 = vadd.f32 %v1833, %v2011
      %v2048 = vadd.f32 %v1834, %v2016
      %v2049 = vadd.f32 %v1835, %v2019
      %v2050 = vadd.f32 %v1836, %v2024
      %v2051 = vadd.f32 %v1837, %v2027
      %v2052 = vld [vmem:[%s2] sm:$0x1]
      %v2054 = vlaneseq
      %v2055 = vshrl.u32 %v2054, 7
      %v2056 = vsub.s32 0, %v2055
      %v2057 = vrot.slane %v2052, %v2056
      %v2059 = vadd.f32 %v2036, %v2057
      %v2060 = vadd.f32 %v2037, %v2057
      %v2061 = vadd.f32 %v2038, %v2057
      %v2062 = vadd.f32 %v2039, %v2057
      %v2063 = vadd.f32 %v2040, %v2057
      %v2064 = vadd.f32 %v2041, %v2057
      %v2065 = vadd.f32 %v2042, %v2057
      %v2066 = vadd.f32 %v2043, %v2057
      %v2067 = vadd.f32 %v2044, %v2057
      %v2068 = vadd.f32 %v2045, %v2057
      %v2069 = vadd.f32 %v2046, %v2057
      %v2070 = vadd.f32 %v2047, %v2057
      %v2071 = vadd.f32 %v2048, %v2057
      %v2072 = vadd.f32 %v2049, %v2057
      %v2073 = vadd.f32 %v2050, %v2057
      %v2074 = vadd.f32 %v2051, %v2057
      %v2075 = vmax.f32 %v2059, 0.0
      %v2076 = vmax.f32 %v2060, 0.0
      %v2077 = vmax.f32 %v2061, 0.0
      %v2078 = vmax.f32 %v2062, 0.0
      %v2079 = vmax.f32 %v2063, 0.0
      %v2080 = vmax.f32 %v2064, 0.0
      %v2081 = vmax.f32 %v2065, 0.0
      %v2082 = vmax.f32 %v2066, 0.0
      %v2083 = vmax.f32 %v2067, 0.0
      %v2084 = vmax.f32 %v2068, 0.0
      %v2085 = vmax.f32 %v2069, 0.0
      %v2086 = vmax.f32 %v2070, 0.0
      %v2087 = vmax.f32 %v2071, 0.0
      %v2088 = vmax.f32 %v2072, 0.0
      %v2089 = vmax.f32 %v2073, 0.0
      %v2090 = vmax.f32 %v2074, 0.0
      %v2091 = vpack.c.bf16 %v2076, %v2075
      %v2092 = vpack.c.bf16 %v2078, %v2077
      %v2093 = vpack.c.bf16 %v2080, %v2079
      %v2094 = vpack.c.bf16 %v2082, %v2081
      %v2095 = vpack.c.bf16 %v2084, %v2083
      %v2096 = vpack.c.bf16 %v2086, %v2085
      %v2097 = vpack.c.bf16 %v2088, %v2087
      %v2098 = vpack.c.bf16 %v2090, %v2089
      %v2107 = vunpack.c.l.b16 %v2091
      %v2108 = vunpack.c.h.b16 %v2091
      %v2109 = vunpack.c.l.b16 %v2092
      %v2110 = vunpack.c.h.b16 %v2092
      %v2111 = vunpack.c.l.b16 %v2093
      %v2112 = vunpack.c.h.b16 %v2093
      %v2113 = vunpack.c.l.b16 %v2094
      %v2114 = vunpack.c.h.b16 %v2094
      %v2115 = vunpack.c.l.b16 %v2095
      %v2116 = vunpack.c.h.b16 %v2095
      %v2117 = vunpack.c.l.b16 %v2096
      %v2118 = vunpack.c.h.b16 %v2096
      %v2119 = vunpack.c.l.b16 %v2097
      %v2120 = vunpack.c.h.b16 %v2097
      %v2121 = vunpack.c.l.b16 %v2098
      %v2122 = vunpack.c.h.b16 %v2098
      %v2123 = vpack.c.b16 %v2107, %v2107
      %v2124 = vpack.c.b16 %v2108, %v2108
      %v2125 = vpack.c.b16 %v2109, %v2109
      %v2126 = vpack.c.b16 %v2110, %v2110
      %v2127 = vpack.c.b16 %v2111, %v2111
      %v2128 = vpack.c.b16 %v2112, %v2112
      %v2129 = vpack.c.b16 %v2113, %v2113
      %v2130 = vpack.c.b16 %v2114, %v2114
      %v2131 = vpack.c.b16 %v2115, %v2115
      %v2132 = vpack.c.b16 %v2116, %v2116
      %v2133 = vpack.c.b16 %v2117, %v2117
      %v2134 = vpack.c.b16 %v2118, %v2118
      %v2135 = vpack.c.b16 %v2119, %v2119
      %v2136 = vpack.c.b16 %v2120, %v2120
      %v2137 = vpack.c.b16 %v2121, %v2121
      %v2138 = vpack.c.b16 %v2122, %v2122
      %2155 = vst [vmem:[%s206] sm:$0xf] %v2123
      %2156 = vst [vmem:[%s206 + $0x4] sm:$0xf] %v2124
      %2157 = vst [vmem:[%s206 + $0x8] sm:$0xf] %v2125
      %2158 = vst [vmem:[%s206 + $0xc] sm:$0xf] %v2126
      %2159 = vst [vmem:[%s206 + $0x10] sm:$0xf] %v2127
      %2160 = vst [vmem:[%s206 + $0x14] sm:$0xf] %v2128
      %2161 = vst [vmem:[%s206 + $0x18] sm:$0xf] %v2129
      %2162 = vst [vmem:[%s206 + $0x1c] sm:$0xf] %v2130
      %2163 = vst [vmem:[%s206 + $0x20] sm:$0xf] %v2131
      %2164 = vst [vmem:[%s206 + $0x24] sm:$0xf] %v2132
      %2165 = vst [vmem:[%s206 + $0x28] sm:$0xf] %v2133
      %2166 = vst [vmem:[%s206 + $0x2c] sm:$0xf] %v2134
      %2167 = vst [vmem:[%s206 + $0x30] sm:$0xf] %v2135
      %2168 = vst [vmem:[%s206 + $0x34] sm:$0xf] %v2136
      %2169 = vst [vmem:[%s206 + $0x38] sm:$0xf] %v2137
      %2170 = vst [vmem:[%s206 + $0x3c] sm:$0xf] %v2138
      %s2171 = smul.u32 16, %s19
      %p2172 = scmp.lt.s32.totalorder %s18, 1
      %s2173 = scalar_select %p2172, %s18, 1
      %p2174 = scmp.lt.s32.totalorder %s2171, 15
      %s2175 = scalar_select %p2174, %s2171, 15
      %s2176 = smul.addr %s2173, 16
      %s2177 = sadd.s32 %s2175, %s2176
      %s2178 = smul.addr %s2177, 4
      %s2179 = scalar_lea.vmem %s3, %s2178
      // Predicated region
      $region33: #{basic_block_forward.2} parent=31 // pred_check
        %p2180 = pneg %p116
      $region34: #{basic_block_forward.2} parent=31 // pred_check_branch
        %2182 = sbr.rel (%p2180) target = $region36
      $region35: #{basic_block_forward.2} parent=31 // pred_region
        %s2183 = smul.u32 16, %s19
      $region36: #{basic_block_forward.2} parent=31 // pred_fallthru
        _
    $region32: #{basic_block_forward.2} parent=5 // pred_fallthru
      _
    %p2184 = scmp.le.s32.totalorder 2, %s9
    // Predicated region
    $region37: #{basic_block_forward.2} parent=5 // pred_check
      %p2185 = pneg %p2184
    $region38: #{basic_block_forward.2} parent=5 // pred_check_branch
      %2187 = sbr.rel (%p2185) target = $region40
    $region39: #{basic_block_forward.2} parent=5 // pred_region
      %s2188 = ssub.s32 %s9, 2
      // Predicated region
      $region41: #{basic_block_forward.2} parent=39 // pred_check
        %p2189 = pneg %p122
      $region42: #{basic_block_forward.2} parent=39 // pred_check_branch
        %2191 = sbr.rel (%p2189) target = $region44
      $region43: #{basic_block_forward.2} parent=39 // pred_region
        %s2192 = smul.u32 16, %s21
        %p2193 = scmp.lt.s32.totalorder %s20, 1
        %s2194 = scalar_select %p2193, %s20, 1
        %p2195 = scmp.lt.s32.totalorder %s2192, 15
        %s2196 = scalar_select %p2195, %s2192, 15
        %s2197 = smul.addr %s2194, 16
        %s2198 = sadd.s32 %s2196, %s2197
        %s2199 = smul.addr %s2198, 4
        %s2200 = scalar_lea.vmem %s3, %s2199
      $region44: #{basic_block_forward.2} parent=39 // pred_fallthru
        _
    $region40: #{basic_block_forward.2} parent=5 // pred_fallthru
      _
  $region6: #{basic_block_forward.2} parent=0 // loop_footer
    %s13 = sadd.s32 1, %s9
  $region7: #{basic_block_forward.2} parent=0 // loop_footer_branch
    %8 = sbr.rel target = $region3
  $region8: #{basic_block_forward.2} parent=0 // loop_exit
    _

// kernel: basic_block_forward.3
$region0: #{basic_block_forward.3}
  #allocation0 [shape = 'u32[]', space=smem, size = 0x4, offset = 0x4, fixed_abs, tag = 'smem constant byte address 0x4 - core index']
  #allocation1 [shape = 'u32[144,128]{1,0:T(1,128)}', space=vmem, size = 0x12000, scoped, tag = 'internal scratch']
  %s0 = inlined_call_operand.vmem [shape: bf16[2,1,176,8], index: 0, kind: input, shape index: {}]
  %s1 = inlined_call_operand.vmem [shape: bf16[9,8,128], index: 1, kind: input, shape index: {}]
  %s2 = inlined_call_operand.vmem [shape: f32[1,128], index: 2, kind: input, shape index: {}]
  %s3 = inlined_call_operand.vmem [shape: bf16[2,128,4], index: 3, kind: input, shape index: {}]
  %s4 = inlined_call_operand.vmem [shape: bf16[4,128], index: 4, kind: input, shape index: {}]
  %s5 = inlined_call_operand.vmem [shape: f32[2,128,128], index: 5, kind: output, shape index: {}]
  %s6 = sld [smem:[#allocation0]]
  $region53: #{basic_block_forward.3} parent=0
    _
  %s8 = ssub.s32 1, %s6
  %s9 = scalar_select 0, %s8, %s6
  loop: start=0, step=1, limit=4
  $region2: #{basic_block_forward.3} parent=0 // loop_pre_header
    _
  $region3: #{basic_block_forward.3} parent=0 // loop_header
    %s11 = sphi 0, %s15
    %p12 = scmp.ge.s32.totalorder %s11, 4
    %s18 = sphi 0, %s30
    %s19 = sphi 0, %s26
    %s20 = sphi 0, %s18
    %s21 = sphi 0, %s19
    %s22 = sphi 0, %s20
    %s23 = sphi 0, %s21
    %s35 = sphi 0, %s37
    %s38 = sphi 0, %s35
    %s39 = sphi 0, %s38
    %s55 = sphi 0, %s39
    %s59 = sphi 0, %s59
    %s61 = sphi 0, %s59
    %s62 = sphi 0, %s61
    %s76 = sphi 0, %s62
    %s80 = sphi 0, %s80
    %s82 = sphi 0, %s80
    %s83 = sphi 0, %s82
    %s97 = sphi 0, %s83
    %s105 = sphi 0, %s107
    %s108 = sphi 0, %s105
    %s109 = sphi 0, %s108
    %s125 = sphi 0, %s109
    %s129 = sphi 0, %s129
    %s131 = sphi 0, %s129
    %s132 = sphi 0, %s131
    %s146 = sphi 0, %s132
    %s154 = sphi 0, %s156
    %s157 = sphi 0, %s154
    %s158 = sphi 0, %s157
    %s174 = sphi 0, %s158
  $region4: #{basic_block_forward.3} parent=0 // loop_header_branch
    %14 = sbr.rel (%p12) target = $region8
  $region5: #{basic_block_forward.3} parent=0 // loop_body
    %s16 = ssub.s32 %s11, 1
    %s17 = ssub.s32 %s11, 2
    %s24 = sadd.s32 1, %s19
    %p25 = scmp.ge.s32.totalorder %s24, 1
    %s26 = scalar_select %p25, 0, %s24
    %s27 = sadd.s32 1, %s18
    %s28 = scalar_select %p25, %s27, %s18
    %p29 = scmp.ge.s32.totalorder %s28, 2
    %s30 = scalar_select %p29, 0, %s28
    %s31 = ssub.s32 %s18, %s30
    %s32 = ssub.s32 %s19, %s26
    %s33 = sor.u32 %s31, %s32
    %p34 = scmp.eq.s32.totalorder %s33, 0
    %s36 = sadd.s32 %s35, 1
    %s37 = scalar_select %p34, %s35, %s36
    %p40 = pneg %p34
    %p41 = scmp.eq.s32.totalorder %s11, 1
    %p42 = por %p40, %p41
    %p43 = scmp.ne.s32.totalorder %s35, %s38
    %p44 = scmp.eq.s32.totalorder %s11, 0
    %p45 = por %p43, %p44
    %p46 = scmp.ne.s32.totalorder %s35, %s38
    %p47 = scmp.eq.s32.totalorder %s16, 1
    %p48 = por %p46, %p47
    %p49 = scmp.ne.s32.totalorder %s38, %s39
    %p50 = scmp.eq.s32.totalorder %s16, 0
    %p51 = por %p49, %p50
    %p52 = scmp.ne.s32.totalorder %s38, %s39
    %p53 = scmp.eq.s32.totalorder %s17, 1
    %p54 = por %p52, %p53
    %p56 = scmp.ne.s32.totalorder %s39, %s55
    %p57 = scmp.eq.s32.totalorder %s17, 0
    %p58 = por %p56, %p57
    %s60 = sadd.s32 %s59, 1
    %p63 = scmp.eq.s32.totalorder %s11, 1
    %p64 = scmp.ne.s32.totalorder %s59, %s61
    %p65 = scmp.eq.s32.totalorder %s11, 0
    %p66 = por %p64, %p65
    %p67 = scmp.ne.s32.totalorder %s59, %s61
    %p68 = scmp.eq.s32.totalorder %s16, 1
    %p69 = por %p67, %p68
    %p70 = scmp.ne.s32.totalorder %s61, %s62
    %p71 = scmp.eq.s32.totalorder %s16, 0
    %p72 = por %p70, %p71
    %p73 = scmp.ne.s32.totalorder %s61, %s62
    %p74 = scmp.eq.s32.totalorder %s17, 1
    %p75 = por %p73, %p74
    %p77 = scmp.ne.s32.totalorder %s62, %s76
    %p78 = scmp.eq.s32.totalorder %s17, 0
    %p79 = por %p77, %p78
    %s81 = sadd.s32 %s80, 1
    %p84 = scmp.eq.s32.totalorder %s11, 1
    %p85 = scmp.ne.s32.totalorder %s80, %s82
    %p86 = scmp.eq.s32.totalorder %s11, 0
    %p87 = por %p85, %p86
    %p88 = scmp.ne.s32.totalorder %s80, %s82
    %p89 = scmp.eq.s32.totalorder %s16, 1
    %p90 = por %p88, %p89
    %p91 = scmp.ne.s32.totalorder %s82, %s83
    %p92 = scmp.eq.s32.totalorder %s16, 0
    %p93 = por %p91, %p92
    %p94 = scmp.ne.s32.totalorder %s82, %s83
    %p95 = scmp.eq.s32.totalorder %s17, 1
    %p96 = por %p94, %p95
    %p98 = scmp.ne.s32.totalorder %s83, %s97
    %p99 = scmp.eq.s32.totalorder %s17, 0
    %p100 = por %p98, %p99
    %s101 = ssub.s32 %s18, %s30
    %s102 = ssub.s32 %s19, %s26
    %s103 = sor.u32 %s101, %s102
    %p104 = scmp.eq.s32.totalorder %s103, 0
    %s106 = sadd.s32 %s105, 1
    %s107 = scalar_select %p104, %s105, %s106
    %p110 = pneg %p104
    %p111 = scmp.eq.s32.totalorder %s11, 1
    %p112 = por %p110, %p111
    %p113 = scmp.ne.s32.totalorder %s105, %s108
    %p114 = scmp.eq.s32.totalorder %s11, 0
    %p115 = por %p113, %p114
    %p116 = scmp.ne.s32.totalorder %s105, %s108
    %p117 = scmp.eq.s32.totalorder %s16, 1
    %p118 = por %p116, %p117
    %p119 = scmp.ne.s32.totalorder %s108, %s109
    %p120 = scmp.eq.s32.totalorder %s16, 0
    %p121 = por %p119, %p120
    %p122 = scmp.ne.s32.totalorder %s108, %s109
    %p123 = scmp.eq.s32.totalorder %s17, 1
    %p124 = por %p122, %p123
    %p126 = scmp.ne.s32.totalorder %s109, %s125
    %p127 = scmp.eq.s32.totalorder %s17, 0
    %p128 = por %p126, %p127
    %s130 = sadd.s32 %s129, 1
    %p133 = scmp.eq.s32.totalorder %s11, 1
    %p134 = scmp.ne.s32.totalorder %s129, %s131
    %p135 = scmp.eq.s32.totalorder %s11, 0
    %p136 = por %p134, %p135
    %p137 = scmp.ne.s32.totalorder %s129, %s131
    %p138 = scmp.eq.s32.totalorder %s16, 1
    %p139 = por %p137, %p138
    %p140 = scmp.ne.s32.totalorder %s131, %s132
    %p141 = scmp.eq.s32.totalorder %s16, 0
    %p142 = por %p140, %p141
    %p143 = scmp.ne.s32.totalorder %s131, %s132
    %p144 = scmp.eq.s32.totalorder %s17, 1
    %p145 = por %p143, %p144
    %p147 = scmp.ne.s32.totalorder %s132, %s146
    %p148 = scmp.eq.s32.totalorder %s17, 0
    %p149 = por %p147, %p148
    %s150 = ssub.s32 %s18, %s30
    %s151 = ssub.s32 %s19, %s26
    %s152 = sor.u32 %s150, %s151
    %p153 = scmp.eq.s32.totalorder %s152, 0
    %s155 = sadd.s32 %s154, 1
    %s156 = scalar_select %p153, %s154, %s155
    %p159 = pneg %p153
    %p160 = scmp.eq.s32.totalorder %s11, 1
    %p161 = por %p159, %p160
    %p162 = scmp.ne.s32.totalorder %s154, %s157
    %p163 = scmp.eq.s32.totalorder %s11, 0
    %p164 = por %p162, %p163
    %p165 = scmp.ne.s32.totalorder %s154, %s157
    %p166 = scmp.eq.s32.totalorder %s16, 1
    %p167 = por %p165, %p166
    %p168 = scmp.ne.s32.totalorder %s157, %s158
    %p169 = scmp.eq.s32.totalorder %s16, 0
    %p170 = por %p168, %p169
    %p171 = scmp.ne.s32.totalorder %s157, %s158
    %p172 = scmp.eq.s32.totalorder %s17, 1
    %p173 = por %p171, %p172
    %p175 = scmp.ne.s32.totalorder %s158, %s174
    %p176 = scmp.eq.s32.totalorder %s17, 0
    %p177 = por %p175, %p176
    %p178 = scmp.le.s32.totalorder 1, %s11
    %p179 = scmp.lt.s32.totalorder %s11, 3
    %p180 = pnand %p178, %p179
    %p181 = pneg %p180
    // Predicated region
    $region9: #{basic_block_forward.3} parent=5 // pred_check
      _
    $region10: #{basic_block_forward.3} parent=5 // pred_check_branch
      %183 = sbr.rel (%p180) target = $region12
    $region11: #{basic_block_forward.3} parent=5 // pred_region
      %s184 = ssub.s32 %s11, 1
      // Predicated region
      $region13: #{basic_block_forward.3} parent=11 // pred_check
        %p185 = pneg %p72
      $region14: #{basic_block_forward.3} parent=11 // pred_check_branch
        %187 = sbr.rel (%p185) target = $region16
      $region15: #{basic_block_forward.3} parent=11 // pred_region
        _
      $region16: #{basic_block_forward.3} parent=11 // pred_fallthru
        _
      // Predicated region
      $region17: #{basic_block_forward.3} parent=11 // pred_check
        %p188 = pneg %p93
      $region18: #{basic_block_forward.3} parent=11 // pred_check_branch
        %190 = sbr.rel (%p188) target = $region20
      $region19: #{basic_block_forward.3} parent=11 // pred_region
        _
      $region20: #{basic_block_forward.3} parent=11 // pred_fallthru
        _
      // Predicated region
      $region21: #{basic_block_forward.3} parent=11 // pred_check
        %p191 = pneg %p142
      $region22: #{basic_block_forward.3} parent=11 // pred_check_branch
        %193 = sbr.rel (%p191) target = $region24
      $region23: #{basic_block_forward.3} parent=11 // pred_region
        _
      $region24: #{basic_block_forward.3} parent=11 // pred_fallthru
        _
    $region12: #{basic_block_forward.3} parent=5 // pred_fallthru
      _
    %p194 = scmp.lt.s32.totalorder %s11, 2
    // Predicated region
    $region25: #{basic_block_forward.3} parent=5 // pred_check
      %p195 = pneg %p194
    $region26: #{basic_block_forward.3} parent=5 // pred_check_branch
      %197 = sbr.rel (%p195) target = $region28
    $region27: #{basic_block_forward.3} parent=5 // pred_region
      // Predicated region
      $region29: #{basic_block_forward.3} parent=27 // pred_check
        %p198 = pneg %p45
      $region30: #{basic_block_forward.3} parent=27 // pred_check_branch
        %200 = sbr.rel (%p198) target = $region32
      $region31: #{basic_block_forward.3} parent=27 // pred_region
        %p201 = scmp.lt.s32.totalorder %s18, 1
        %s202 = scalar_select %p201, %s18, 1
        %p203 = scmp.lt.s32.totalorder %s19, 0
        %s204 = scalar_select %p203, %s19, 0
        %s205 = smul.addr %s204, 22
        %s206 = smul.addr %s202, 22
        %s207 = sadd.s32 %s205, %s206
        %s208 = smul.addr %s207, 4
        %s209 = scalar_lea.vmem %s0, %s208
      $region32: #{basic_block_forward.3} parent=27 // pred_fallthru
        _
      // Predicated region
      $region33: #{basic_block_forward.3} parent=27 // pred_check
        %p210 = pneg %p115
      $region34: #{basic_block_forward.3} parent=27 // pred_check_branch
        %212 = sbr.rel (%p210) target = $region36
      $region35: #{basic_block_forward.3} parent=27 // pred_region
        %s213 = smul.u32 16, %s19
        %p214 = scmp.lt.s32.totalorder %s18, 1
        %s215 = scalar_select %p214, %s18, 1
        %p216 = scmp.lt.s32.totalorder %s213, 15
        %s217 = scalar_select %p216, %s213, 15
        %s218 = smul.addr %s215, 16
        %s219 = sadd.s32 %s217, %s218
        %s220 = smul.addr %s219, 4
        %s221 = scalar_lea.vmem %s3, %s220
        %s222 = smul.u32 16, %s19
      $region36: #{basic_block_forward.3} parent=27 // pred_fallthru
        _
    $region28: #{basic_block_forward.3} parent=5 // pred_fallthru
      _
    %p223 = scmp.le.s32.totalorder 1, %s11
    %p224 = scmp.lt.s32.totalorder %s11, 3
    %p225 = pnand %p223, %p224
    %p226 = pneg %p225
    // Predicated region
    $region37: #{basic_block_forward.3} parent=5 // pred_check
      _
    $region38: #{basic_block_forward.3} parent=5 // pred_check_branch
      %228 = sbr.rel (%p225) target = $region40
    $region39: #{basic_block_forward.3} parent=5 // pred_region
      %s229 = ssub.s32 %s11, 1
      %p230 = scmp.lt.s32.totalorder %s20, 1
      %s231 = scalar_select %p230, %s20, 1
      %p232 = scmp.lt.s32.totalorder %s21, 0
      %s233 = scalar_select %p232, %s21, 0
      %s234 = smul.addr %s233, 22
      %s235 = smul.addr %s231, 22
      %s236 = sadd.s32 %s234, %s235
      %s237 = smul.addr %s236, 4
      %s238 = scalar_lea.vmem %s0, %s237
      %p239 = pneg %p51
      %p240 = pneg %p48
      %p241 = pneg %p72
      %p242 = pneg %p69
      %p243 = pneg %p93
      %p244 = pneg %p90
      %s245 = smul.u32 16, %s21
      %p246 = scmp.lt.s32.totalorder %s20, 1
      %s247 = scalar_select %p246, %s20, 1
      %p248 = scmp.lt.s32.totalorder %s245, 15
      %s249 = scalar_select %p248, %s245, 15
      %s250 = smul.addr %s247, 16
      %s251 = sadd.s32 %s249, %s250
      %s252 = smul.addr %s251, 4
      %s253 = scalar_lea.vmem %s3, %s252
      %p254 = pneg %p121
      %p255 = pneg %p118
      %p256 = pneg %p142
      %p257 = pneg %p139
      %p258 = pneg %p170
      %p259 = pneg %p167
      %s260 = smul.u32 16, %s21
      %p261 = scmp.lt.s32.totalorder %s20, 1
      %s262 = scalar_select %p261, %s20, 1
      %p263 = scmp.lt.s32.totalorder %s260, 15
      %s264 = scalar_select %p263, %s260, 15
      %s265 = smul.addr %s262, 16
      %s266 = sadd.s32 %s264, %s265
      %s267 = smul.addr %s266, 8
      %s268 = scalar_lea.vmem %s5, %s267
      %p269 = scmp.lt.s32.totalorder %s20, 1
      %s270 = scalar_select %p269, %s20, 1
      %p271 = scmp.lt.s32.totalorder %s21, 0
      %s272 = scalar_select %p271, %s21, 0
      %s273 = smul.addr %s272, 22
      %s274 = smul.addr %s270, 22
      %s275 = sadd.s32 %s273, %s274
      %s276 = smul.addr %s275, 4
      %s277 = scalar_lea.vmem %s0, %s276
      %s278 = smul.u32 16, %s21
      %p279 = scmp.lt.s32.totalorder %s20, 1
      %s280 = scalar_select %p279, %s20, 1
      %p281 = scmp.lt.s32.totalorder %s278, 15
      %s282 = scalar_select %p281, %s278, 15
      %s283 = smul.addr %s280, 16
      %s284 = sadd.s32 %s282, %s283
      %s285 = smul.addr %s284, 4
      %s286 = scalar_lea.vmem %s3, %s285
      %s287 = smul.u32 16, %s21
      %s288 = smul.u32 16, %s21
      %p289 = scmp.lt.s32.totalorder %s20, 1
      %s290 = scalar_select %p289, %s20, 1
      %p291 = scmp.lt.s32.totalorder %s288, 15
      %s292 = scalar_select %p291, %s288, 15
      %s293 = smul.addr %s290, 16
      %s294 = sadd.s32 %s292, %s293
      %s295 = smul.addr %s294, 8
      %s296 = scalar_lea.vmem %s5, %s295
      %s297 = smul.u32 16, %s21
      %v299 = vld [vmem:[%s277] sm:$0xf]
      %v300 = vld [vmem:[%s277 + $0x4] sm:$0xf]
      %v301 = vld [vmem:[%s277 + $0x8] sm:$0xf]
      %v302 = vld [vmem:[%s277 + $0xc] sm:$0xf]
      %v303 = vld [vmem:[%s277 + $0x10] sm:$0xf]
      %v304 = vld [vmem:[%s277 + $0x14] sm:$0xf]
      %v305 = vld [vmem:[%s277 + $0x18] sm:$0xf]
      %v306 = vld [vmem:[%s277 + $0x1c] sm:$0xf]
      %v307 = vld [vmem:[%s277 + $0x20] sm:$0xf]
      %v308 = vld [vmem:[%s277 + $0x24] sm:$0xf]
      %v309 = vld [vmem:[%s277 + $0x28] sm:$0xf]
      %v310 = vld [vmem:[%s277 + $0x2c] sm:$0xf]
      %v311 = vld [vmem:[%s277 + $0x30] sm:$0xf]
      %v312 = vld [vmem:[%s277 + $0x34] sm:$0xf]
      %v313 = vld [vmem:[%s277 + $0x38] sm:$0xf]
      %v314 = vld [vmem:[%s277 + $0x3c] sm:$0xf]
      %v315 = vld [vmem:[%s277 + $0x40] sm:$0xf]
      %v316 = vld [vmem:[%s277 + $0x44] sm:$0xf]
      %v317 = vld [vmem:[%s1] sm:$0xf]
      %v336 = vunpack.c.l.b16 %v299
      %v337 = vunpack.c.l.b16 %v300
      %v338 = vunpack.c.l.b16 %v301
      %v339 = vunpack.c.l.b16 %v302
      %v340 = vunpack.c.l.b16 %v303
      %v341 = vunpack.c.l.b16 %v304
      %v342 = vunpack.c.l.b16 %v305
      %v343 = vunpack.c.l.b16 %v306
      %v344 = vunpack.c.l.b16 %v307
      %v345 = vunpack.c.l.b16 %v308
      %v346 = vunpack.c.l.b16 %v309
      %v347 = vunpack.c.l.b16 %v310
      %v348 = vunpack.c.l.b16 %v311
      %v349 = vunpack.c.l.b16 %v312
      %v350 = vunpack.c.l.b16 %v313
      %v351 = vunpack.c.l.b16 %v314
      %v352 = vunpack.c.l.b16 %v315
      %v353 = vunpack.c.l.b16 %v316
      %v354 = vpack.c.b16 %v337, %v336
      %v355 = vpack.c.b16 %v339, %v338
      %v356 = vpack.c.b16 %v341, %v340
      %v357 = vpack.c.b16 %v343, %v342
      %v358 = vpack.c.b16 %v345, %v344
      %v359 = vpack.c.b16 %v347, %v346
      %v360 = vpack.c.b16 %v349, %v348
      %v361 = vpack.c.b16 %v351, %v350
      %v362 = vpack.c.b16 %v353, %v352
      %vm363 = vcmask 64512
      %v365 = vsel %vm363, %v354, 0
      %v368 = vsel %vm363, %v355, 0
      %v371 = vsel %vm363, %v356, 0
      %v374 = vsel %vm363, %v357, 0
      %v377 = vsel %vm363, %v358, 0
      %v380 = vsel %vm363, %v359, 0
      %v383 = vsel %vm363, %v360, 0
      %v386 = vsel %vm363, %v361, 0
      %v389 = vsel %vm363, %v362, 0
      %vm391 = vcmask 1043456
      %v393 = vsel %vm391, %v317, 0
      %395 = vmatprep.subr.bf16.mxu0 0
      %396 = vmatpush1.bf16.msra.mxu0 %v393
      %397 = vmatprep.subr.bf16.mxu0 0
      %398 = vmatpush1.bf16.msra.mxu0 0
      %399 = vmatprep.subr.bf16.mxu0 0
      %400 = vmatpush1.bf16.msra.mxu0 0
      %401 = vmatprep.subr.bf16.mxu0 0
      %402 = vmatpush1.bf16.msra.mxu0 0
      %403 = vmatprep.subr.bf16.mxu0 0
      %404 = vmatpush1.bf16.msra.mxu0 0
      %405 = vmatprep.subr.bf16.mxu0 0
      %406 = vmatpush1.bf16.msra.mxu0 0
      %407 = vmatprep.subr.bf16.mxu0 0
      %408 = vmatpush1.bf16.msra.mxu0 0
      %409 = vmatprep.subr.bf16.mxu0 0
      %410 = vmatpush1.bf16.msra.mxu0 0
      %411 = vmatprep.subr.bf16.mxu0 0
      %412 = vmatpush1.bf16.msra.mxu0 0
      %413 = vmatprep.subr.bf16.mxu0 0
      %414 = vmatpush1.bf16.msra.mxu0 0
      %415 = vmatprep.subr.bf16.mxu0 0
      %416 = vmatpush1.bf16.msra.mxu0 0
      %417 = vmatprep.subr.bf16.mxu0 0
      %418 = vmatpush1.bf16.msra.mxu0 0
      %419 = vmatprep.subr.bf16.mxu0 0
      %420 = vmatpush1.bf16.msra.mxu0 0
      %421 = vmatprep.subr.bf16.mxu0 0
      %422 = vmatpush1.bf16.msra.mxu0 0
      %423 = vmatprep.subr.bf16.mxu0 0
      %424 = vmatpush1.bf16.msra.mxu0 0
      %425 = vmatprep.subr.bf16.mxu0 0
      %426 = vmatpush1.bf16.msra.mxu0 0
      %427 = vmatprep.mubr.bf16.mxu0 0
      %428 = vmatmul.mubr.bf16.gmra.mrb[0].mxu0 %v365
      %v429 = vpop.f32.mrb[0].mxu0
      %v430 = vadd.f32 0.0, %v429
      %v431 = vpop.f32.mrb[0].mxu0
      %v432 = vpop.f32.mrb[0].mxu0
      %v433 = vadd.f32 0.0, %v432
      %v434 = vpop.f32.mrb[0].mxu0
      %435 = vmatprep.mubr.bf16.mxu0 0
      %436 = vmatmul.mubr.bf16.gmra.mrb[0].mxu0 %v368
      %v437 = vpop.f32.mrb[0].mxu0
      %v438 = vadd.f32 0.0, %v437
      %v439 = vpop.f32.mrb[0].mxu0
      %v440 = vpop.f32.mrb[0].mxu0
      %v441 = vadd.f32 0.0, %v440
      %v442 = vpop.f32.mrb[0].mxu0
      %443 = vmatprep.mubr.bf16.mxu0 0
      %444 = vmatmul.mubr.bf16.gmra.mrb[0].mxu0 %v371
      %v445 = vpop.f32.mrb[0].mxu0
      %v446 = vadd.f32 0.0, %v445
      %v447 = vpop.f32.mrb[0].mxu0
      %v448 = vpop.f32.mrb[0].mxu0
      %v449 = vadd.f32 0.0, %v448
      %v450 = vpop.f32.mrb[0].mxu0
      %451 = vmatprep.mubr.bf16.mxu0 0
      %452 = vmatmul.mubr.bf16.gmra.mrb[0].mxu0 %v374
      %v453 = vpop.f32.mrb[0].mxu0
      %v454 = vadd.f32 0.0, %v453
      %v455 = vpop.f32.mrb[0].mxu0
      %v456 = vpop.f32.mrb[0].mxu0
      %v457 = vadd.f32 0.0, %v456
      %v458 = vpop.f32.mrb[0].mxu0
      %459 = vmatprep.mubr.bf16.mxu0 0
      %460 = vmatmul.mubr.bf16.gmra.mrb[0].mxu0 %v377
      %v461 = vpop.f32.mrb[0].mxu0
      %v462 = vadd.f32 0.0, %v461
      %v463 = vpop.f32.mrb[0].mxu0
      %v464 = vpop.f32.mrb[0].mxu0
      %v465 = vadd.f32 0.0, %v464
      %v466 = vpop.f32.mrb[0].mxu0
      %467 = vmatprep.mubr.bf16.mxu0 0
      %468 = vmatmul.mubr.bf16.gmra.mrb[0].mxu0 %v380
      %v469 = vpop.f32.mrb[0].mxu0
      %v470 = vadd.f32 0.0, %v469
      %v471 = vpop.f32.mrb[0].mxu0
      %v472 = vpop.f32.mrb[0].mxu0
      %v473 = vadd.f32 0.0, %v472
      %v474 = vpop.f32.mrb[0].mxu0
      %475 = vmatprep.mubr.bf16.mxu0 0
      %476 = vmatmul.mubr.bf16.gmra.mrb[0].mxu0 %v383
      %v477 = vpop.f32.mrb[0].mxu0
      %v478 = vadd.f32 0.0, %v477
      %v479 = vpop.f32.mrb[0].mxu0
      %v480 = vpop.f32.mrb[0].mxu0
      %v481 = vadd.f32 0.0, %v480
      %v482 = vpop.f32.mrb[0].mxu0
      %483 = vmatprep.mubr.bf16.mxu0 0
      %484 = vmatmul.mubr.bf16.gmra.mrb[0].mxu0 %v386
      %v485 = vpop.f32.mrb[0].mxu0
      %v486 = vadd.f32 0.0, %v485
      %v487 = vpop.f32.mrb[0].mxu0
      %v488 = vpop.f32.mrb[0].mxu0
      %v489 = vadd.f32 0.0, %v488
      %v490 = vpop.f32.mrb[0].mxu0
      %491 = vmatprep.mubr.bf16.mxu0 0
      %492 = vmatmul.mubr.bf16.gmra.mrb[0].mxu0 %v389
      %v493 = vpop.f32.mrb[0].mxu0
      %v494 = vpop.f32.mrb[0].mxu0
      %v495 = vpop.f32.mrb[0].mxu0
      %v496 = vpop.f32.mrb[0].mxu0
      %497 = vdwg.mxu0
      %s498 = scalar_lea.vmem %s1, 4
      %v499 = vld [vmem:[%s498] sm:$0xf]
      %v501 = vsel %vm391, %v499, 0
      %503 = vmatprep.subr.bf16.mxu0 0
      %504 = vmatpush1.bf16.msra.mxu0 %v501
      %505 = vmatprep.subr.bf16.mxu0 0
      %506 = vmatpush1.bf16.msra.mxu0 0
      %507 = vmatprep.subr.bf16.mxu0 0
      %508 = vmatpush1.bf16.msra.mxu0 0
      %509 = vmatprep.subr.bf16.mxu0 0
      %510 = vmatpush1.bf16.msra.mxu0 0
      %511 = vmatprep.subr.bf16.mxu0 0
      %512 = vmatpush1.bf16.msra.mxu0 0
      %513 = vmatprep.subr.bf16.mxu0 0
      %514 = vmatpush1.bf16.msra.mxu0 0
      %515 = vmatprep.subr.bf16.mxu0 0
      %516 = vmatpush1.bf16.msra.mxu0 0
      %517 = vmatprep.subr.bf16.mxu0 0
      %518 = vmatpush1.bf16.msra.mxu0 0
      %519 = vmatprep.subr.bf16.mxu0 0
      %520 = vmatpush1.bf16.msra.mxu0 0
      %521 = vmatprep.subr.bf16.mxu0 0
      %522 = vmatpush1.bf16.msra.mxu0 0
      %523 = vmatprep.subr.bf16.mxu0 0
      %524 = vmatpush1.bf16.msra.mxu0 0
      %525 = vmatprep.subr.bf16.mxu0 0
      %526 = vmatpush1.bf16.msra.mxu0 0
      %527 = vmatprep.subr.bf16.mxu0 0
      %528 = vmatpush1.bf16.msra.mxu0 0
      %529 = vmatprep.subr.bf16.mxu0 0
      %530 = vmatpush1.bf16.msra.mxu0 0
      %531 = vmatprep.subr.bf16.mxu0 0
      %532 = vmatpush1.bf16.msra.mxu0 0
      %533 = vmatprep.subr.bf16.mxu0 0
      %534 = vmatpush1.bf16.msra.mxu0 0
      %535 = vmatprep.mubr.bf16.mxu0 0
      %536 = vmatmul.mubr.bf16.gmra.mrb[0].mxu0 %v365
      %v537 = vpop.f32.mrb[0].mxu0
      %v538 = vadd.f32 0.0, %v537
      %v539 = vpop.f32.mrb[0].mxu0
      %v540 = vpop.f32.mrb[0].mxu0
      %v541 = vadd.f32 0.0, %v540
      %v542 = vpop.f32.mrb[0].mxu0
      %543 = vmatprep.mubr.bf16.mxu0 0
      %544 = vmatmul.mubr.bf16.gmra.mrb[0].mxu0 %v368
      %v545 = vpop.f32.mrb[0].mxu0
      %v546 = vadd.f32 0.0, %v545
      %v547 = vpop.f32.mrb[0].mxu0
      %v548 = vpop.f32.mrb[0].mxu0
      %v549 = vadd.f32 0.0, %v548
      %v550 = vpop.f32.mrb[0].mxu0
      %551 = vmatprep.mubr.bf16.mxu0 0
      %552 = vmatmul.mubr.bf16.gmra.mrb[0].mxu0 %v371
      %v553 = vpop.f32.mrb[0].mxu0
      %v554 = vadd.f32 0.0, %v553
      %v555 = vpop.f32.mrb[0].mxu0
      %v556 = vpop.f32.mrb[0].mxu0
      %v557 = vadd.f32 0.0, %v556
      %v558 = vpop.f32.mrb[0].mxu0
      %559 = vmatprep.mubr.bf16.mxu0 0
      %560 = vmatmul.mubr.bf16.gmra.mrb[0].mxu0 %v374
      %v561 = vpop.f32.mrb[0].mxu0
      %v562 = vadd.f32 0.0, %v561
      %v563 = vpop.f32.mrb[0].mxu0
      %v564 = vpop.f32.mrb[0].mxu0
      %v565 = vadd.f32 0.0, %v564
      %v566 = vpop.f32.mrb[0].mxu0
      %567 = vmatprep.mubr.bf16.mxu0 0
      %568 = vmatmul.mubr.bf16.gmra.mrb[0].mxu0 %v377
      %v569 = vpop.f32.mrb[0].mxu0
      %v570 = vadd.f32 0.0, %v569
      %v571 = vpop.f32.mrb[0].mxu0
      %v572 = vpop.f32.mrb[0].mxu0
      %v573 = vadd.f32 0.0, %v572
      %v574 = vpop.f32.mrb[0].mxu0
      %575 = vmatprep.mubr.bf16.mxu0 0
      %576 = vmatmul.mubr.bf16.gmra.mrb[0].mxu0 %v380
      %v577 = vpop.f32.mrb[0].mxu0
      %v578 = vadd.f32 0.0, %v577
      %v579 = vpop.f32.mrb[0].mxu0
      %v580 = vpop.f32.mrb[0].mxu0
      %v581 = vadd.f32 0.0, %v580
      %v582 = vpop.f32.mrb[0].mxu0
      %583 = vmatprep.mubr.bf16.mxu0 0
      %584 = vmatmul.mubr.bf16.gmra.mrb[0].mxu0 %v383
      %v585 = vpop.f32.mrb[0].mxu0
      %v586 = vadd.f32 0.0, %v585
      %v587 = vpop.f32.mrb[0].mxu0
      %v588 = vpop.f32.mrb[0].mxu0
      %v589 = vadd.f32 0.0, %v588
      %v590 = vpop.f32.mrb[0].mxu0
      %591 = vmatprep.mubr.bf16.mxu0 0
      %592 = vmatmul.mubr.bf16.gmra.mrb[0].mxu0 %v386
      %v593 = vpop.f32.mrb[0].mxu0
      %v594 = vadd.f32 0.0, %v593
      %v595 = vpop.f32.mrb[0].mxu0
      %v596 = vpop.f32.mrb[0].mxu0
      %v597 = vadd.f32 0.0, %v596
      %v598 = vpop.f32.mrb[0].mxu0
      %599 = vmatprep.mubr.bf16.mxu0 0
      %600 = vmatmul.mubr.bf16.gmra.mrb[0].mxu0 %v389
      %v601 = vpop.f32.mrb[0].mxu0
      %v602 = vadd.f32 0.0, %v601
      %v603 = vpop.f32.mrb[0].mxu0
      %v604 = vpop.f32.mrb[0].mxu0
      %v605 = vpop.f32.mrb[0].mxu0
      %606 = vdwg.mxu0
      %vm624 = vcmask 1046528
      %v625 = vrot.slane %v538, 1
      %v626 = vrot.slane %v541, 1
      %v627 = vsel %vm624, %v625, %v626
      %v628 = vrot.slane %v546, 1
      %v629 = vsel %vm624, %v626, %v628
      %v630 = vrot.slane %v549, 1
      %v631 = vsel %vm624, %v628, %v630
      %v632 = vrot.slane %v554, 1
      %v633 = vsel %vm624, %v630, %v632
      %v634 = vrot.slane %v557, 1
      %v635 = vsel %vm624, %v632, %v634
      %v636 = vrot.slane %v562, 1
      %v637 = vsel %vm624, %v634, %v636
      %v638 = vrot.slane %v565, 1
      %v639 = vsel %vm624, %v636, %v638
      %v640 = vrot.slane %v570, 1
      %v641 = vsel %vm624, %v638, %v640
      %v642 = vrot.slane %v573, 1
      %v643 = vsel %vm624, %v640, %v642
      %v644 = vrot.slane %v578, 1
      %v645 = vsel %vm624, %v642, %v644
      %v646 = vrot.slane %v581, 1
      %v647 = vsel %vm624, %v644, %v646
      %v648 = vrot.slane %v586, 1
      %v649 = vsel %vm624, %v646, %v648
      %v650 = vrot.slane %v589, 1
      %v651 = vsel %vm624, %v648, %v650
      %v652 = vrot.slane %v594, 1
      %v653 = vsel %vm624, %v650, %v652
      %v654 = vrot.slane %v597, 1
      %v655 = vsel %vm624, %v652, %v654
      %v656 = vrot.slane %v602, 1
      %v657 = vsel %vm624, %v654, %v656
      %v674 = vadd.f32 %v430, %v627
      %v675 = vadd.f32 %v433, %v629
      %v676 = vadd.f32 %v438, %v631
      %v677 = vadd.f32 %v441, %v633
      %v678 = vadd.f32 %v446, %v635
      %v679 = vadd.f32 %v449, %v637
      %v680 = vadd.f32 %v454, %v639
      %v681 = vadd.f32 %v457, %v641
      %v682 = vadd.f32 %v462, %v643
      %v683 = vadd.f32 %v465, %v645
      %v684 = vadd.f32 %v470, %v647
      %v685 = vadd.f32 %v473, %v649
      %v686 = vadd.f32 %v478, %v651
      %v687 = vadd.f32 %v481, %v653
      %v688 = vadd.f32 %v486, %v655
      %v689 = vadd.f32 %v489, %v657
      %s690 = scalar_lea.vmem %s1, 8
      %v691 = vld [vmem:[%s690] sm:$0xf]
      %v693 = vsel %vm391, %v691, 0
      %695 = vmatprep.subr.bf16.mxu0 0
      %696 = vmatpush1.bf16.msra.mxu0 %v693
      %697 = vmatprep.subr.bf16.mxu0 0
      %698 = vmatpush1.bf16.msra.mxu0 0
      %699 = vmatprep.subr.bf16.mxu0 0
      %700 = vmatpush1.bf16.msra.mxu0 0
      %701 = vmatprep.subr.bf16.mxu0 0
      %702 = vmatpush1.bf16.msra.mxu0 0
      %703 = vmatprep.subr.bf16.mxu0 0
      %704 = vmatpush1.bf16.msra.mxu0 0
      %705 = vmatprep.subr.bf16.mxu0 0
      %706 = vmatpush1.bf16.msra.mxu0 0
      %707 = vmatprep.subr.bf16.mxu0 0
      %708 = vmatpush1.bf16.msra.mxu0 0
      %709 = vmatprep.subr.bf16.mxu0 0
      %710 = vmatpush1.bf16.msra.mxu0 0
      %711 = vmatprep.subr.bf16.mxu0 0
      %712 = vmatpush1.bf16.msra.mxu0 0
      %713 = vmatprep.subr.bf16.mxu0 0
      %714 = vmatpush1.bf16.msra.mxu0 0
      %715 = vmatprep.subr.bf16.mxu0 0
      %716 = vmatpush1.bf16.msra.mxu0 0
      %717 = vmatprep.subr.bf16.mxu0 0
      %718 = vmatpush1.bf16.msra.mxu0 0
      %719 = vmatprep.subr.bf16.mxu0 0
      %720 = vmatpush1.bf16.msra.mxu0 0
      %721 = vmatprep.subr.bf16.mxu0 0
      %722 = vmatpush1.bf16.msra.mxu0 0
      %723 = vmatprep.subr.bf16.mxu0 0
      %724 = vmatpush1.bf16.msra.mxu0 0
      %725 = vmatprep.subr.bf16.mxu0 0
      %726 = vmatpush1.bf16.msra.mxu0 0
      %727 = vmatprep.mubr.bf16.mxu0 0
      %728 = vmatmul.mubr.bf16.gmra.mrb[0].mxu0 %v365
      %v729 = vpop.f32.mrb[0].mxu0
      %v730 = vadd.f32 0.0, %v729
      %v731 = vpop.f32.mrb[0].mxu0
      %v732 = vpop.f32.mrb[0].mxu0
      %v733 = vadd.f32 0.0, %v732
      %v734 = vpop.f32.mrb[0].mxu0
      %735 = vmatprep.mubr.bf16.mxu0 0
      %736 = vmatmul.mubr.bf16.gmra.mrb[0].mxu0 %v368
      %v737 = vpop.f32.mrb[0].mxu0
      %v738 = vadd.f32 0.0, %v737
      %v739 = vpop.f32.mrb[0].mxu0
      %v740 = vpop.f32.mrb[0].mxu0
      %v741 = vadd.f32 0.0, %v740
      %v742 = vpop.f32.mrb[0].mxu0
      %743 = vmatprep.mubr.bf16.mxu0 0
      %744 = vmatmul.mubr.bf16.gmra.mrb[0].mxu0 %v371
      %v745 = vpop.f32.mrb[0].mxu0
      %v746 = vadd.f32 0.0, %v745
      %v747 = vpop.f32.mrb[0].mxu0
      %v748 = vpop.f32.mrb[0].mxu0
      %v749 = vadd.f32 0.0, %v748
      %v750 = vpop.f32.mrb[0].mxu0
      %751 = vmatprep.mubr.bf16.mxu0 0
      %752 = vmatmul.mubr.bf16.gmra.mrb[0].mxu0 %v374
      %v753 = vpop.f32.mrb[0].mxu0
      %v754 = vadd.f32 0.0, %v753
      %v755 = vpop.f32.mrb[0].mxu0
      %v756 = vpop.f32.mrb[0].mxu0
      %v757 = vadd.f32 0.0, %v756
      %v758 = vpop.f32.mrb[0].mxu0
      %759 = vmatprep.mubr.bf16.mxu0 0
      %760 = vmatmul.mubr.bf16.gmra.mrb[0].mxu0 %v377
      %v761 = vpop.f32.mrb[0].mxu0
      %v762 = vadd.f32 0.0, %v761
      %v763 = vpop.f32.mrb[0].mxu0
      %v764 = vpop.f32.mrb[0].mxu0
      %v765 = vadd.f32 0.0, %v764
      %v766 = vpop.f32.mrb[0].mxu0
      %767 = vmatprep.mubr.bf16.mxu0 0
      %768 = vmatmul.mubr.bf16.gmra.mrb[0].mxu0 %v380
      %v769 = vpop.f32.mrb[0].mxu0
      %v770 = vadd.f32 0.0, %v769
      %v771 = vpop.f32.mrb[0].mxu0
      %v772 = vpop.f32.mrb[0].mxu0
      %v773 = vadd.f32 0.0, %v772
      %v774 = vpop.f32.mrb[0].mxu0
      %775 = vmatprep.mubr.bf16.mxu0 0
      %776 = vmatmul.mubr.bf16.gmra.mrb[0].mxu0 %v383
      %v777 = vpop.f32.mrb[0].mxu0
      %v778 = vadd.f32 0.0, %v777
      %v779 = vpop.f32.mrb[0].mxu0
      %v780 = vpop.f32.mrb[0].mxu0
      %v781 = vadd.f32 0.0, %v780
      %v782 = vpop.f32.mrb[0].mxu0
      %783 = vmatprep.mubr.bf16.mxu0 0
      %784 = vmatmul.mubr.bf16.gmra.mrb[0].mxu0 %v386
      %v785 = vpop.f32.mrb[0].mxu0
      %v786 = vadd.f32 0.0, %v785
      %v787 = vpop.f32.mrb[0].mxu0
      %v788 = vpop.f32.mrb[0].mxu0
      %v789 = vadd.f32 0.0, %v788
      %v790 = vpop.f32.mrb[0].mxu0
      %791 = vmatprep.mubr.bf16.mxu0 0
      %792 = vmatmul.mubr.bf16.gmra.mrb[0].mxu0 %v389
      %v793 = vpop.f32.mrb[0].mxu0
      %v794 = vadd.f32 0.0, %v793
      %v795 = vpop.f32.mrb[0].mxu0
      %v796 = vpop.f32.mrb[0].mxu0
      %v797 = vpop.f32.mrb[0].mxu0
      %798 = vdwg.mxu0
      %vm816 = vcmask 1045504
      %v817 = vrot.slane %v730, 2
      %v818 = vrot.slane %v733, 2
      %v819 = vsel %vm816, %v817, %v818
      %v820 = vrot.slane %v738, 2
      %v821 = vsel %vm816, %v818, %v820
      %v822 = vrot.slane %v741, 2
      %v823 = vsel %vm816, %v820, %v822
      %v824 = vrot.slane %v746, 2
      %v825 = vsel %vm816, %v822, %v824
      %v826 = vrot.slane %v749, 2
      %v827 = vsel %vm816, %v824, %v826
      %v828 = vrot.slane %v754, 2
      %v829 = vsel %vm816, %v826, %v828
      %v830 = vrot.slane %v757, 2
      %v831 = vsel %vm816, %v828, %v830
      %v832 = vrot.slane %v762, 2
      %v833 = vsel %vm816, %v830, %v832
      %v834 = vrot.slane %v765, 2
      %v835 = vsel %vm816, %v832, %v834
      %v836 = vrot.slane %v770, 2
      %v837 = vsel %vm816, %v834, %v836
      %v838 = vrot.slane %v773, 2
      %v839 = vsel %vm816, %v836, %v838
      %v840 = vrot.slane %v778, 2
      %v841 = vsel %vm816, %v838, %v840
      %v842 = vrot.slane %v781, 2
      %v843 = vsel %vm816, %v840, %v842
      %v844 = vrot.slane %v786, 2
      %v845 = vsel %vm816, %v842, %v844
      %v846 = vrot.slane %v789, 2
      %v847 = vsel %vm816, %v844, %v846
      %v848 = vrot.slane %v794, 2
      %v849 = vsel %vm816, %v846, %v848
      %v866 = vadd.f32 %v674, %v819
      %v867 = vadd.f32 %v675, %v821
      %v868 = vadd.f32 %v676, %v823
      %v869 = vadd.f32 %v677, %v825
      %v870 = vadd.f32 %v678, %v827
      %v871 = vadd.f32 %v679, %v829
      %v872 = vadd.f32 %v680, %v831
      %v873 = vadd.f32 %v681, %v833
      %v874 = vadd.f32 %v682, %v835
      %v875 = vadd.f32 %v683, %v837
      %v876 = vadd.f32 %v684, %v839
      %v877 = vadd.f32 %v685, %v841
      %v878 = vadd.f32 %v686, %v843
      %v879 = vadd.f32 %v687, %v845
      %v880 = vadd.f32 %v688, %v847
      %v881 = vadd.f32 %v689, %v849
      %v882 = vld [vmem:[%s277 + $0x8] sm:$0xf]
      %v883 = vld [vmem:[%s277 + $0xc] sm:$0xf]
      %v884 = vld [vmem:[%s277 + $0x10] sm:$0xf]
      %v885 = vld [vmem:[%s277 + $0x14] sm:$0xf]
      %v886 = vld [vmem:[%s277 + $0x18] sm:$0xf]
      %v887 = vld [vmem:[%s277 + $0x1c] sm:$0xf]
      %v888 = vld [vmem:[%s277 + $0x20] sm:$0xf]
      %v889 = vld [vmem:[%s277 + $0x24] sm:$0xf]
      %v890 = vld [vmem:[%s277 + $0x28] sm:$0xf]
      %v891 = vld [vmem:[%s277 + $0x2c] sm:$0xf]
      %v892 = vld [vmem:[%s277 + $0x30] sm:$0xf]
      %v893 = vld [vmem:[%s277 + $0x34] sm:$0xf]
      %v894 = vld [vmem:[%s277 + $0x38] sm:$0xf]
      %v895 = vld [vmem:[%s277 + $0x3c] sm:$0xf]
      %v896 = vld [vmem:[%s277 + $0x40] sm:$0xf]
      %v897 = vld [vmem:[%s277 + $0x44] sm:$0xf]
      %v898 = vld [vmem:[%s277 + $0x48] sm:$0xf]
      %v899 = vld [vmem:[%s277 + $0x4c] sm:$0xf]
      %s900 = scalar_lea.vmem %s1, 12
      %v901 = vld [vmem:[%s900] sm:$0xf]
      %v920 = vunpack.c.l.b16 %v882
      %v921 = vunpack.c.l.b16 %v883
      %v922 = vunpack.c.l.b16 %v884
      %v923 = vunpack.c.l.b16 %v885
      %v924 = vunpack.c.l.b16 %v886
      %v925 = vunpack.c.l.b16 %v887
      %v926 = vunpack.c.l.b16 %v888
      %v927 = vunpack.c.l.b16 %v889
      %v928 = vunpack.c.l.b16 %v890
      %v929 = vunpack.c.l.b16 %v891
      %v930 = vunpack.c.l.b16 %v892
      %v931 = vunpack.c.l.b16 %v893
      %v932 = vunpack.c.l.b16 %v894
      %v933 = vunpack.c.l.b16 %v895
      %v934 = vunpack.c.l.b16 %v896
      %v935 = vunpack.c.l.b16 %v897
      %v936 = vunpack.c.l.b16 %v898
      %v937 = vunpack.c.l.b16 %v899
      %v938 = vpack.c.b16 %v921, %v920
      %v939 = vpack.c.b16 %v923, %v922
      %v940 = vpack.c.b16 %v925, %v924
      %v941 = vpack.c.b16 %v927, %v926
      %v942 = vpack.c.b16 %v929, %v928
      %v943 = vpack.c.b16 %v931, %v930
      %v944 = vpack.c.b16 %v933, %v932
      %v945 = vpack.c.b16 %v935, %v934
      %v946 = vpack.c.b16 %v937, %v936
      %v948 = vsel %vm363, %v938, 0
      %v951 = vsel %vm363, %v939, 0
      %v954 = vsel %vm363, %v940, 0
      %v957 = vsel %vm363, %v941, 0
      %v960 = vsel %vm363, %v942, 0
      %v963 = vsel %vm363, %v943, 0
      %v966 = vsel %vm363, %v944, 0
      %v969 = vsel %vm363, %v945, 0
      %v972 = vsel %vm363, %v946, 0
      %v975 = vsel %vm391, %v901, 0
      %977 = vmatprep.subr.bf16.mxu0 0
      %978 = vmatpush1.bf16.msra.mxu0 %v975
      %979 = vmatprep.subr.bf16.mxu0 0
      %980 = vmatpush1.bf16.msra.mxu0 0
      %981 = vmatprep.subr.bf16.mxu0 0
      %982 = vmatpush1.bf16.msra.mxu0 0
      %983 = vmatprep.subr.bf16.mxu0 0
      %984 = vmatpush1.bf16.msra.mxu0 0
      %985 = vmatprep.subr.bf16.mxu0 0
      %986 = vmatpush1.bf16.msra.mxu0 0
      %987 = vmatprep.subr.bf16.mxu0 0
      %988 = vmatpush1.bf16.msra.mxu0 0
      %989 = vmatprep.subr.bf16.mxu0 0
      %990 = vmatpush1.bf16.msra.mxu0 0
      %991 = vmatprep.subr.bf16.mxu0 0
      %992 = vmatpush1.bf16.msra.mxu0 0
      %993 = vmatprep.subr.bf16.mxu0 0
      %994 = vmatpush1.bf16.msra.mxu0 0
      %995 = vmatprep.subr.bf16.mxu0 0
      %996 = vmatpush1.bf16.msra.mxu0 0
      %997 = vmatprep.subr.bf16.mxu0 0
      %998 = vmatpush1.bf16.msra.mxu0 0
      %999 = vmatprep.subr.bf16.mxu0 0
      %1000 = vmatpush1.bf16.msra.mxu0 0
      %1001 = vmatprep.subr.bf16.mxu0 0
      %1002 = vmatpush1.bf16.msra.mxu0 0
      %1003 = vmatprep.subr.bf16.mxu0 0
      %1004 = vmatpush1.bf16.msra.mxu0 0
      %1005 = vmatprep.subr.bf16.mxu0 0
      %1006 = vmatpush1.bf16.msra.mxu0 0
      %1007 = vmatprep.subr.bf16.mxu0 0
      %1008 = vmatpush1.bf16.msra.mxu0 0
      %1009 = vmatprep.mubr.bf16.mxu0 0
      %1010 = vmatmul.mubr.bf16.gmra.mrb[0].mxu0 %v948
      %v1011 = vpop.f32.mrb[0].mxu0
      %v1012 = vadd.f32 0.0, %v1011
      %v1013 = vpop.f32.mrb[0].mxu0
      %v1014 = vpop.f32.mrb[0].mxu0
      %v1015 = vadd.f32 0.0, %v1014
      %v1016 = vpop.f32.mrb[0].mxu0
      %1017 = vmatprep.mubr.bf16.mxu0 0
      %1018 = vmatmul.mubr.bf16.gmra.mrb[0].mxu0 %v951
      %v1019 = vpop.f32.mrb[0].mxu0
      %v1020 = vadd.f32 0.0, %v1019
      %v1021 = vpop.f32.mrb[0].mxu0
      %v1022 = vpop.f32.mrb[0].mxu0
      %v1023 = vadd.f32 0.0, %v1022
      %v1024 = vpop.f32.mrb[0].mxu0
      %1025 = vmatprep.mubr.bf16.mxu0 0
      %1026 = vmatmul.mubr.bf16.gmra.mrb[0].mxu0 %v954
      %v1027 = vpop.f32.mrb[0].mxu0
      %v1028 = vadd.f32 0.0, %v1027
      %v1029 = vpop.f32.mrb[0].mxu0
      %v1030 = vpop.f32.mrb[0].mxu0
      %v1031 = vadd.f32 0.0, %v1030
      %v1032 = vpop.f32.mrb[0].mxu0
      %1033 = vmatprep.mubr.bf16.mxu0 0
      %1034 = vmatmul.mubr.bf16.gmra.mrb[0].mxu0 %v957
      %v1035 = vpop.f32.mrb[0].mxu0
      %v1036 = vadd.f32 0.0, %v1035
      %v1037 = vpop.f32.mrb[0].mxu0
      %v1038 = vpop.f32.mrb[0].mxu0
      %v1039 = vadd.f32 0.0, %v1038
      %v1040 = vpop.f32.mrb[0].mxu0
      %1041 = vmatprep.mubr.bf16.mxu0 0
      %1042 = vmatmul.mubr.bf16.gmra.mrb[0].mxu0 %v960
      %v1043 = vpop.f32.mrb[0].mxu0
      %v1044 = vadd.f32 0.0, %v1043
      %v1045 = vpop.f32.mrb[0].mxu0
      %v1046 = vpop.f32.mrb[0].mxu0
      %v1047 = vadd.f32 0.0, %v1046
      %v1048 = vpop.f32.mrb[0].mxu0
      %1049 = vmatprep.mubr.bf16.mxu0 0
      %1050 = vmatmul.mubr.bf16.gmra.mrb[0].mxu0 %v963
      %v1051 = vpop.f32.mrb[0].mxu0
      %v1052 = vadd.f32 0.0, %v1051
      %v1053 = vpop.f32.mrb[0].mxu0
      %v1054 = vpop.f32.mrb[0].mxu0
      %v1055 = vadd.f32 0.0, %v1054
      %v1056 = vpop.f32.mrb[0].mxu0
      %1057 = vmatprep.mubr.bf16.mxu0 0
      %1058 = vmatmul.mubr.bf16.gmra.mrb[0].mxu0 %v966
      %v1059 = vpop.f32.mrb[0].mxu0
      %v1060 = vadd.f32 0.0, %v1059
      %v1061 = vpop.f32.mrb[0].mxu0
      %v1062 = vpop.f32.mrb[0].mxu0
      %v1063 = vadd.f32 0.0, %v1062
      %v1064 = vpop.f32.mrb[0].mxu0
      %1065 = vmatprep.mubr.bf16.mxu0 0
      %1066 = vmatmul.mubr.bf16.gmra.mrb[0].mxu0 %v969
      %v1067 = vpop.f32.mrb[0].mxu0
      %v1068 = vadd.f32 0.0, %v1067
      %v1069 = vpop.f32.mrb[0].mxu0
      %v1070 = vpop.f32.mrb[0].mxu0
      %v1071 = vadd.f32 0.0, %v1070
      %v1072 = vpop.f32.mrb[0].mxu0
      %1073 = vmatprep.mubr.bf16.mxu0 0
      %1074 = vmatmul.mubr.bf16.gmra.mrb[0].mxu0 %v972
      %v1075 = vpop.f32.mrb[0].mxu0
      %v1076 = vpop.f32.mrb[0].mxu0
      %v1077 = vpop.f32.mrb[0].mxu0
      %v1078 = vpop.f32.mrb[0].mxu0
      %1079 = vdwg.mxu0
      %v1080 = vadd.f32 %v866, %v1012
      %v1081 = vadd.f32 %v867, %v1015
      %v1082 = vadd.f32 %v868, %v1020
      %v1083 = vadd.f32 %v869, %v1023
      %v1084 = vadd.f32 %v870, %v1028
      %v1085 = vadd.f32 %v871, %v1031
      %v1086 = vadd.f32 %v872, %v1036
      %v1087 = vadd.f32 %v873, %v1039
      %v1088 = vadd.f32 %v874, %v1044
      %v1089 = vadd.f32 %v875, %v1047
      %v1090 = vadd.f32 %v876, %v1052
      %v1091 = vadd.f32 %v877, %v1055
      %v1092 = vadd.f32 %v878, %v1060
      %v1093 = vadd.f32 %v879, %v1063
      %v1094 = vadd.f32 %v880, %v1068
      %v1095 = vadd.f32 %v881, %v1071
      %s1096 = scalar_lea.vmem %s1, 16
      %v1097 = vld [vmem:[%s1096] sm:$0xf]
      %v1099 = vsel %vm391, %v1097, 0
      %1101 = vmatprep.subr.bf16.mxu0 0
      %1102 = vmatpush1.bf16.msra.mxu0 %v1099
      %1103 = vmatprep.subr.bf16.mxu0 0
      %1104 = vmatpush1.bf16.msra.mxu0 0
      %1105 = vmatprep.subr.bf16.mxu0 0
      %1106 = vmatpush1.bf16.msra.mxu0 0
      %1107 = vmatprep.subr.bf16.mxu0 0
      %1108 = vmatpush1.bf16.msra.mxu0 0
      %1109 = vmatprep.subr.bf16.mxu0 0
      %1110 = vmatpush1.bf16.msra.mxu0 0
      %1111 = vmatprep.subr.bf16.mxu0 0
      %1112 = vmatpush1.bf16.msra.mxu0 0
      %1113 = vmatprep.subr.bf16.mxu0 0
      %1114 = vmatpush1.bf16.msra.mxu0 0
      %1115 = vmatprep.subr.bf16.mxu0 0
      %1116 = vmatpush1.bf16.msra.mxu0 0
      %1117 = vmatprep.subr.bf16.mxu0 0
      %1118 = vmatpush1.bf16.msra.mxu0 0
      %1119 = vmatprep.subr.bf16.mxu0 0
      %1120 = vmatpush1.bf16.msra.mxu0 0
      %1121 = vmatprep.subr.bf16.mxu0 0
      %1122 = vmatpush1.bf16.msra.mxu0 0
      %1123 = vmatprep.subr.bf16.mxu0 0
      %1124 = vmatpush1.bf16.msra.mxu0 0
      %1125 = vmatprep.subr.bf16.mxu0 0
      %1126 = vmatpush1.bf16.msra.mxu0 0
      %1127 = vmatprep.subr.bf16.mxu0 0
      %1128 = vmatpush1.bf16.msra.mxu0 0
      %1129 = vmatprep.subr.bf16.mxu0 0
      %1130 = vmatpush1.bf16.msra.mxu0 0
      %1131 = vmatprep.subr.bf16.mxu0 0
      %1132 = vmatpush1.bf16.msra.mxu0 0
      %1133 = vmatprep.mubr.bf16.mxu0 0
      %1134 = vmatmul.mubr.bf16.gmra.mrb[0].mxu0 %v948
      %v1135 = vpop.f32.mrb[0].mxu0
      %v1136 = vadd.f32 0.0, %v1135
      %v1137 = vpop.f32.mrb[0].mxu0
      %v1138 = vpop.f32.mrb[0].mxu0
      %v1139 = vadd.f32 0.0, %v1138
      %v1140 = vpop.f32.mrb[0].mxu0
      %1141 = vmatprep.mubr.bf16.mxu0 0
      %1142 = vmatmul.mubr.bf16.gmra.mrb[0].mxu0 %v951
      %v1143 = vpop.f32.mrb[0].mxu0
      %v1144 = vadd.f32 0.0, %v1143
      %v1145 = vpop.f32.mrb[0].mxu0
      %v1146 = vpop.f32.mrb[0].mxu0
      %v1147 = vadd.f32 0.0, %v1146
      %v1148 = vpop.f32.mrb[0].mxu0
      %1149 = vmatprep.mubr.bf16.mxu0 0
      %1150 = vmatmul.mubr.bf16.gmra.mrb[0].mxu0 %v954
      %v1151 = vpop.f32.mrb[0].mxu0
      %v1152 = vadd.f32 0.0, %v1151
      %v1153 = vpop.f32.mrb[0].mxu0
      %v1154 = vpop.f32.mrb[0].mxu0
      %v1155 = vadd.f32 0.0, %v1154
      %v1156 = vpop.f32.mrb[0].mxu0
      %1157 = vmatprep.mubr.bf16.mxu0 0
      %1158 = vmatmul.mubr.bf16.gmra.mrb[0].mxu0 %v957
      %v1159 = vpop.f32.mrb[0].mxu0
      %v1160 = vadd.f32 0.0, %v1159
      %v1161 = vpop.f32.mrb[0].mxu0
      %v1162 = vpop.f32.mrb[0].mxu0
      %v1163 = vadd.f32 0.0, %v1162
      %v1164 = vpop.f32.mrb[0].mxu0
      %1165 = vmatprep.mubr.bf16.mxu0 0
      %1166 = vmatmul.mubr.bf16.gmra.mrb[0].mxu0 %v960
      %v1167 = vpop.f32.mrb[0].mxu0
      %v1168 = vadd.f32 0.0, %v1167
      %v1169 = vpop.f32.mrb[0].mxu0
      %v1170 = vpop.f32.mrb[0].mxu0
      %v1171 = vadd.f32 0.0, %v1170
      %v1172 = vpop.f32.mrb[0].mxu0
      %1173 = vmatprep.mubr.bf16.mxu0 0
      %1174 = vmatmul.mubr.bf16.gmra.mrb[0].mxu0 %v963
      %v1175 = vpop.f32.mrb[0].mxu0
      %v1176 = vadd.f32 0.0, %v1175
      %v1177 = vpop.f32.mrb[0].mxu0
      %v1178 = vpop.f32.mrb[0].mxu0
      %v1179 = vadd.f32 0.0, %v1178
      %v1180 = vpop.f32.mrb[0].mxu0
      %1181 = vmatprep.mubr.bf16.mxu0 0
      %1182 = vmatmul.mubr.bf16.gmra.mrb[0].mxu0 %v966
      %v1183 = vpop.f32.mrb[0].mxu0
      %v1184 = vadd.f32 0.0, %v1183
      %v1185 = vpop.f32.mrb[0].mxu0
      %v1186 = vpop.f32.mrb[0].mxu0
      %v1187 = vadd.f32 0.0, %v1186
      %v1188 = vpop.f32.mrb[0].mxu0
      %1189 = vmatprep.mubr.bf16.mxu0 0
      %1190 = vmatmul.mubr.bf16.gmra.mrb[0].mxu0 %v969
      %v1191 = vpop.f32.mrb[0].mxu0
      %v1192 = vadd.f32 0.0, %v1191
      %v1193 = vpop.f32.mrb[0].mxu0
      %v1194 = vpop.f32.mrb[0].mxu0
      %v1195 = vadd.f32 0.0, %v1194
      %v1196 = vpop.f32.mrb[0].mxu0
      %1197 = vmatprep.mubr.bf16.mxu0 0
      %1198 = vmatmul.mubr.bf16.gmra.mrb[0].mxu0 %v972
      %v1199 = vpop.f32.mrb[0].mxu0
      %v1200 = vadd.f32 0.0, %v1199
      %v1201 = vpop.f32.mrb[0].mxu0
      %v1202 = vpop.f32.mrb[0].mxu0
      %v1203 = vpop.f32.mrb[0].mxu0
      %1204 = vdwg.mxu0
      %v1222 = vrot.slane %v1136, 1
      %v1223 = vrot.slane %v1139, 1
      %v1224 = vsel %vm624, %v1222, %v1223
      %v1225 = vrot.slane %v1144, 1
      %v1226 = vsel %vm624, %v1223, %v1225
      %v1227 = vrot.slane %v1147, 1
      %v1228 = vsel %vm624, %v1225, %v1227
      %v1229 = vrot.slane %v1152, 1
      %v1230 = vsel %vm624, %v1227, %v1229
      %v1231 = vrot.slane %v1155, 1
      %v1232 = vsel %vm624, %v1229, %v1231
      %v1233 = vrot.slane %v1160, 1
      %v1234 = vsel %vm624, %v1231, %v1233
      %v1235 = vrot.slane %v1163, 1
      %v1236 = vsel %vm624, %v1233, %v1235
      %v1237 = vrot.slane %v1168, 1
      %v1238 = vsel %vm624, %v1235, %v1237
      %v1239 = vrot.slane %v1171, 1
      %v1240 = vsel %vm624, %v1237, %v1239
      %v1241 = vrot.slane %v1176, 1
      %v1242 = vsel %vm624, %v1239, %v1241
      %v1243 = vrot.slane %v1179, 1
      %v1244 = vsel %vm624, %v1241, %v1243
      %v1245 = vrot.slane %v1184, 1
      %v1246 = vsel %vm624, %v1243, %v1245
      %v1247 = vrot.slane %v1187, 1
      %v1248 = vsel %vm624, %v1245, %v1247
      %v1249 = vrot.slane %v1192, 1
      %v1250 = vsel %vm624, %v1247, %v1249
      %v1251 = vrot.slane %v1195, 1
      %v1252 = vsel %vm624, %v1249, %v1251
      %v1253 = vrot.slane %v1200, 1
      %v1254 = vsel %vm624, %v1251, %v1253
      %v1271 = vadd.f32 %v1080, %v1224
      %v1272 = vadd.f32 %v1081, %v1226
      %v1273 = vadd.f32 %v1082, %v1228
      %v1274 = vadd.f32 %v1083, %v1230
      %v1275 = vadd.f32 %v1084, %v1232
      %v1276 = vadd.f32 %v1085, %v1234
      %v1277 = vadd.f32 %v1086, %v1236
      %v1278 = vadd.f32 %v1087, %v1238
      %v1279 = vadd.f32 %v1088, %v1240
      %v1280 = vadd.f32 %v1089, %v1242
      %v1281 = vadd.f32 %v1090, %v1244
      %v1282 = vadd.f32 %v1091, %v1246
      %v1283 = vadd.f32 %v1092, %v1248
      %v1284 = vadd.f32 %v1093, %v1250
      %v1285 = vadd.f32 %v1094, %v1252
      %v1286 = vadd.f32 %v1095, %v1254
      %s1287 = scalar_lea.vmem %s1, 20
      %v1288 = vld [vmem:[%s1287] sm:$0xf]
      %v1290 = vsel %vm391, %v1288, 0
      %1292 = vmatprep.subr.bf16.mxu0 0
      %1293 = vmatpush1.bf16.msra.mxu0 %v1290
      %1294 = vmatprep.subr.bf16.mxu0 0
      %1295 = vmatpush1.bf16.msra.mxu0 0
      %1296 = vmatprep.subr.bf16.mxu0 0
      %1297 = vmatpush1.bf16.msra.mxu0 0
      %1298 = vmatprep.subr.bf16.mxu0 0
      %1299 = vmatpush1.bf16.msra.mxu0 0
      %1300 = vmatprep.subr.bf16.mxu0 0
      %1301 = vmatpush1.bf16.msra.mxu0 0
      %1302 = vmatprep.subr.bf16.mxu0 0
      %1303 = vmatpush1.bf16.msra.mxu0 0
      %1304 = vmatprep.subr.bf16.mxu0 0
      %1305 = vmatpush1.bf16.msra.mxu0 0
      %1306 = vmatprep.subr.bf16.mxu0 0
      %1307 = vmatpush1.bf16.msra.mxu0 0
      %1308 = vmatprep.subr.bf16.mxu0 0
      %1309 = vmatpush1.bf16.msra.mxu0 0
      %1310 = vmatprep.subr.bf16.mxu0 0
      %1311 = vmatpush1.bf16.msra.mxu0 0
      %1312 = vmatprep.subr.bf16.mxu0 0
      %1313 = vmatpush1.bf16.msra.mxu0 0
      %1314 = vmatprep.subr.bf16.mxu0 0
      %1315 = vmatpush1.bf16.msra.mxu0 0
      %1316 = vmatprep.subr.bf16.mxu0 0
      %1317 = vmatpush1.bf16.msra.mxu0 0
      %1318 = vmatprep.subr.bf16.mxu0 0
      %1319 = vmatpush1.bf16.msra.mxu0 0
      %1320 = vmatprep.subr.bf16.mxu0 0
      %1321 = vmatpush1.bf16.msra.mxu0 0
      %1322 = vmatprep.subr.bf16.mxu0 0
      %1323 = vmatpush1.bf16.msra.mxu0 0
      %1324 = vmatprep.mubr.bf16.mxu0 0
      %1325 = vmatmul.mubr.bf16.gmra.mrb[0].mxu0 %v948
      %v1326 = vpop.f32.mrb[0].mxu0
      %v1327 = vadd.f32 0.0, %v1326
      %v1328 = vpop.f32.mrb[0].mxu0
      %v1329 = vpop.f32.mrb[0].mxu0
      %v1330 = vadd.f32 0.0, %v1329
      %v1331 = vpop.f32.mrb[0].mxu0
      %1332 = vmatprep.mubr.bf16.mxu0 0
      %1333 = vmatmul.mubr.bf16.gmra.mrb[0].mxu0 %v951
      %v1334 = vpop.f32.mrb[0].mxu0
      %v1335 = vadd.f32 0.0, %v1334
      %v1336 = vpop.f32.mrb[0].mxu0
      %v1337 = vpop.f32.mrb[0].mxu0
      %v1338 = vadd.f32 0.0, %v1337
      %v1339 = vpop.f32.mrb[0].mxu0
      %1340 = vmatprep.mubr.bf16.mxu0 0
      %1341 = vmatmul.mubr.bf16.gmra.mrb[0].mxu0 %v954
      %v1342 = vpop.f32.mrb[0].mxu0
      %v1343 = vadd.f32 0.0, %v1342
      %v1344 = vpop.f32.mrb[0].mxu0
      %v1345 = vpop.f32.mrb[0].mxu0
      %v1346 = vadd.f32 0.0, %v1345
      %v1347 = vpop.f32.mrb[0].mxu0
      %1348 = vmatprep.mubr.bf16.mxu0 0
      %1349 = vmatmul.mubr.bf16.gmra.mrb[0].mxu0 %v957
      %v1350 = vpop.f32.mrb[0].mxu0
      %v1351 = vadd.f32 0.0, %v1350
      %v1352 = vpop.f32.mrb[0].mxu0
      %v1353 = vpop.f32.mrb[0].mxu0
      %v1354 = vadd.f32 0.0, %v1353
      %v1355 = vpop.f32.mrb[0].mxu0
      %1356 = vmatprep.mubr.bf16.mxu0 0
      %1357 = vmatmul.mubr.bf16.gmra.mrb[0].mxu0 %v960
      %v1358 = vpop.f32.mrb[0].mxu0
      %v1359 = vadd.f32 0.0, %v1358
      %v1360 = vpop.f32.mrb[0].mxu0
      %v1361 = vpop.f32.mrb[0].mxu0
      %v1362 = vadd.f32 0.0, %v1361
      %v1363 = vpop.f32.mrb[0].mxu0
      %1364 = vmatprep.mubr.bf16.mxu0 0
      %1365 = vmatmul.mubr.bf16.gmra.mrb[0].mxu0 %v963
      %v1366 = vpop.f32.mrb[0].mxu0
      %v1367 = vadd.f32 0.0, %v1366
      %v1368 = vpop.f32.mrb[0].mxu0
      %v1369 = vpop.f32.mrb[0].mxu0
      %v1370 = vadd.f32 0.0, %v1369
      %v1371 = vpop.f32.mrb[0].mxu0
      %1372 = vmatprep.mubr.bf16.mxu0 0
      %1373 = vmatmul.mubr.bf16.gmra.mrb[0].mxu0 %v966
      %v1374 = vpop.f32.mrb[0].mxu0
      %v1375 = vadd.f32 0.0, %v1374
      %v1376 = vpop.f32.mrb[0].mxu0
      %v1377 = vpop.f32.mrb[0].mxu0
      %v1378 = vadd.f32 0.0, %v1377
      %v1379 = vpop.f32.mrb[0].mxu0
      %1380 = vmatprep.mubr.bf16.mxu0 0
      %1381 = vmatmul.mubr.bf16.gmra.mrb[0].mxu0 %v969
      %v1382 = vpop.f32.mrb[0].mxu0
      %v1383 = vadd.f32 0.0, %v1382
      %v1384 = vpop.f32.mrb[0].mxu0
      %v1385 = vpop.f32.mrb[0].mxu0
      %v1386 = vadd.f32 0.0, %v1385
      %v1387 = vpop.f32.mrb[0].mxu0
      %1388 = vmatprep.mubr.bf16.mxu0 0
      %1389 = vmatmul.mubr.bf16.gmra.mrb[0].mxu0 %v972
      %v1390 = vpop.f32.mrb[0].mxu0
      %v1391 = vadd.f32 0.0, %v1390
      %v1392 = vpop.f32.mrb[0].mxu0
      %v1393 = vpop.f32.mrb[0].mxu0
      %v1394 = vpop.f32.mrb[0].mxu0
      %1395 = vdwg.mxu0
      %v1413 = vrot.slane %v1327, 2
      %v1414 = vrot.slane %v1330, 2
      %v1415 = vsel %vm816, %v1413, %v1414
      %v1416 = vrot.slane %v1335, 2
      %v1417 = vsel %vm816, %v1414, %v1416
      %v1418 = vrot.slane %v1338, 2
      %v1419 = vsel %vm816, %v1416, %v1418
      %v1420 = vrot.slane %v1343, 2
      %v1421 = vsel %vm816, %v1418, %v1420
      %v1422 = vrot.slane %v1346, 2
      %v1423 = vsel %vm816, %v1420, %v1422
      %v1424 = vrot.slane %v1351, 2
      %v1425 = vsel %vm816, %v1422, %v1424
      %v1426 = vrot.slane %v1354, 2
      %v1427 = vsel %vm816, %v1424, %v1426
      %v1428 = vrot.slane %v1359, 2
      %v1429 = vsel %vm816, %v1426, %v1428
      %v1430 = vrot.slane %v1362, 2
      %v1431 = vsel %vm816, %v1428, %v1430
      %v1432 = vrot.slane %v1367, 2
      %v1433 = vsel %vm816, %v1430, %v1432
      %v1434 = vrot.slane %v1370, 2
      %v1435 = vsel %vm816, %v1432, %v1434
      %v1436 = vrot.slane %v1375, 2
      %v1437 = vsel %vm816, %v1434, %v1436
      %v1438 = vrot.slane %v1378, 2
      %v1439 = vsel %vm816, %v1436, %v1438
      %v1440 = vrot.slane %v1383, 2
      %v1441 = vsel %vm816, %v1438, %v1440
      %v1442 = vrot.slane %v1386, 2
      %v1443 = vsel %vm816, %v1440, %v1442
      %v1444 = vrot.slane %v1391, 2
      %v1445 = vsel %vm816, %v1442, %v1444
      %v1462 = vadd.f32 %v1271, %v1415
      %v1463 = vadd.f32 %v1272, %v1417
      %v1464 = vadd.f32 %v1273, %v1419
      %v1465 = vadd.f32 %v1274, %v1421
      %v1466 = vadd.f32 %v1275, %v1423
      %v1467 = vadd.f32 %v1276, %v1425
      %v1468 = vadd.f32 %v1277, %v1427
      %v1469 = vadd.f32 %v1278, %v1429
      %v1470 = vadd.f32 %v1279, %v1431
      %v1471 = vadd.f32 %v1280, %v1433
      %v1472 = vadd.f32 %v1281, %v1435
      %v1473 = vadd.f32 %v1282, %v1437
      %v1474 = vadd.f32 %v1283, %v1439
      %v1475 = vadd.f32 %v1284, %v1441
      %v1476 = vadd.f32 %v1285, %v1443
      %v1477 = vadd.f32 %v1286, %v1445
      %v1478 = vld [vmem:[%s277 + $0x10] sm:$0xf]
      %v1479 = vld [vmem:[%s277 + $0x14] sm:$0xf]
      %v1480 = vld [vmem:[%s277 + $0x18] sm:$0xf]
      %v1481 = vld [vmem:[%s277 + $0x1c] sm:$0xf]
      %v1482 = vld [vmem:[%s277 + $0x20] sm:$0xf]
      %v1483 = vld [vmem:[%s277 + $0x24] sm:$0xf]
      %v1484 = vld [vmem:[%s277 + $0x28] sm:$0xf]
      %v1485 = vld [vmem:[%s277 + $0x2c] sm:$0xf]
      %v1486 = vld [vmem:[%s277 + $0x30] sm:$0xf]
      %v1487 = vld [vmem:[%s277 + $0x34] sm:$0xf]
      %v1488 = vld [vmem:[%s277 + $0x38] sm:$0xf]
      %v1489 = vld [vmem:[%s277 + $0x3c] sm:$0xf]
      %v1490 = vld [vmem:[%s277 + $0x40] sm:$0xf]
      %v1491 = vld [vmem:[%s277 + $0x44] sm:$0xf]
      %v1492 = vld [vmem:[%s277 + $0x48] sm:$0xf]
      %v1493 = vld [vmem:[%s277 + $0x4c] sm:$0xf]
      %v1494 = vld [vmem:[%s277 + $0x50] sm:$0xf]
      %v1495 = vld [vmem:[%s277 + $0x54] sm:$0xf]
      %s1496 = scalar_lea.vmem %s1, 24
      %v1497 = vld [vmem:[%s1496] sm:$0xf]
      %v1516 = vunpack.c.l.b16 %v1478
      %v1517 = vunpack.c.l.b16 %v1479
      %v1518 = vunpack.c.l.b16 %v1480
      %v1519 = vunpack.c.l.b16 %v1481
      %v1520 = vunpack.c.l.b16 %v1482
      %v1521 = vunpack.c.l.b16 %v1483
      %v1522 = vunpack.c.l.b16 %v1484
      %v1523 = vunpack.c.l.b16 %v1485
      %v1524 = vunpack.c.l.b16 %v1486
      %v1525 = vunpack.c.l.b16 %v1487
      %v1526 = vunpack.c.l.b16 %v1488
      %v1527 = vunpack.c.l.b16 %v1489
      %v1528 = vunpack.c.l.b16 %v1490
      %v1529 = vunpack.c.l.b16 %v1491
      %v1530 = vunpack.c.l.b16 %v1492
      %v1531 = vunpack.c.l.b16 %v1493
      %v1532 = vunpack.c.l.b16 %v1494
      %v1533 = vunpack.c.l.b16 %v1495
      %v1534 = vpack.c.b16 %v1517, %v1516
      %v1535 = vpack.c.b16 %v1519, %v1518
      %v1536 = vpack.c.b16 %v1521, %v1520
      %v1537 = vpack.c.b16 %v1523, %v1522
      %v1538 = vpack.c.b16 %v1525, %v1524
      %v1539 = vpack.c.b16 %v1527, %v1526
      %v1540 = vpack.c.b16 %v1529, %v1528
      %v1541 = vpack.c.b16 %v1531, %v1530
      %v1542 = vpack.c.b16 %v1533, %v1532
      %v1544 = vsel %vm363, %v1534, 0
      %v1547 = vsel %vm363, %v1535, 0
      %v1550 = vsel %vm363, %v1536, 0
      %v1553 = vsel %vm363, %v1537, 0
      %v1556 = vsel %vm363, %v1538, 0
      %v1559 = vsel %vm363, %v1539, 0
      %v1562 = vsel %vm363, %v1540, 0
      %v1565 = vsel %vm363, %v1541, 0
      %v1568 = vsel %vm363, %v1542, 0
      %v1571 = vsel %vm391, %v1497, 0
      %1573 = vmatprep.subr.bf16.mxu0 0
      %1574 = vmatpush1.bf16.msra.mxu0 %v1571
      %1575 = vmatprep.subr.bf16.mxu0 0
      %1576 = vmatpush1.bf16.msra.mxu0 0
      %1577 = vmatprep.subr.bf16.mxu0 0
      %1578 = vmatpush1.bf16.msra.mxu0 0
      %1579 = vmatprep.subr.bf16.mxu0 0
      %1580 = vmatpush1.bf16.msra.mxu0 0
      %1581 = vmatprep.subr.bf16.mxu0 0
      %1582 = vmatpush1.bf16.msra.mxu0 0
      %1583 = vmatprep.subr.bf16.mxu0 0
      %1584 = vmatpush1.bf16.msra.mxu0 0
      %1585 = vmatprep.subr.bf16.mxu0 0
      %1586 = vmatpush1.bf16.msra.mxu0 0
      %1587 = vmatprep.subr.bf16.mxu0 0
      %1588 = vmatpush1.bf16.msra.mxu0 0
      %1589 = vmatprep.subr.bf16.mxu0 0
      %1590 = vmatpush1.bf16.msra.mxu0 0
      %1591 = vmatprep.subr.bf16.mxu0 0
      %1592 = vmatpush1.bf16.msra.mxu0 0
      %1593 = vmatprep.subr.bf16.mxu0 0
      %1594 = vmatpush1.bf16.msra.mxu0 0
      %1595 = vmatprep.subr.bf16.mxu0 0
      %1596 = vmatpush1.bf16.msra.mxu0 0
      %1597 = vmatprep.subr.bf16.mxu0 0
      %1598 = vmatpush1.bf16.msra.mxu0 0
      %1599 = vmatprep.subr.bf16.mxu0 0
      %1600 = vmatpush1.bf16.msra.mxu0 0
      %1601 = vmatprep.subr.bf16.mxu0 0
      %1602 = vmatpush1.bf16.msra.mxu0 0
      %1603 = vmatprep.subr.bf16.mxu0 0
      %1604 = vmatpush1.bf16.msra.mxu0 0
      %1605 = vmatprep.mubr.bf16.mxu0 0
      %1606 = vmatmul.mubr.bf16.gmra.mrb[0].mxu0 %v1544
      %v1607 = vpop.f32.mrb[0].mxu0
      %v1608 = vadd.f32 0.0, %v1607
      %v1609 = vpop.f32.mrb[0].mxu0
      %v1610 = vpop.f32.mrb[0].mxu0
      %v1611 = vadd.f32 0.0, %v1610
      %v1612 = vpop.f32.mrb[0].mxu0
      %1613 = vmatprep.mubr.bf16.mxu0 0
      %1614 = vmatmul.mubr.bf16.gmra.mrb[0].mxu0 %v1547
      %v1615 = vpop.f32.mrb[0].mxu0
      %v1616 = vadd.f32 0.0, %v1615
      %v1617 = vpop.f32.mrb[0].mxu0
      %v1618 = vpop.f32.mrb[0].mxu0
      %v1619 = vadd.f32 0.0, %v1618
      %v1620 = vpop.f32.mrb[0].mxu0
      %1621 = vmatprep.mubr.bf16.mxu0 0
      %1622 = vmatmul.mubr.bf16.gmra.mrb[0].mxu0 %v1550
      %v1623 = vpop.f32.mrb[0].mxu0
      %v1624 = vadd.f32 0.0, %v1623
      %v1625 = vpop.f32.mrb[0].mxu0
      %v1626 = vpop.f32.mrb[0].mxu0
      %v1627 = vadd.f32 0.0, %v1626
      %v1628 = vpop.f32.mrb[0].mxu0
      %1629 = vmatprep.mubr.bf16.mxu0 0
      %1630 = vmatmul.mubr.bf16.gmra.mrb[0].mxu0 %v1553
      %v1631 = vpop.f32.mrb[0].mxu0
      %v1632 = vadd.f32 0.0, %v1631
      %v1633 = vpop.f32.mrb[0].mxu0
      %v1634 = vpop.f32.mrb[0].mxu0
      %v1635 = vadd.f32 0.0, %v1634
      %v1636 = vpop.f32.mrb[0].mxu0
      %1637 = vmatprep.mubr.bf16.mxu0 0
      %1638 = vmatmul.mubr.bf16.gmra.mrb[0].mxu0 %v1556
      %v1639 = vpop.f32.mrb[0].mxu0
      %v1640 = vadd.f32 0.0, %v1639
      %v1641 = vpop.f32.mrb[0].mxu0
      %v1642 = vpop.f32.mrb[0].mxu0
      %v1643 = vadd.f32 0.0, %v1642
      %v1644 = vpop.f32.mrb[0].mxu0
      %1645 = vmatprep.mubr.bf16.mxu0 0
      %1646 = vmatmul.mubr.bf16.gmra.mrb[0].mxu0 %v1559
      %v1647 = vpop.f32.mrb[0].mxu0
      %v1648 = vadd.f32 0.0, %v1647
      %v1649 = vpop.f32.mrb[0].mxu0
      %v1650 = vpop.f32.mrb[0].mxu0
      %v1651 = vadd.f32 0.0, %v1650
      %v1652 = vpop.f32.mrb[0].mxu0
      %1653 = vmatprep.mubr.bf16.mxu0 0
      %1654 = vmatmul.mubr.bf16.gmra.mrb[0].mxu0 %v1562
      %v1655 = vpop.f32.mrb[0].mxu0
      %v1656 = vadd.f32 0.0, %v1655
      %v1657 = vpop.f32.mrb[0].mxu0
      %v1658 = vpop.f32.mrb[0].mxu0
      %v1659 = vadd.f32 0.0, %v1658
      %v1660 = vpop.f32.mrb[0].mxu0
      %1661 = vmatprep.mubr.bf16.mxu0 0
      %1662 = vmatmul.mubr.bf16.gmra.mrb[0].mxu0 %v1565
      %v1663 = vpop.f32.mrb[0].mxu0
      %v1664 = vadd.f32 0.0, %v1663
      %v1665 = vpop.f32.mrb[0].mxu0
      %v1666 = vpop.f32.mrb[0].mxu0
      %v1667 = vadd.f32 0.0, %v1666
      %v1668 = vpop.f32.mrb[0].mxu0
      %1669 = vmatprep.mubr.bf16.mxu0 0
      %1670 = vmatmul.mubr.bf16.gmra.mrb[0].mxu0 %v1568
      %v1671 = vpop.f32.mrb[0].mxu0
      %v1672 = vpop.f32.mrb[0].mxu0
      %v1673 = vpop.f32.mrb[0].mxu0
      %v1674 = vpop.f32.mrb[0].mxu0
      %1675 = vdwg.mxu0
      %v1676 = vadd.f32 %v1462, %v1608
      %v1677 = vadd.f32 %v1463, %v1611
      %v1678 = vadd.f32 %v1464, %v1616
      %v1679 = vadd.f32 %v1465, %v1619
      %v1680 = vadd.f32 %v1466, %v1624
      %v1681 = vadd.f32 %v1467, %v1627
      %v1682 = vadd.f32 %v1468, %v1632
      %v1683 = vadd.f32 %v1469, %v1635
      %v1684 = vadd.f32 %v1470, %v1640
      %v1685 = vadd.f32 %v1471, %v1643
      %v1686 = vadd.f32 %v1472, %v1648
      %v1687 = vadd.f32 %v1473, %v1651
      %v1688 = vadd.f32 %v1474, %v1656
      %v1689 = vadd.f32 %v1475, %v1659
      %v1690 = vadd.f32 %v1476, %v1664
      %v1691 = vadd.f32 %v1477, %v1667
      %s1692 = scalar_lea.vmem %s1, 28
      %v1693 = vld [vmem:[%s1692] sm:$0xf]
      %v1695 = vsel %vm391, %v1693, 0
      %1697 = vmatprep.subr.bf16.mxu0 0
      %1698 = vmatpush1.bf16.msra.mxu0 %v1695
      %1699 = vmatprep.subr.bf16.mxu0 0
      %1700 = vmatpush1.bf16.msra.mxu0 0
      %1701 = vmatprep.subr.bf16.mxu0 0
      %1702 = vmatpush1.bf16.msra.mxu0 0
      %1703 = vmatprep.subr.bf16.mxu0 0
      %1704 = vmatpush1.bf16.msra.mxu0 0
      %1705 = vmatprep.subr.bf16.mxu0 0
      %1706 = vmatpush1.bf16.msra.mxu0 0
      %1707 = vmatprep.subr.bf16.mxu0 0
      %1708 = vmatpush1.bf16.msra.mxu0 0
      %1709 = vmatprep.subr.bf16.mxu0 0
      %1710 = vmatpush1.bf16.msra.mxu0 0
      %1711 = vmatprep.subr.bf16.mxu0 0
      %1712 = vmatpush1.bf16.msra.mxu0 0
      %1713 = vmatprep.subr.bf16.mxu0 0
      %1714 = vmatpush1.bf16.msra.mxu0 0
      %1715 = vmatprep.subr.bf16.mxu0 0
      %1716 = vmatpush1.bf16.msra.mxu0 0
      %1717 = vmatprep.subr.bf16.mxu0 0
      %1718 = vmatpush1.bf16.msra.mxu0 0
      %1719 = vmatprep.subr.bf16.mxu0 0
      %1720 = vmatpush1.bf16.msra.mxu0 0
      %1721 = vmatprep.subr.bf16.mxu0 0
      %1722 = vmatpush1.bf16.msra.mxu0 0
      %1723 = vmatprep.subr.bf16.mxu0 0
      %1724 = vmatpush1.bf16.msra.mxu0 0
      %1725 = vmatprep.subr.bf16.mxu0 0
      %1726 = vmatpush1.bf16.msra.mxu0 0
      %1727 = vmatprep.subr.bf16.mxu0 0
      %1728 = vmatpush1.bf16.msra.mxu0 0
      %1729 = vmatprep.mubr.bf16.mxu0 0
      %1730 = vmatmul.mubr.bf16.gmra.mrb[0].mxu0 %v1544
      %v1731 = vpop.f32.mrb[0].mxu0
      %v1732 = vadd.f32 0.0, %v1731
      %v1733 = vpop.f32.mrb[0].mxu0
      %v1734 = vpop.f32.mrb[0].mxu0
      %v1735 = vadd.f32 0.0, %v1734
      %v1736 = vpop.f32.mrb[0].mxu0
      %1737 = vmatprep.mubr.bf16.mxu0 0
      %1738 = vmatmul.mubr.bf16.gmra.mrb[0].mxu0 %v1547
      %v1739 = vpop.f32.mrb[0].mxu0
      %v1740 = vadd.f32 0.0, %v1739
      %v1741 = vpop.f32.mrb[0].mxu0
      %v1742 = vpop.f32.mrb[0].mxu0
      %v1743 = vadd.f32 0.0, %v1742
      %v1744 = vpop.f32.mrb[0].mxu0
      %1745 = vmatprep.mubr.bf16.mxu0 0
      %1746 = vmatmul.mubr.bf16.gmra.mrb[0].mxu0 %v1550
      %v1747 = vpop.f32.mrb[0].mxu0
      %v1748 = vadd.f32 0.0, %v1747
      %v1749 = vpop.f32.mrb[0].mxu0
      %v1750 = vpop.f32.mrb[0].mxu0
      %v1751 = vadd.f32 0.0, %v1750
      %v1752 = vpop.f32.mrb[0].mxu0
      %1753 = vmatprep.mubr.bf16.mxu0 0
      %1754 = vmatmul.mubr.bf16.gmra.mrb[0].mxu0 %v1553
      %v1755 = vpop.f32.mrb[0].mxu0
      %v1756 = vadd.f32 0.0, %v1755
      %v1757 = vpop.f32.mrb[0].mxu0
      %v1758 = vpop.f32.mrb[0].mxu0
      %v1759 = vadd.f32 0.0, %v1758
      %v1760 = vpop.f32.mrb[0].mxu0
      %1761 = vmatprep.mubr.bf16.mxu0 0
      %1762 = vmatmul.mubr.bf16.gmra.mrb[0].mxu0 %v1556
      %v1763 = vpop.f32.mrb[0].mxu0
      %v1764 = vadd.f32 0.0, %v1763
      %v1765 = vpop.f32.mrb[0].mxu0
      %v1766 = vpop.f32.mrb[0].mxu0
      %v1767 = vadd.f32 0.0, %v1766
      %v1768 = vpop.f32.mrb[0].mxu0
      %1769 = vmatprep.mubr.bf16.mxu0 0
      %1770 = vmatmul.mubr.bf16.gmra.mrb[0].mxu0 %v1559
      %v1771 = vpop.f32.mrb[0].mxu0
      %v1772 = vadd.f32 0.0, %v1771
      %v1773 = vpop.f32.mrb[0].mxu0
      %v1774 = vpop.f32.mrb[0].mxu0
      %v1775 = vadd.f32 0.0, %v1774
      %v1776 = vpop.f32.mrb[0].mxu0
      %1777 = vmatprep.mubr.bf16.mxu0 0
      %1778 = vmatmul.mubr.bf16.gmra.mrb[0].mxu0 %v1562
      %v1779 = vpop.f32.mrb[0].mxu0
      %v1780 = vadd.f32 0.0, %v1779
      %v1781 = vpop.f32.mrb[0].mxu0
      %v1782 = vpop.f32.mrb[0].mxu0
      %v1783 = vadd.f32 0.0, %v1782
      %v1784 = vpop.f32.mrb[0].mxu0
      %1785 = vmatprep.mubr.bf16.mxu0 0
      %1786 = vmatmul.mubr.bf16.gmra.mrb[0].mxu0 %v1565
      %v1787 = vpop.f32.mrb[0].mxu0
      %v1788 = vadd.f32 0.0, %v1787
      %v1789 = vpop.f32.mrb[0].mxu0
      %v1790 = vpop.f32.mrb[0].mxu0
      %v1791 = vadd.f32 0.0, %v1790
      %v1792 = vpop.f32.mrb[0].mxu0
      %1793 = vmatprep.mubr.bf16.mxu0 0
      %1794 = vmatmul.mubr.bf16.gmra.mrb[0].mxu0 %v1568
      %v1795 = vpop.f32.mrb[0].mxu0
      %v1796 = vadd.f32 0.0, %v1795
      %v1797 = vpop.f32.mrb[0].mxu0
      %v1798 = vpop.f32.mrb[0].mxu0
      %v1799 = vpop.f32.mrb[0].mxu0
      %1800 = vdwg.mxu0
      %v1818 = vrot.slane %v1732, 1
      %v1819 = vrot.slane %v1735, 1
      %v1820 = vsel %vm624, %v1818, %v1819
      %v1821 = vrot.slane %v1740, 1
      %v1822 = vsel %vm624, %v1819, %v1821
      %v1823 = vrot.slane %v1743, 1
      %v1824 = vsel %vm624, %v1821, %v1823
      %v1825 = vrot.slane %v1748, 1
      %v1826 = vsel %vm624, %v1823, %v1825
      %v1827 = vrot.slane %v1751, 1
      %v1828 = vsel %vm624, %v1825, %v1827
      %v1829 = vrot.slane %v1756, 1
      %v1830 = vsel %vm624, %v1827, %v1829
      %v1831 = vrot.slane %v1759, 1
      %v1832 = vsel %vm624, %v1829, %v1831
      %v1833 = vrot.slane %v1764, 1
      %v1834 = vsel %vm624, %v1831, %v1833
      %v1835 = vrot.slane %v1767, 1
      %v1836 = vsel %vm624, %v1833, %v1835
      %v1837 = vrot.slane %v1772, 1
      %v1838 = vsel %vm624, %v1835, %v1837
      %v1839 = vrot.slane %v1775, 1
      %v1840 = vsel %vm624, %v1837, %v1839
      %v1841 = vrot.slane %v1780, 1
      %v1842 = vsel %vm624, %v1839, %v1841
      %v1843 = vrot.slane %v1783, 1
      %v1844 = vsel %vm624, %v1841, %v1843
      %v1845 = vrot.slane %v1788, 1
      %v1846 = vsel %vm624, %v1843, %v1845
      %v1847 = vrot.slane %v1791, 1
      %v1848 = vsel %vm624, %v1845, %v1847
      %v1849 = vrot.slane %v1796, 1
      %v1850 = vsel %vm624, %v1847, %v1849
      %v1867 = vadd.f32 %v1676, %v1820
      %v1868 = vadd.f32 %v1677, %v1822
      %v1869 = vadd.f32 %v1678, %v1824
      %v1870 = vadd.f32 %v1679, %v1826
      %v1871 = vadd.f32 %v1680, %v1828
      %v1872 = vadd.f32 %v1681, %v1830
      %v1873 = vadd.f32 %v1682, %v1832
      %v1874 = vadd.f32 %v1683, %v1834
      %v1875 = vadd.f32 %v1684, %v1836
      %v1876 = vadd.f32 %v1685, %v1838
      %v1877 = vadd.f32 %v1686, %v1840
      %v1878 = vadd.f32 %v1687, %v1842
      %v1879 = vadd.f32 %v1688, %v1844
      %v1880 = vadd.f32 %v1689, %v1846
      %v1881 = vadd.f32 %v1690, %v1848
      %v1882 = vadd.f32 %v1691, %v1850
      %s1883 = scalar_lea.vmem %s1, 32
      %v1884 = vld [vmem:[%s1883] sm:$0xf]
      %v1886 = vsel %vm391, %v1884, 0
      %1888 = vmatprep.subr.bf16.mxu0 0
      %1889 = vmatpush1.bf16.msra.mxu0 %v1886
      %1890 = vmatprep.subr.bf16.mxu0 0
      %1891 = vmatpush1.bf16.msra.mxu0 0
      %1892 = vmatprep.subr.bf16.mxu0 0
      %1893 = vmatpush1.bf16.msra.mxu0 0
      %1894 = vmatprep.subr.bf16.mxu0 0
      %1895 = vmatpush1.bf16.msra.mxu0 0
      %1896 = vmatprep.subr.bf16.mxu0 0
      %1897 = vmatpush1.bf16.msra.mxu0 0
      %1898 = vmatprep.subr.bf16.mxu0 0
      %1899 = vmatpush1.bf16.msra.mxu0 0
      %1900 = vmatprep.subr.bf16.mxu0 0
      %1901 = vmatpush1.bf16.msra.mxu0 0
      %1902 = vmatprep.subr.bf16.mxu0 0
      %1903 = vmatpush1.bf16.msra.mxu0 0
      %1904 = vmatprep.subr.bf16.mxu0 0
      %1905 = vmatpush1.bf16.msra.mxu0 0
      %1906 = vmatprep.subr.bf16.mxu0 0
      %1907 = vmatpush1.bf16.msra.mxu0 0
      %1908 = vmatprep.subr.bf16.mxu0 0
      %1909 = vmatpush1.bf16.msra.mxu0 0
      %1910 = vmatprep.subr.bf16.mxu0 0
      %1911 = vmatpush1.bf16.msra.mxu0 0
      %1912 = vmatprep.subr.bf16.mxu0 0
      %1913 = vmatpush1.bf16.msra.mxu0 0
      %1914 = vmatprep.subr.bf16.mxu0 0
      %1915 = vmatpush1.bf16.msra.mxu0 0
      %1916 = vmatprep.subr.bf16.mxu0 0
      %1917 = vmatpush1.bf16.msra.mxu0 0
      %1918 = vmatprep.subr.bf16.mxu0 0
      %1919 = vmatpush1.bf16.msra.mxu0 0
      %1920 = vmatprep.mubr.bf16.mxu0 0
      %1921 = vmatmul.mubr.bf16.gmra.mrb[0].mxu0 %v1544
      %v1922 = vpop.f32.mrb[0].mxu0
      %v1923 = vadd.f32 0.0, %v1922
      %v1924 = vpop.f32.mrb[0].mxu0
      %v1925 = vpop.f32.mrb[0].mxu0
      %v1926 = vadd.f32 0.0, %v1925
      %v1927 = vpop.f32.mrb[0].mxu0
      %1928 = vmatprep.mubr.bf16.mxu0 0
      %1929 = vmatmul.mubr.bf16.gmra.mrb[0].mxu0 %v1547
      %v1930 = vpop.f32.mrb[0].mxu0
      %v1931 = vadd.f32 0.0, %v1930
      %v1932 = vpop.f32.mrb[0].mxu0
      %v1933 = vpop.f32.mrb[0].mxu0
      %v1934 = vadd.f32 0.0, %v1933
      %v1935 = vpop.f32.mrb[0].mxu0
      %1936 = vmatprep.mubr.bf16.mxu0 0
      %1937 = vmatmul.mubr.bf16.gmra.mrb[0].mxu0 %v1550
      %v1938 = vpop.f32.mrb[0].mxu0
      %v1939 = vadd.f32 0.0, %v1938
      %v1940 = vpop.f32.mrb[0].mxu0
      %v1941 = vpop.f32.mrb[0].mxu0
      %v1942 = vadd.f32 0.0, %v1941
      %v1943 = vpop.f32.mrb[0].mxu0
      %1944 = vmatprep.mubr.bf16.mxu0 0
      %1945 = vmatmul.mubr.bf16.gmra.mrb[0].mxu0 %v1553
      %v1946 = vpop.f32.mrb[0].mxu0
      %v1947 = vadd.f32 0.0, %v1946
      %v1948 = vpop.f32.mrb[0].mxu0
      %v1949 = vpop.f32.mrb[0].mxu0
      %v1950 = vadd.f32 0.0, %v1949
      %v1951 = vpop.f32.mrb[0].mxu0
      %1952 = vmatprep.mubr.bf16.mxu0 0
      %1953 = vmatmul.mubr.bf16.gmra.mrb[0].mxu0 %v1556
      %v1954 = vpop.f32.mrb[0].mxu0
      %v1955 = vadd.f32 0.0, %v1954
      %v1956 = vpop.f32.mrb[0].mxu0
      %v1957 = vpop.f32.mrb[0].mxu0
      %v1958 = vadd.f32 0.0, %v1957
      %v1959 = vpop.f32.mrb[0].mxu0
      %1960 = vmatprep.mubr.bf16.mxu0 0
      %1961 = vmatmul.mubr.bf16.gmra.mrb[0].mxu0 %v1559
      %v1962 = vpop.f32.mrb[0].mxu0
      %v1963 = vadd.f32 0.0, %v1962
      %v1964 = vpop.f32.mrb[0].mxu0
      %v1965 = vpop.f32.mrb[0].mxu0
      %v1966 = vadd.f32 0.0, %v1965
      %v1967 = vpop.f32.mrb[0].mxu0
      %1968 = vmatprep.mubr.bf16.mxu0 0
      %1969 = vmatmul.mubr.bf16.gmra.mrb[0].mxu0 %v1562
      %v1970 = vpop.f32.mrb[0].mxu0
      %v1971 = vadd.f32 0.0, %v1970
      %v1972 = vpop.f32.mrb[0].mxu0
      %v1973 = vpop.f32.mrb[0].mxu0
      %v1974 = vadd.f32 0.0, %v1973
      %v1975 = vpop.f32.mrb[0].mxu0
      %1976 = vmatprep.mubr.bf16.mxu0 0
      %1977 = vmatmul.mubr.bf16.gmra.mrb[0].mxu0 %v1565
      %v1978 = vpop.f32.mrb[0].mxu0
      %v1979 = vadd.f32 0.0, %v1978
      %v1980 = vpop.f32.mrb[0].mxu0
      %v1981 = vpop.f32.mrb[0].mxu0
      %v1982 = vadd.f32 0.0, %v1981
      %v1983 = vpop.f32.mrb[0].mxu0
      %1984 = vmatprep.mubr.bf16.mxu0 0
      %1985 = vmatmul.mubr.bf16.gmra.mrb[0].mxu0 %v1568
      %v1986 = vpop.f32.mrb[0].mxu0
      %v1987 = vadd.f32 0.0, %v1986
      %v1988 = vpop.f32.mrb[0].mxu0
      %v1989 = vpop.f32.mrb[0].mxu0
      %v1990 = vpop.f32.mrb[0].mxu0
      %1991 = vdwg.mxu0
      %v2009 = vrot.slane %v1923, 2
      %v2010 = vrot.slane %v1926, 2
      %v2011 = vsel %vm816, %v2009, %v2010
      %v2012 = vrot.slane %v1931, 2
      %v2013 = vsel %vm816, %v2010, %v2012
      %v2014 = vrot.slane %v1934, 2
      %v2015 = vsel %vm816, %v2012, %v2014
      %v2016 = vrot.slane %v1939, 2
      %v2017 = vsel %vm816, %v2014, %v2016
      %v2018 = vrot.slane %v1942, 2
      %v2019 = vsel %vm816, %v2016, %v2018
      %v2020 = vrot.slane %v1947, 2
      %v2021 = vsel %vm816, %v2018, %v2020
      %v2022 = vrot.slane %v1950, 2
      %v2023 = vsel %vm816, %v2020, %v2022
      %v2024 = vrot.slane %v1955, 2
      %v2025 = vsel %vm816, %v2022, %v2024
      %v2026 = vrot.slane %v1958, 2
      %v2027 = vsel %vm816, %v2024, %v2026
      %v2028 = vrot.slane %v1963, 2
      %v2029 = vsel %vm816, %v2026, %v2028
      %v2030 = vrot.slane %v1966, 2
      %v2031 = vsel %vm816, %v2028, %v2030
      %v2032 = vrot.slane %v1971, 2
      %v2033 = vsel %vm816, %v2030, %v2032
      %v2034 = vrot.slane %v1974, 2
      %v2035 = vsel %vm816, %v2032, %v2034
      %v2036 = vrot.slane %v1979, 2
      %v2037 = vsel %vm816, %v2034, %v2036
      %v2038 = vrot.slane %v1982, 2
      %v2039 = vsel %vm816, %v2036, %v2038
      %v2040 = vrot.slane %v1987, 2
      %v2041 = vsel %vm816, %v2038, %v2040
      %v2058 = vadd.f32 %v1867, %v2011
      %v2059 = vadd.f32 %v1868, %v2013
      %v2060 = vadd.f32 %v1869, %v2015
      %v2061 = vadd.f32 %v1870, %v2017
      %v2062 = vadd.f32 %v1871, %v2019
      %v2063 = vadd.f32 %v1872, %v2021
      %v2064 = vadd.f32 %v1873, %v2023
      %v2065 = vadd.f32 %v1874, %v2025
      %v2066 = vadd.f32 %v1875, %v2027
      %v2067 = vadd.f32 %v1876, %v2029
      %v2068 = vadd.f32 %v1877, %v2031
      %v2069 = vadd.f32 %v1878, %v2033
      %v2070 = vadd.f32 %v1879, %v2035
      %v2071 = vadd.f32 %v1880, %v2037
      %v2072 = vadd.f32 %v1881, %v2039
      %v2073 = vadd.f32 %v1882, %v2041
      %v2074 = vld [vmem:[%s286] sm:$0xf]
      %v2075 = vld [vmem:[%s286 + $0x4] sm:$0xf]
      %v2076 = vld [vmem:[%s286 + $0x8] sm:$0xf]
      %v2077 = vld [vmem:[%s286 + $0xc] sm:$0xf]
      %v2078 = vld [vmem:[%s286 + $0x10] sm:$0xf]
      %v2079 = vld [vmem:[%s286 + $0x14] sm:$0xf]
      %v2080 = vld [vmem:[%s286 + $0x18] sm:$0xf]
      %v2081 = vld [vmem:[%s286 + $0x1c] sm:$0xf]
      %v2082 = vld [vmem:[%s286 + $0x20] sm:$0xf]
      %v2083 = vld [vmem:[%s286 + $0x24] sm:$0xf]
      %v2084 = vld [vmem:[%s286 + $0x28] sm:$0xf]
      %v2085 = vld [vmem:[%s286 + $0x2c] sm:$0xf]
      %v2086 = vld [vmem:[%s286 + $0x30] sm:$0xf]
      %v2087 = vld [vmem:[%s286 + $0x34] sm:$0xf]
      %v2088 = vld [vmem:[%s286 + $0x38] sm:$0xf]
      %v2089 = vld [vmem:[%s286 + $0x3c] sm:$0xf]
      %v2090 = vld [vmem:[%s4] sm:$0x3]
      %v2107 = vunpack.c.l.b16 %v2074
      %v2108 = vunpack.c.l.b16 %v2075
      %v2109 = vunpack.c.l.b16 %v2076
      %v2110 = vunpack.c.l.b16 %v2077
      %v2111 = vunpack.c.l.b16 %v2078
      %v2112 = vunpack.c.l.b16 %v2079
      %v2113 = vunpack.c.l.b16 %v2080
      %v2114 = vunpack.c.l.b16 %v2081
      %v2115 = vunpack.c.l.b16 %v2082
      %v2116 = vunpack.c.l.b16 %v2083
      %v2117 = vunpack.c.l.b16 %v2084
      %v2118 = vunpack.c.l.b16 %v2085
      %v2119 = vunpack.c.l.b16 %v2086
      %v2120 = vunpack.c.l.b16 %v2087
      %v2121 = vunpack.c.l.b16 %v2088
      %v2122 = vunpack.c.l.b16 %v2089
      %v2123 = vpack.c.b16 %v2108, %v2107
      %v2124 = vpack.c.b16 %v2110, %v2109
      %v2125 = vpack.c.b16 %v2112, %v2111
      %v2126 = vpack.c.b16 %v2114, %v2113
      %v2127 = vpack.c.b16 %v2116, %v2115
      %v2128 = vpack.c.b16 %v2118, %v2117
      %v2129 = vpack.c.b16 %v2120, %v2119
      %v2130 = vpack.c.b16 %v2122, %v2121
      %vm2131 = vcmask 31744
      %v2133 = vsel %vm2131, %v2123, 0
      %v2136 = vsel %vm2131, %v2124, 0
      %v2139 = vsel %vm2131, %v2125, 0
      %v2142 = vsel %vm2131, %v2126, 0
      %v2145 = vsel %vm2131, %v2127, 0
      %v2148 = vsel %vm2131, %v2128, 0
      %v2151 = vsel %vm2131, %v2129, 0
      %v2154 = vsel %vm2131, %v2130, 0
      %vm2156 = vcmask 1041408
      %v2158 = vsel %vm2156, %v2090, 0
      %2160 = vmatprep.subr.bf16.mxu0 0
      %2161 = vmatpush1.bf16.msra.mxu0 %v2158
      %2162 = vmatprep.subr.bf16.mxu0 0
      %2163 = vmatpush1.bf16.msra.mxu0 0
      %2164 = vmatprep.subr.bf16.mxu0 0
      %2165 = vmatpush1.bf16.msra.mxu0 0
      %2166 = vmatprep.subr.bf16.mxu0 0
      %2167 = vmatpush1.bf16.msra.mxu0 0
      %2168 = vmatprep.subr.bf16.mxu0 0
      %2169 = vmatpush1.bf16.msra.mxu0 0
      %2170 = vmatprep.subr.bf16.mxu0 0
      %2171 = vmatpush1.bf16.msra.mxu0 0
      %2172 = vmatprep.subr.bf16.mxu0 0
      %2173 = vmatpush1.bf16.msra.mxu0 0
      %2174 = vmatprep.subr.bf16.mxu0 0
      %2175 = vmatpush1.bf16.msra.mxu0 0
      %2176 = vmatprep.subr.bf16.mxu0 0
      %2177 = vmatpush1.bf16.msra.mxu0 0
      %2178 = vmatprep.subr.bf16.mxu0 0
      %2179 = vmatpush1.bf16.msra.mxu0 0
      %2180 = vmatprep.subr.bf16.mxu0 0
      %2181 = vmatpush1.bf16.msra.mxu0 0
      %2182 = vmatprep.subr.bf16.mxu0 0
      %2183 = vmatpush1.bf16.msra.mxu0 0
      %2184 = vmatprep.subr.bf16.mxu0 0
      %2185 = vmatpush1.bf16.msra.mxu0 0
      %2186 = vmatprep.subr.bf16.mxu0 0
      %2187 = vmatpush1.bf16.msra.mxu0 0
      %2188 = vmatprep.subr.bf16.mxu0 0
      %2189 = vmatpush1.bf16.msra.mxu0 0
      %2190 = vmatprep.subr.bf16.mxu0 0
      %2191 = vmatpush1.bf16.msra.mxu0 0
      %2192 = vmatprep.mubr.bf16.mxu0 0
      %2193 = vmatmul.mubr.bf16.gmra.mrb[0].mxu0 %v2133
      %v2194 = vpop.f32.mrb[0].mxu0
      %v2195 = vadd.f32 0.0, %v2194
      %v2196 = vpop.f32.mrb[0].mxu0
      %v2197 = vpop.f32.mrb[0].mxu0
      %v2198 = vadd.f32 0.0, %v2197
      %v2199 = vpop.f32.mrb[0].mxu0
      %2200 = vmatprep.mubr.bf16.mxu0 0
      %2201 = vmatmul.mubr.bf16.gmra.mrb[0].mxu0 %v2136
      %v2202 = vpop.f32.mrb[0].mxu0
      %v2203 = vadd.f32 0.0, %v2202
      %v2204 = vpop.f32.mrb[0].mxu0
      %v2205 = vpop.f32.mrb[0].mxu0
      %v2206 = vadd.f32 0.0, %v2205
      %v2207 = vpop.f32.mrb[0].mxu0
      %2208 = vmatprep.mubr.bf16.mxu0 0
      %2209 = vmatmul.mubr.bf16.gmra.mrb[0].mxu0 %v2139
      %v2210 = vpop.f32.mrb[0].mxu0
      %v2211 = vadd.f32 0.0, %v2210
      %v2212 = vpop.f32.mrb[0].mxu0
      %v2213 = vpop.f32.mrb[0].mxu0
      %v2214 = vadd.f32 0.0, %v2213
      %v2215 = vpop.f32.mrb[0].mxu0
      %2216 = vmatprep.mubr.bf16.mxu0 0
      %2217 = vmatmul.mubr.bf16.gmra.mrb[0].mxu0 %v2142
      %v2218 = vpop.f32.mrb[0].mxu0
      %v2219 = vadd.f32 0.0, %v2218
      %v2220 = vpop.f32.mrb[0].mxu0
      %v2221 = vpop.f32.mrb[0].mxu0
      %v2222 = vadd.f32 0.0, %v2221
      %v2223 = vpop.f32.mrb[0].mxu0
      %2224 = vmatprep.mubr.bf16.mxu0 0
      %2225 = vmatmul.mubr.bf16.gmra.mrb[0].mxu0 %v2145
      %v2226 = vpop.f32.mrb[0].mxu0
      %v2227 = vadd.f32 0.0, %v2226
      %v2228 = vpop.f32.mrb[0].mxu0
      %v2229 = vpop.f32.mrb[0].mxu0
      %v2230 = vadd.f32 0.0, %v2229
      %v2231 = vpop.f32.mrb[0].mxu0
      %2232 = vmatprep.mubr.bf16.mxu0 0
      %2233 = vmatmul.mubr.bf16.gmra.mrb[0].mxu0 %v2148
      %v2234 = vpop.f32.mrb[0].mxu0
      %v2235 = vadd.f32 0.0, %v2234
      %v2236 = vpop.f32.mrb[0].mxu0
      %v2237 = vpop.f32.mrb[0].mxu0
      %v2238 = vadd.f32 0.0, %v2237
      %v2239 = vpop.f32.mrb[0].mxu0
      %2240 = vmatprep.mubr.bf16.mxu0 0
      %2241 = vmatmul.mubr.bf16.gmra.mrb[0].mxu0 %v2151
      %v2242 = vpop.f32.mrb[0].mxu0
      %v2243 = vadd.f32 0.0, %v2242
      %v2244 = vpop.f32.mrb[0].mxu0
      %v2245 = vpop.f32.mrb[0].mxu0
      %v2246 = vadd.f32 0.0, %v2245
      %v2247 = vpop.f32.mrb[0].mxu0
      %2248 = vmatprep.mubr.bf16.mxu0 0
      %2249 = vmatmul.mubr.bf16.gmra.mrb[0].mxu0 %v2154
      %v2250 = vpop.f32.mrb[0].mxu0
      %v2251 = vadd.f32 0.0, %v2250
      %v2252 = vpop.f32.mrb[0].mxu0
      %v2253 = vpop.f32.mrb[0].mxu0
      %v2254 = vadd.f32 0.0, %v2253
      %v2255 = vpop.f32.mrb[0].mxu0
      %2256 = vdwg.mxu0
      %v2257 = vadd.f32 %v2058, %v2195
      %v2258 = vadd.f32 %v2059, %v2198
      %v2259 = vadd.f32 %v2060, %v2203
      %v2260 = vadd.f32 %v2061, %v2206
      %v2261 = vadd.f32 %v2062, %v2211
      %v2262 = vadd.f32 %v2063, %v2214
      %v2263 = vadd.f32 %v2064, %v2219
      %v2264 = vadd.f32 %v2065, %v2222
      %v2265 = vadd.f32 %v2066, %v2227
      %v2266 = vadd.f32 %v2067, %v2230
      %v2267 = vadd.f32 %v2068, %v2235
      %v2268 = vadd.f32 %v2069, %v2238
      %v2269 = vadd.f32 %v2070, %v2243
      %v2270 = vadd.f32 %v2071, %v2246
      %v2271 = vadd.f32 %v2072, %v2251
      %v2272 = vadd.f32 %v2073, %v2254
      %v2273 = vld [vmem:[%s2] sm:$0x1]
      %v2275 = vlaneseq
      %v2276 = vshrl.u32 %v2275, 7
      %v2277 = vsub.s32 0, %v2276
      %v2278 = vrot.slane %v2273, %v2277
      %v2280 = vadd.f32 %v2257, %v2278
      %v2281 = vadd.f32 %v2258, %v2278
      %v2282 = vadd.f32 %v2259, %v2278
      %v2283 = vadd.f32 %v2260, %v2278
      %v2284 = vadd.f32 %v2261, %v2278
      %v2285 = vadd.f32 %v2262, %v2278
      %v2286 = vadd.f32 %v2263, %v2278
      %v2287 = vadd.f32 %v2264, %v2278
      %v2288 = vadd.f32 %v2265, %v2278
      %v2289 = vadd.f32 %v2266, %v2278
      %v2290 = vadd.f32 %v2267, %v2278
      %v2291 = vadd.f32 %v2268, %v2278
      %v2292 = vadd.f32 %v2269, %v2278
      %v2293 = vadd.f32 %v2270, %v2278
      %v2294 = vadd.f32 %v2271, %v2278
      %v2295 = vadd.f32 %v2272, %v2278
      %v2296 = vmax.f32 %v2280, 0.0
      %v2297 = vmax.f32 %v2281, 0.0
      %v2298 = vmax.f32 %v2282, 0.0
      %v2299 = vmax.f32 %v2283, 0.0
      %v2300 = vmax.f32 %v2284, 0.0
      %v2301 = vmax.f32 %v2285, 0.0
      %v2302 = vmax.f32 %v2286, 0.0
      %v2303 = vmax.f32 %v2287, 0.0
      %v2304 = vmax.f32 %v2288, 0.0
      %v2305 = vmax.f32 %v2289, 0.0
      %v2306 = vmax.f32 %v2290, 0.0
      %v2307 = vmax.f32 %v2291, 0.0
      %v2308 = vmax.f32 %v2292, 0.0
      %v2309 = vmax.f32 %v2293, 0.0
      %v2310 = vmax.f32 %v2294, 0.0
      %v2311 = vmax.f32 %v2295, 0.0
      %2312 = vst [vmem:[%s296] sm:$0xff] %v2296
      %2313 = vst [vmem:[%s296 + $0x8] sm:$0xff] %v2297
      %2314 = vst [vmem:[%s296 + $0x10] sm:$0xff] %v2298
      %2315 = vst [vmem:[%s296 + $0x18] sm:$0xff] %v2299
      %2316 = vst [vmem:[%s296 + $0x20] sm:$0xff] %v2300
      %2317 = vst [vmem:[%s296 + $0x28] sm:$0xff] %v2301
      %2318 = vst [vmem:[%s296 + $0x30] sm:$0xff] %v2302
      %2319 = vst [vmem:[%s296 + $0x38] sm:$0xff] %v2303
      %2320 = vst [vmem:[%s296 + $0x40] sm:$0xff] %v2304
      %2321 = vst [vmem:[%s296 + $0x48] sm:$0xff] %v2305
      %2322 = vst [vmem:[%s296 + $0x50] sm:$0xff] %v2306
      %2323 = vst [vmem:[%s296 + $0x58] sm:$0xff] %v2307
      %2324 = vst [vmem:[%s296 + $0x60] sm:$0xff] %v2308
      %2325 = vst [vmem:[%s296 + $0x68] sm:$0xff] %v2309
      %2326 = vst [vmem:[%s296 + $0x70] sm:$0xff] %v2310
      %2327 = vst [vmem:[%s296 + $0x78] sm:$0xff] %v2311
      %s2328 = smul.u32 16, %s21
      %p2329 = scmp.lt.s32.totalorder %s20, 1
      %s2330 = scalar_select %p2329, %s20, 1
      %p2331 = scmp.lt.s32.totalorder %s2328, 15
      %s2332 = scalar_select %p2331, %s2328, 15
      %s2333 = smul.addr %s2330, 16
      %s2334 = sadd.s32 %s2332, %s2333
      %s2335 = smul.addr %s2334, 8
      %s2336 = scalar_lea.vmem %s5, %s2335
      // Predicated region
      $region41: #{basic_block_forward.3} parent=39 // pred_check
        %p2337 = pneg %p167
      $region42: #{basic_block_forward.3} parent=39 // pred_check_branch
        %2339 = sbr.rel (%p2337) target = $region44
      $region43: #{basic_block_forward.3} parent=39 // pred_region
        %s2340 = smul.u32 16, %s21
      $region44: #{basic_block_forward.3} parent=39 // pred_fallthru
        _
    $region40: #{basic_block_forward.3} parent=5 // pred_fallthru
      _
    %p2341 = scmp.le.s32.totalorder 2, %s11
    // Predicated region
    $region45: #{basic_block_forward.3} parent=5 // pred_check
      %p2342 = pneg %p2341
    $region46: #{basic_block_forward.3} parent=5 // pred_check_branch
      %2344 = sbr.rel (%p2342) target = $region48
    $region47: #{basic_block_forward.3} parent=5 // pred_region
      %s2345 = ssub.s32 %s11, 2
      // Predicated region
      $region49: #{basic_block_forward.3} parent=47 // pred_check
        %p2346 = pneg %p173
      $region50: #{basic_block_forward.3} parent=47 // pred_check_branch
        %2348 = sbr.rel (%p2346) target = $region52
      $region51: #{basic_block_forward.3} parent=47 // pred_region
        %s2349 = smul.u32 16, %s23
        %p2350 = scmp.lt.s32.totalorder %s22, 1
        %s2351 = scalar_select %p2350, %s22, 1
        %p2352 = scmp.lt.s32.totalorder %s2349, 15
        %s2353 = scalar_select %p2352, %s2349, 15
        %s2354 = smul.addr %s2351, 16
        %s2355 = sadd.s32 %s2353, %s2354
        %s2356 = smul.addr %s2355, 8
        %s2357 = scalar_lea.vmem %s5, %s2356
      $region52: #{basic_block_forward.3} parent=47 // pred_fallthru
        _
    $region48: #{basic_block_forward.3} parent=5 // pred_fallthru
      _
  $region6: #{basic_block_forward.3} parent=0 // loop_footer
    %s15 = sadd.s32 1, %s11
  $region7: #{basic_block_forward.3} parent=0 // loop_footer_branch
    %10 = sbr.rel target = $region3
  $region8: #{basic_block_forward.3} parent=0 // loop_exit
    _

</llo_original>
